<compile_context>
chip_gen: v5e
topology: v5e:2x2
jax: 0.10.0
libtpu: 0.0.40
codegen_flags: <defaults>
</compile_context>

<pallas_src>
import math
import functools

import jax
import jax.numpy as jnp
from jax import lax
from jax.experimental import pallas as pl
from jax.experimental.pallas import tpu as pltpu

ACT_DTYPE = jnp.bfloat16     # matmul-input / weight storage dtype (MXU friendly)
NEG_INF = -1e18              # plain Python float -> jaxpr literal (no captured const)


# ----------------------------- in-kernel helpers -----------------------------

def _layer_norm(x, g, b, eps=1e-6):
    # x: (T, D) f32 ; g, b: (1, D) f32
    mu = jnp.mean(x, axis=-1, keepdims=True)
    var = jnp.mean(jnp.square(x - mu), axis=-1, keepdims=True)
    return (x - mu) * lax.rsqrt(var + eps) * g + b


def _gelu(x):
    # PreSumm's tanh-approx gelu (f32)
    return 0.5 * x * (1.0 + jnp.tanh(math.sqrt(2.0 / math.pi)
                                     * (x + 0.044715 * x * x * x)))


def _split_heads(x2d, n_heads):
    # (T, H*dh) -> (H, T, dh).  Static lane slices + major-axis stack: pure
    # layout work, avoids a lane-splitting reshape.
    t, d = x2d.shape
    dh = d // n_heads
    return jnp.stack([x2d[:, h * dh:(h + 1) * dh] for h in range(n_heads)], axis=0)


def _merge_heads(x3d):
    # (H, T, dh) -> (T, H*dh)  (lane concat, head-major like torch's unshape)
    n_heads = x3d.shape[0]
    return jnp.concatenate([x3d[h] for h in range(n_heads)], axis=-1)


def _mha(q3, k3, v3, bias):
    """Batched-head attention core.

    q3: (H, Tq, dh) bf16 (already scaled), k3/v3: (H, Tk, dh) bf16,
    bias: additive mask broadcastable to (H, Tq, Tk) f32 (-1e18 == masked).
    Returns merged context (Tq, H*dh) f32.
    """
    s = jnp.einsum('hqd,hkd->hqk', q3, k3,
                   preferred_element_type=jnp.float32) + bias
    m = jnp.max(s, axis=-1, keepdims=True)
    e = jnp.exp(s - m)
    p = e * pl.reciprocal(jnp.sum(e, axis=-1, keepdims=True), approx=True)
    ctx = jnp.einsum('hqk,hkd->hqd', p.astype(v3.dtype), v3,
                     preferred_element_type=jnp.float32)        # (H, Tq, dh)
    return _merge_heads(ctx)


# ------------------------------ Pallas kernel --------------------------------

def decoder_stack_kernel(n_heads,
                         x_ref, mem_ref, tpad_ref, spad_ref,
                         ln1_g, ln1_b, sa_wqkv, sa_bqkv, sa_wo, sa_bo,
                         ln2_g, ln2_b, ca_wq, ca_bq, ca_wkv, ca_bkv, ca_wo, ca_bo,
                         ff_ln_g, ff_ln_b, w1, b1, w2, b2,
                         fin_g, fin_b,
                         out_ref, all_in_ref, resid_ref):
    H = n_heads
    l = pl.program_id(1)
    num_l = pl.num_programs(1)

    # residual stream carried across the L axis in f32 VMEM scratch
    @pl.when(l == 0)
    def _():
        resid_ref[...] = x_ref[0]

    x = resid_ref[...]                          # (T, D) f32
    mem = mem_ref[0]                            # (S, D) bf16
    T, D = x.shape
    S = mem.shape[0]

    # ---- additive attention biases from pad vectors (built in-kernel) -------
    tpad = tpad_ref[0]                          # (1, T) f32, 1.0 == pad
    spad = spad_ref[0]                          # (1, S) f32
    rows = lax.broadcasted_iota(jnp.int32, (T, T), 0)
    cols = lax.broadcasted_iota(jnp.int32, (T, T), 1)
    dec_bias = jnp.where(jnp.logical_or(cols > rows, tpad > 0.5),
                         NEG_INF, 0.0).astype(jnp.float32)       # (T, T)
    src_bias = jnp.where(spad > 0.5, NEG_INF, 0.0).astype(jnp.float32)  # (1, S)

    # ---- self-attention block ------------------------------------------------
    input_norm = _layer_norm(x, ln1_g[0], ln1_b[0])              # (T, D) f32
    all_in_ref[0, 0] = input_norm.astype(all_in_ref.dtype)       # saved "all_input"

    qkv = jnp.dot(input_norm.astype(sa_wqkv.dtype), sa_wqkv[0],
                  preferred_element_type=jnp.float32) + sa_bqkv[0]   # (T, 3D)
    q3 = _split_heads(qkv[:, :D], H).astype(ACT_DTYPE)               # Q pre-scaled
    k3 = _split_heads(qkv[:, D:2 * D], H).astype(ACT_DTYPE)
    v3 = _split_heads(qkv[:, 2 * D:], H).astype(ACT_DTYPE)
    ctx = _mha(q3, k3, v3, dec_bias[None])                           # (T, D) f32
    sa_out = jnp.dot(ctx.astype(sa_wo.dtype), sa_wo[0],
                     preferred_element_type=jnp.float32) + sa_bo[0]
    query = sa_out + x

    # ---- context (cross) attention block -------------------------------------
    query_norm = _layer_norm(query, ln2_g[0], ln2_b[0])
    qc = jnp.dot(query_norm.astype(ca_wq.dtype), ca_wq[0],
                 preferred_element_type=jnp.float32) + ca_bq[0]      # (T, D)
    kv = jnp.dot(mem, ca_wkv[0],
                 preferred_element_type=jnp.float32) + ca_bkv[0]     # (S, 2D)
    q3c = _split_heads(qc, H).astype(ACT_DTYPE)
    k3c = _split_heads(kv[:, :D], H).astype(ACT_DTYPE)
    v3c = _split_heads(kv[:, D:], H).astype(ACT_DTYPE)
    ctx_c = _mha(q3c, k3c, v3c, src_bias[None])                      # (T, D) f32
    ca_out = jnp.dot(ctx_c.astype(ca_wo.dtype), ca_wo[0],
                     preferred_element_type=jnp.float32) + ca_bo[0]
    ffn_in = ca_out + query

    # ---- PositionwiseFeedForward: w2(gelu(w1(LN(x)))) + x ---------------------
    ff_norm = _layer_norm(ffn_in, ff_ln_g[0], ff_ln_b[0])
    h1 = _gelu(jnp.dot(ff_norm.astype(w1.dtype), w1[0],
                       preferred_element_type=jnp.float32) + b1[0])
    out = jnp.dot(h1.astype(w2.dtype), w2[0],
                  preferred_element_type=jnp.float32) + b2[0] + ffn_in

    resid_ref[...] = out                        # carry f32 residual to next layer

    # fused decoder-level final LayerNorm, written once per batch element
    @pl.when(l == num_l - 1)
    def _():
        out_ref[0] = _layer_norm(out, fin_g[...], fin_b[...]).astype(out_ref.dtype)


# ------------------------------ kernel wrapper --------------------------------

WEIGHT_KEYS = ("ln1_g", "ln1_b", "sa_wqkv", "sa_bqkv", "sa_wo", "sa_bo",
               "ln2_g", "ln2_b", "ca_wq", "ca_bq", "ca_wkv", "ca_bkv",
               "ca_wo", "ca_bo", "ff_ln_g", "ff_ln_b", "w1", "b1", "w2", "b2")


def _pick_vmem_limit_bytes():
    # ~2/3 of physical VMEM, capped at 64 MiB (v5e/v6e: 128 MiB -> 64 MiB,
    # v7x: 64 MiB -> ~42 MiB) -> leaves headroom for compiler scratch.
    cap = 128 * 1024 * 1024
    try:
        cap = getattr(pltpu.get_tpu_info(), "vmem_capacity_bytes", cap)
    except Exception:
        pass
    return min(int(cap * 2 // 3), 64 * 1024 * 1024)


def run_decoder_stack(x, mem, tgt_pad, src_pad, lw, fin_g, fin_b, n_heads):
    B, T, D = x.shape
    S = mem.shape[1]
    L = lw["w1"].shape[0]

    def layer_spec(arr):                      # weights stacked on leading L axis
        nd = arr.ndim
        return pl.BlockSpec((1,) + arr.shape[1:],
                            lambda b, l, nd=nd: (l,) + (0,) * (nd - 1))

    def const_spec(arr):                      # grid-invariant (tiny) params
        nd = arr.ndim
        return pl.BlockSpec(arr.shape, lambda b, l, nd=nd: (0,) * nd)

    # TODO(synk): for long sequences add a query-tile grid axis (TQ=128-256)
    # with flash-style KV streaming to cap the (H,T,T)/(H,T,S) score tensors
    # (and give the v7x megacore a useful parallel axis when B is tiny).
    grid_spec = pltpu.PrefetchScalarGridSpec(
        num_scalar_prefetch=0,
        grid=(B, L),                          # b-major, l innermost (carried)
        in_specs=[
            pl.BlockSpec((1, T, D), lambda b, l: (b, 0, 0)),   # x (f32)
            pl.BlockSpec((1, S, D), lambda b, l: (b, 0, 0)),   # memory bank (bf16)
            pl.BlockSpec((1, 1, T), lambda b, l: (b, 0, 0)),   # tgt pad vector
            pl.BlockSpec((1, 1, S), lambda b, l: (b, 0, 0)),   # src pad vector
            *[layer_spec(lw[k]) for k in WEIGHT_KEYS],
            const_spec(fin_g), const_spec(fin_b),
        ],
        out_specs=[
            pl.BlockSpec((1, T, D), lambda b, l: (b, 0, 0)),       # final output
            pl.BlockSpec((1, 1, T, D), lambda b, l: (l, b, 0, 0)),  # all_input
        ],
        scratch_shapes=[pltpu.VMEM((T, D), jnp.float32)],          # residual stream
    )

    out, saved = pl.pallas_call(
        functools.partial(decoder_stack_kernel, n_heads),
        out_shape=(jax.ShapeDtypeStruct((B, T, D), jnp.float32),
                   jax.ShapeDtypeStruct((L, B, T, D), jnp.float32)),
        grid_spec=grid_spec,
        compiler_params=pltpu.CompilerParams(
            dimension_semantics=("parallel", "arbitrary"),
            vmem_limit_bytes=_pick_vmem_limit_bytes()),
    )(x, mem, tgt_pad, src_pad, *[lw[k] for k in WEIGHT_KEYS], fin_g, fin_b)
    return out, saved


# ------------------------ weight repacking (done ONCE) ------------------------

def prep_layer_params(p, n_heads, w_dtype=ACT_DTYPE):
    """Repack canonical (in,out) weights into lane-dense fused layouts.
    The 1/sqrt(dh) attention scale is folded into the Q weights/bias."""
    D = p["sa_w"].shape[1]
    dh = D // n_heads
    scale = 1.0 / math.sqrt(dh)

    def attn_parts(w4, b4):
        Wq, Wk, Wv, Wo = w4[0], w4[1], w4[2], w4[3]
        bq, bk, bv, bo = b4[0], b4[1], b4[2], b4[3]
        return Wq * scale, Wk, Wv, Wo, bq * scale, bk, bv, bo

    Wq, Wk, Wv, Wo, bq, bk, bv, bo = attn_parts(p["sa_w"], p["sa_b"])
    sa_wqkv = jnp.concatenate([Wq, Wk, Wv], axis=1).astype(w_dtype)          # (D, 3D)
    sa_bqkv = jnp.concatenate([bq, bk, bv], axis=0).reshape(1, 3 * D).astype(jnp.float32)
    sa_wo = Wo.astype(w_dtype)                                               # (D, D)
    sa_bo = bo.reshape(1, D).astype(jnp.float32)

    Wq, Wk, Wv, Wo, bq, bk, bv, bo = attn_parts(p["ca_w"], p["ca_b"])
    ca_wq = Wq.astype(w_dtype)                                               # (D, D)
    ca_bq = bq.reshape(1, D).astype(jnp.float32)
    ca_wkv = jnp.concatenate([Wk, Wv], axis=1).astype(w_dtype)               # (D, 2D)
    ca_bkv = jnp.concatenate([bk, bv], axis=0).reshape(1, 2 * D).astype(jnp.float32)
    ca_wo = Wo.astype(w_dtype)
    ca_bo = bo.reshape(1, D).astype(jnp.float32)

    return dict(
        ln1_g=p["ln1_g"].astype(jnp.float32), ln1_b=p["ln1_b"].astype(jnp.float32),
        sa_wqkv=sa_wqkv, sa_bqkv=sa_bqkv, sa_wo=sa_wo, sa_bo=sa_bo,
        ln2_g=p["ln2_g"].astype(jnp.float32), ln2_b=p["ln2_b"].astype(jnp.float32),
        ca_wq=ca_wq, ca_bq=ca_bq, ca_wkv=ca_wkv, ca_bkv=ca_bkv,
        ca_wo=ca_wo, ca_bo=ca_bo,
        ff_ln_g=p["ff_ln_g"].astype(jnp.float32), ff_ln_b=p["ff_ln_b"].astype(jnp.float32),
        w1=p["w1"].astype(w_dtype), b1=p["b1"].astype(jnp.float32),
        w2=p["w2"].astype(w_dtype), b2=p["b2"].astype(jnp.float32),
    )


def pack_decoder_params(params, n_heads):
    """Hoisted (call once, reuse every forward): repack + stack layer weights."""
    per_layer = [prep_layer_params(p, n_heads) for p in params["layers"]]
    stacked = {k: jnp.stack([lp[k] for lp in per_layer], axis=0) for k in per_layer[0]}
    return dict(
        embedding=params["embedding"].astype(jnp.float32),
        pe=params["pe"].astype(jnp.float32),
        layers=stacked,
        final_ln_g=params["final_ln_g"].astype(jnp.float32),
        final_ln_b=params["final_ln_b"].astype(jnp.float32),
    )


# ------------------------------ full decoder forward --------------------------

def positional_encoding(max_len, dim):
    position = jnp.arange(max_len, dtype=jnp.float32)[:, None]
    div_term = jnp.exp(jnp.arange(0, dim, 2, dtype=jnp.float32)
                       * -(math.log(10000.0) / dim))
    pe = jnp.zeros((max_len, dim), jnp.float32)
    pe = pe.at[:, 0::2].set(jnp.sin(position * div_term))
    pe = pe.at[:, 1::2].set(jnp.cos(position * div_term))
    return pe


def transformer_decoder_forward(tgt, src, memory_bank, packed, n_heads,
                                padding_idx=0):
    """Equivalent of TransformerDecoder.forward(tgt, memory_bank, state) with
    state.src = src, no previous_input, no cache, step=None."""
    B, T = tgt.shape
    S = src.shape[1]
    D = packed["embedding"].shape[1]

    # embeddings + positional encoding (dropout == identity), f32 residual stream
    emb = packed["embedding"][tgt]                                     # (B, T, D)
    output = (emb * math.sqrt(D) + packed["pe"][None, :T, :]).astype(jnp.float32)
    mem = memory_bank.astype(ACT_DTYPE)

    # only pad vectors are shipped; causal mask is built inside the kernel
    tgt_pad = (tgt == padding_idx).astype(jnp.float32).reshape(B, 1, T)
    src_pad = (src == padding_idx).astype(jnp.float32).reshape(B, 1, S)

    out, saved_inputs = run_decoder_stack(
        output, mem, tgt_pad, src_pad, packed["layers"],
        packed["final_ln_g"], packed["final_ln_b"], n_heads)

    # final LayerNorm is fused into the last layer's grid step;
    # state.update_state(tgt, saved_inputs) -> just return saved_inputs here.
    return out, saved_inputs


# ------------------------------ deterministic init ----------------------------

def init_params(key, vocab, d_model, d_ff, num_layers, max_len=64,
                padding_idx=0):
    keys = jax.random.split(key, 1 + num_layers)
    emb = 0.02 * jax.random.normal(keys[0], (vocab, d_model), jnp.float32)
    emb = emb.at[padding_idx].set(0.0)     # nn.Embedding padding_idx row is zero
    layers = []
    for i in range(num_layers):
        ks = jax.random.split(keys[1 + i], 8)
        layers.append(dict(
            ln1_g=jnp.ones((1, d_model), jnp.float32),
            ln1_b=jnp.zeros((1, d_model), jnp.float32),
            sa_w=0.02 * jax.random.normal(ks[0], (4, d_model, d_model), jnp.float32),
            sa_b=0.02 * jax.random.normal(ks[1], (4, d_model), jnp.float32),
            ln2_g=jnp.ones((1, d_model), jnp.float32),
            ln2_b=jnp.zeros((1, d_model), jnp.float32),
            ca_w=0.02 * jax.random.normal(ks[2], (4, d_model, d_model), jnp.float32),
            ca_b=0.02 * jax.random.normal(ks[3], (4, d_model), jnp.float32),
            ff_ln_g=jnp.ones((1, d_model), jnp.float32),
            ff_ln_b=jnp.zeros((1, d_model), jnp.float32),
            w1=0.02 * jax.random.normal(ks[4], (d_model, d_ff), jnp.float32),
            b1=0.02 * jax.random.normal(ks[5], (1, d_ff), jnp.float32),
            w2=0.02 * jax.random.normal(ks[6], (d_ff, d_model), jnp.float32),
            b2=0.02 * jax.random.normal(ks[7], (1, d_model), jnp.float32),
        ))
    return dict(
        embedding=emb,
        pe=positional_encoding(max_len, d_model),
        layers=layers,
        final_ln_g=jnp.ones((1, d_model), jnp.float32),
        final_ln_b=jnp.zeros((1, d_model), jnp.float32),
    )


# ----------------------------------- main -------------------------------------

if __name__ == "__main__":
    # small shapes: batch=2, tgt_len=8, src_len=16, d_model=32, heads=4,
    # d_ff=64, num_layers=2, vocab=50
    B, T, S, D, H, F, L, V = 2, 8, 16, 32, 4, 64, 2, 50

    key = jax.random.PRNGKey(0)
    k_params, k_tgt, k_src, k_mem = jax.random.split(key, 4)

    params = init_params(k_params, V, D, F, L, max_len=64, padding_idx=0)
    tgt = jax.random.randint(k_tgt, (B, T), 0, V, dtype=jnp.int32)
    src = jax.random.randint(k_src, (B, S), 0, V, dtype=jnp.int32)
    memory_bank = jax.random.normal(k_mem, (B, S, D), jnp.float32)

    # weight repacking hoisted out of the forward pass (done once, reused)
    packed = pack_decoder_params(params, H)

    # TODO(synk): incremental-decoding cache / previous_input path (step != None)
    # is not implemented; this covers the training/eval forward (cache=None).
    out, saved_inputs = transformer_decoder_forward(tgt, src, memory_bank,
                                                    packed, H, padding_idx=0)
    jax.block_until_ready((out, saved_inputs))
    assert out.shape == (B, T, D) and saved_inputs.shape == (L, B, T, D)
    assert bool(jnp.isfinite(out).all()) and bool(jnp.isfinite(saved_inputs).all())
    print("KERNEL_OK")
</pallas_src>

<mosaic_0001>
module attributes {stable_mosaic.version = 11 : i64} {
  func.func @decoder_stack_kernel(%arg0: i32, %arg1: i32, %arg2: memref<1x8x32xf32, #tpu.memory_space<vmem>>, %arg3: memref<1x16x32xbf16, #tpu.memory_space<vmem>>, %arg4: memref<1x1x8xf32, #tpu.memory_space<vmem>>, %arg5: memref<1x1x16xf32, #tpu.memory_space<vmem>>, %arg6: memref<1x1x32xf32, #tpu.memory_space<vmem>>, %arg7: memref<1x1x32xf32, #tpu.memory_space<vmem>>, %arg8: memref<1x32x96xbf16, #tpu.memory_space<vmem>>, %arg9: memref<1x1x96xf32, #tpu.memory_space<vmem>>, %arg10: memref<1x32x32xbf16, #tpu.memory_space<vmem>>, %arg11: memref<1x1x32xf32, #tpu.memory_space<vmem>>, %arg12: memref<1x1x32xf32, #tpu.memory_space<vmem>>, %arg13: memref<1x1x32xf32, #tpu.memory_space<vmem>>, %arg14: memref<1x32x32xbf16, #tpu.memory_space<vmem>>, %arg15: memref<1x1x32xf32, #tpu.memory_space<vmem>>, %arg16: memref<1x32x64xbf16, #tpu.memory_space<vmem>>, %arg17: memref<1x1x64xf32, #tpu.memory_space<vmem>>, %arg18: memref<1x32x32xbf16, #tpu.memory_space<vmem>>, %arg19: memref<1x1x32xf32, #tpu.memory_space<vmem>>, %arg20: memref<1x1x32xf32, #tpu.memory_space<vmem>>, %arg21: memref<1x1x32xf32, #tpu.memory_space<vmem>>, %arg22: memref<1x32x64xbf16, #tpu.memory_space<vmem>>, %arg23: memref<1x1x64xf32, #tpu.memory_space<vmem>>, %arg24: memref<1x64x32xbf16, #tpu.memory_space<vmem>>, %arg25: memref<1x1x32xf32, #tpu.memory_space<vmem>>, %arg26: memref<1x32xf32, #tpu.memory_space<vmem>>, %arg27: memref<1x32xf32, #tpu.memory_space<vmem>>, %arg28: memref<1x8x32xf32, #tpu.memory_space<vmem>>, %arg29: memref<1x1x8x32xf32, #tpu.memory_space<vmem>>, %arg30: memref<8x32xf32, #tpu.memory_space<vmem>>) attributes {dimension_semantics = [#tpu.dimension_semantics<parallel>, #tpu.dimension_semantics<arbitrary>], iteration_bounds = array<i64: 2, 2>, scalar_prefetch = 0 : i64, scratch_operands = 1 : i64, tpu.core_type = #tpu.core_type<tc>, window_params = [{transform_indices = @transform_0, window_bounds = array<i64: 1, 8, 32>}, {transform_indices = @transform_1, window_bounds = array<i64: 1, 16, 32>}, {transform_indices = @transform_2, window_bounds = array<i64: 1, 1, 8>}, {transform_indices = @transform_3, window_bounds = array<i64: 1, 1, 16>}, {transform_indices = @transform_4, window_bounds = array<i64: 1, 1, 32>}, {transform_indices = @transform_5, window_bounds = array<i64: 1, 1, 32>}, {transform_indices = @transform_6, window_bounds = array<i64: 1, 32, 96>}, {transform_indices = @transform_7, window_bounds = array<i64: 1, 1, 96>}, {transform_indices = @transform_8, window_bounds = array<i64: 1, 32, 32>}, {transform_indices = @transform_9, window_bounds = array<i64: 1, 1, 32>}, {transform_indices = @transform_10, window_bounds = array<i64: 1, 1, 32>}, {transform_indices = @transform_11, window_bounds = array<i64: 1, 1, 32>}, {transform_indices = @transform_12, window_bounds = array<i64: 1, 32, 32>}, {transform_indices = @transform_13, window_bounds = array<i64: 1, 1, 32>}, {transform_indices = @transform_14, window_bounds = array<i64: 1, 32, 64>}, {transform_indices = @transform_15, window_bounds = array<i64: 1, 1, 64>}, {transform_indices = @transform_16, window_bounds = array<i64: 1, 32, 32>}, {transform_indices = @transform_17, window_bounds = array<i64: 1, 1, 32>}, {transform_indices = @transform_18, window_bounds = array<i64: 1, 1, 32>}, {transform_indices = @transform_19, window_bounds = array<i64: 1, 1, 32>}, {transform_indices = @transform_20, window_bounds = array<i64: 1, 32, 64>}, {transform_indices = @transform_21, window_bounds = array<i64: 1, 1, 64>}, {transform_indices = @transform_22, window_bounds = array<i64: 1, 64, 32>}, {transform_indices = @transform_23, window_bounds = array<i64: 1, 1, 32>}, {pipeline_mode = #tpu.pipeline_mode<synchronous>, transform_indices = @transform_24, window_bounds = array<i64: 1, 32>}, {pipeline_mode = #tpu.pipeline_mode<synchronous>, transform_indices = @transform_25, window_bounds = array<i64: 1, 32>}, {transform_indices = @transform_26, window_bounds = array<i64: 1, 8, 32>}, {transform_indices = @transform_27, window_bounds = array<i64: 1, 1, 8, 32>}]} {
    %c0_i32 = arith.constant 0 : i32
    %0 = arith.cmpi eq, %arg1, %c0_i32 : i32
    %1 = arith.extui %0 : i1 to i32
    %c0_i32_0 = arith.constant 0 : i32
    %2 = arith.cmpi ne, %1, %c0_i32_0 : i32
    scf.if %2 {
      %c0_117 = arith.constant 0 : index
      %c0_118 = arith.constant 0 : index
      %c0_119 = arith.constant 0 : index
      %296 = vector.load %arg2[%c0_117, %c0_118, %c0_119] : memref<1x8x32xf32, #tpu.memory_space<vmem>>, vector<1x8x32xf32>
      %297 = vector.shape_cast %296 : vector<1x8x32xf32> to vector<8x32xf32>
      %c0_120 = arith.constant 0 : index
      %c0_121 = arith.constant 0 : index
      %298 = vector.load %arg30[%c0_120, %c0_121] : memref<8x32xf32, #tpu.memory_space<vmem>>, vector<8x32xf32>
      tpu.vector_store %arg30[%c0_120, %c0_121], %297 {strides = array<i32>} : memref<8x32xf32, #tpu.memory_space<vmem>>, vector<8x32xf32>,
    } else {
    }
    %c0 = arith.constant 0 : index
    %c0_1 = arith.constant 0 : index
    %3 = vector.load %arg30[%c0, %c0_1] : memref<8x32xf32, #tpu.memory_space<vmem>>, vector<8x32xf32>
    %c0_2 = arith.constant 0 : index
    %c0_3 = arith.constant 0 : index
    %c0_4 = arith.constant 0 : index
    %4 = vector.load %arg3[%c0_2, %c0_3, %c0_4] : memref<1x16x32xbf16, #tpu.memory_space<vmem>>, vector<1x16x32xbf16>
    %5 = vector.shape_cast %4 : vector<1x16x32xbf16> to vector<16x32xbf16>
    %c0_5 = arith.constant 0 : index
    %c0_6 = arith.constant 0 : index
    %c0_7 = arith.constant 0 : index
    %6 = vector.load %arg4[%c0_5, %c0_6, %c0_7] : memref<1x1x8xf32, #tpu.memory_space<vmem>>, vector<1x1x8xf32>
    %7 = vector.shape_cast %6 : vector<1x1x8xf32> to vector<1x8xf32>
    %c0_8 = arith.constant 0 : index
    %c0_9 = arith.constant 0 : index
    %c0_10 = arith.constant 0 : index
    %8 = vector.load %arg5[%c0_8, %c0_9, %c0_10] : memref<1x1x16xf32, #tpu.memory_space<vmem>>, vector<1x1x16xf32>
    %9 = vector.shape_cast %8 : vector<1x1x16xf32> to vector<1x16xf32>
    %10 = tpu.iota {dimensions = array<i32: 0>} : vector<8x8xi32>
    %11 = tpu.iota {dimensions = array<i32: 1>} : vector<8x8xi32>
    %12 = arith.cmpi sgt, %11, %10 : vector<8x8xi32>
    %cst = arith.constant 5.000000e-01 : f32
    %13 = vector.broadcast %cst : f32 to vector<1x8xf32>
    %14 = arith.cmpf ogt, %7, %13 : vector<1x8xf32>
    %15 = vector.broadcast %14 : vector<1x8xi1> to vector<8x8xi1>
    %16 = arith.ori %12, %15 : vector<8x8xi1>
    %cst_11 = arith.constant -9.99999984E+17 : f32
    %cst_12 = arith.constant 0.000000e+00 : f32
    %17 = vector.broadcast %cst_11 : f32 to vector<8x8xf32>
    %18 = vector.broadcast %cst_12 : f32 to vector<8x8xf32>
    %19 = arith.select %16, %17, %18 : vector<8x8xi1>, vector<8x8xf32>
    %cst_13 = arith.constant 5.000000e-01 : f32
    %20 = vector.broadcast %cst_13 : f32 to vector<1x16xf32>
    %21 = arith.cmpf ogt, %9, %20 : vector<1x16xf32>
    %cst_14 = arith.constant -9.99999984E+17 : f32
    %cst_15 = arith.constant 0.000000e+00 : f32
    %22 = vector.broadcast %cst_14 : f32 to vector<1x16xf32>
    %23 = vector.broadcast %cst_15 : f32 to vector<1x16xf32>
    %24 = arith.select %21, %22, %23 : vector<1x16xi1>, vector<1x16xf32>
    %c0_16 = arith.constant 0 : index
    %c0_17 = arith.constant 0 : index
    %c0_18 = arith.constant 0 : index
    %25 = vector.load %arg6[%c0_16, %c0_17, %c0_18] : memref<1x1x32xf32, #tpu.memory_space<vmem>>, vector<1x1x32xf32>
    %26 = vector.shape_cast %25 : vector<1x1x32xf32> to vector<1x32xf32>
    %c0_19 = arith.constant 0 : index
    %c0_20 = arith.constant 0 : index
    %c0_21 = arith.constant 0 : index
    %27 = vector.load %arg7[%c0_19, %c0_20, %c0_21] : memref<1x1x32xf32, #tpu.memory_space<vmem>>, vector<1x1x32xf32>
    %28 = vector.shape_cast %27 : vector<1x1x32xf32> to vector<1x32xf32>
    %cst_22 = arith.constant dense<0.000000e+00> : vector<8xf32>
    %29 = vector.multi_reduction <add>, %3, %cst_22 [1] : vector<8x32xf32> to vector<8xf32>
    %30 = vector.shape_cast %29 : vector<8xf32> to vector<8x1xf32>
    %cst_23 = arith.constant 3.200000e+01 : f32
    %31 = vector.broadcast %cst_23 : f32 to vector<8x1xf32>
    %32 = arith.divf %30, %31 : vector<8x1xf32>
    %33 = vector.broadcast %32 : vector<8x1xf32> to vector<8x32xf32>
    %34 = arith.subf %3, %33 : vector<8x32xf32>
    %35 = arith.mulf %34, %34 : vector<8x32xf32>
    %cst_24 = arith.constant dense<0.000000e+00> : vector<8xf32>
    %36 = vector.multi_reduction <add>, %35, %cst_24 [1] : vector<8x32xf32> to vector<8xf32>
    %37 = vector.shape_cast %36 : vector<8xf32> to vector<8x1xf32>
    %cst_25 = arith.constant 3.200000e+01 : f32
    %38 = vector.broadcast %cst_25 : f32 to vector<8x1xf32>
    %39 = arith.divf %37, %38 : vector<8x1xf32>
    %40 = vector.broadcast %32 : vector<8x1xf32> to vector<8x32xf32>
    %41 = arith.subf %3, %40 : vector<8x32xf32>
    %cst_26 = arith.constant 9.99999997E-7 : f32
    %42 = vector.broadcast %cst_26 : f32 to vector<8x1xf32>
    %43 = arith.addf %39, %42 : vector<8x1xf32>
    %44 = math.rsqrt %43 : vector<8x1xf32>
    %45 = vector.broadcast %44 : vector<8x1xf32> to vector<8x32xf32>
    %46 = arith.mulf %41, %45 : vector<8x32xf32>
    %47 = vector.broadcast %26 : vector<1x32xf32> to vector<8x32xf32>
    %48 = arith.mulf %46, %47 : vector<8x32xf32>
    %49 = vector.broadcast %28 : vector<1x32xf32> to vector<8x32xf32>
    %50 = arith.addf %48, %49 : vector<8x32xf32>
    %c0_27 = arith.constant 0 : index
    %c0_28 = arith.constant 0 : index
    %c0_29 = arith.constant 0 : index
    %c0_30 = arith.constant 0 : index
    %51 = vector.load %arg29[%c0_27, %c0_28, %c0_29, %c0_30] : memref<1x1x8x32xf32, #tpu.memory_space<vmem>>, vector<1x1x8x32xf32>
    %52 = vector.shape_cast %51 : vector<1x1x8x32xf32> to vector<8x32xf32>
    %53 = vector.shape_cast %50 : vector<8x32xf32> to vector<1x1x8x32xf32>
    tpu.vector_store %arg29[%c0_27, %c0_28, %c0_29, %c0_30], %53 {strides = array<i32>} : memref<1x1x8x32xf32, #tpu.memory_space<vmem>>, vector<1x1x8x32xf32>,
    %54 = arith.truncf %50 : vector<8x32xf32> to vector<8x32xbf16>
    %c0_31 = arith.constant 0 : index
    %c0_32 = arith.constant 0 : index
    %c0_33 = arith.constant 0 : index
    %55 = vector.load %arg8[%c0_31, %c0_32, %c0_33] : memref<1x32x96xbf16, #tpu.memory_space<vmem>>, vector<1x32x96xbf16>
    %56 = vector.shape_cast %55 : vector<1x32x96xbf16> to vector<32x96xbf16>
    %cst_34 = arith.constant dense<0.000000e+00> : vector<8x96xf32>
    %57 = tpu.matmul %54, %56, %cst_34 {dimension_numbers = #tpu.dot_dimension_numbers<[1], [0], [0], [1], [0, 0, 1, 1], [], []>} : vector<8x32xbf16>, vector<32x96xbf16>, vector<8x96xf32> -> vector<8x96xf32>
    %c0_35 = arith.constant 0 : index
    %c0_36 = arith.constant 0 : index
    %c0_37 = arith.constant 0 : index
    %58 = vector.load %arg9[%c0_35, %c0_36, %c0_37] : memref<1x1x96xf32, #tpu.memory_space<vmem>>, vector<1x1x96xf32>
    %59 = vector.shape_cast %58 : vector<1x1x96xf32> to vector<1x96xf32>
    %60 = vector.broadcast %59 : vector<1x96xf32> to vector<8x96xf32>
    %61 = arith.addf %57, %60 : vector<8x96xf32>
    %62 = vector.extract_strided_slice %61 {offsets = [0, 0], sizes = [8, 32], strides = [1, 1]} : vector<8x96xf32> to vector<8x32xf32>
    %63 = vector.extract_strided_slice %62 {offsets = [0, 0], sizes = [8, 8], strides = [1, 1]} : vector<8x32xf32> to vector<8x8xf32>
    %64 = vector.extract_strided_slice %62 {offsets = [0, 8], sizes = [8, 8], strides = [1, 1]} : vector<8x32xf32> to vector<8x8xf32>
    %65 = vector.extract_strided_slice %62 {offsets = [0, 16], sizes = [8, 8], strides = [1, 1]} : vector<8x32xf32> to vector<8x8xf32>
    %66 = vector.extract_strided_slice %62 {offsets = [0, 24], sizes = [8, 8], strides = [1, 1]} : vector<8x32xf32> to vector<8x8xf32>
    %67 = vector.shape_cast %63 : vector<8x8xf32> to vector<1x8x8xf32>
    %68 = vector.shape_cast %64 : vector<8x8xf32> to vector<1x8x8xf32>
    %69 = vector.shape_cast %65 : vector<8x8xf32> to vector<1x8x8xf32>
    %70 = vector.shape_cast %66 : vector<8x8xf32> to vector<1x8x8xf32>
    %71 = tpu.concatenate %67, %68, %69, %70 in 0 : vector<1x8x8xf32>, vector<1x8x8xf32>, vector<1x8x8xf32>, vector<1x8x8xf32> -> vector<4x8x8xf32>
    %72 = arith.truncf %71 : vector<4x8x8xf32> to vector<4x8x8xbf16>
    %73 = vector.extract_strided_slice %61 {offsets = [0, 32], sizes = [8, 32], strides = [1, 1]} : vector<8x96xf32> to vector<8x32xf32>
    %74 = vector.extract_strided_slice %73 {offsets = [0, 0], sizes = [8, 8], strides = [1, 1]} : vector<8x32xf32> to vector<8x8xf32>
    %75 = vector.extract_strided_slice %73 {offsets = [0, 8], sizes = [8, 8], strides = [1, 1]} : vector<8x32xf32> to vector<8x8xf32>
    %76 = vector.extract_strided_slice %73 {offsets = [0, 16], sizes = [8, 8], strides = [1, 1]} : vector<8x32xf32> to vector<8x8xf32>
    %77 = vector.extract_strided_slice %73 {offsets = [0, 24], sizes = [8, 8], strides = [1, 1]} : vector<8x32xf32> to vector<8x8xf32>
    %78 = vector.shape_cast %74 : vector<8x8xf32> to vector<1x8x8xf32>
    %79 = vector.shape_cast %75 : vector<8x8xf32> to vector<1x8x8xf32>
    %80 = vector.shape_cast %76 : vector<8x8xf32> to vector<1x8x8xf32>
    %81 = vector.shape_cast %77 : vector<8x8xf32> to vector<1x8x8xf32>
    %82 = tpu.concatenate %78, %79, %80, %81 in 0 : vector<1x8x8xf32>, vector<1x8x8xf32>, vector<1x8x8xf32>, vector<1x8x8xf32> -> vector<4x8x8xf32>
    %83 = arith.truncf %82 : vector<4x8x8xf32> to vector<4x8x8xbf16>
    %84 = vector.extract_strided_slice %61 {offsets = [0, 64], sizes = [8, 32], strides = [1, 1]} : vector<8x96xf32> to vector<8x32xf32>
    %85 = vector.extract_strided_slice %84 {offsets = [0, 0], sizes = [8, 8], strides = [1, 1]} : vector<8x32xf32> to vector<8x8xf32>
    %86 = vector.extract_strided_slice %84 {offsets = [0, 8], sizes = [8, 8], strides = [1, 1]} : vector<8x32xf32> to vector<8x8xf32>
    %87 = vector.extract_strided_slice %84 {offsets = [0, 16], sizes = [8, 8], strides = [1, 1]} : vector<8x32xf32> to vector<8x8xf32>
    %88 = vector.extract_strided_slice %84 {offsets = [0, 24], sizes = [8, 8], strides = [1, 1]} : vector<8x32xf32> to vector<8x8xf32>
    %89 = vector.shape_cast %85 : vector<8x8xf32> to vector<1x8x8xf32>
    %90 = vector.shape_cast %86 : vector<8x8xf32> to vector<1x8x8xf32>
    %91 = vector.shape_cast %87 : vector<8x8xf32> to vector<1x8x8xf32>
    %92 = vector.shape_cast %88 : vector<8x8xf32> to vector<1x8x8xf32>
    %93 = tpu.concatenate %89, %90, %91, %92 in 0 : vector<1x8x8xf32>, vector<1x8x8xf32>, vector<1x8x8xf32>, vector<1x8x8xf32> -> vector<4x8x8xf32>
    %94 = arith.truncf %93 : vector<4x8x8xf32> to vector<4x8x8xbf16>
    %95 = vector.shape_cast %19 : vector<8x8xf32> to vector<1x8x8xf32>
    "tpu.trace_start"() <{level = 10 : i32, message = "hqd,hkd->hqk"}> : () -> ()
    %cst_38 = arith.constant dense<0.000000e+00> : vector<4x8x8xf32>
    %96 = tpu.matmul %72, %83, %cst_38 {dimension_numbers = #tpu.dot_dimension_numbers<[2], [2], [1], [1], [0, 0, 0, 1, 1, 1], [0], [0]>} : vector<4x8x8xbf16>, vector<4x8x8xbf16>, vector<4x8x8xf32> -> vector<4x8x8xf32>
    "tpu.trace_stop"() : () -> ()
    %97 = vector.broadcast %95 : vector<1x8x8xf32> to vector<4x8x8xf32>
    %98 = arith.addf %96, %97 : vector<4x8x8xf32>
    %cst_39 = arith.constant dense<0xFF800000> : vector<4x8xf32>
    %99 = vector.multi_reduction <maximumf>, %98, %cst_39 [2] : vector<4x8x8xf32> to vector<4x8xf32>
    %100 = vector.shape_cast %99 : vector<4x8xf32> to vector<4x8x1xf32>
    %101 = vector.broadcast %100 : vector<4x8x1xf32> to vector<4x8x8xf32>
    %102 = arith.subf %98, %101 : vector<4x8x8xf32>
    %103 = math.exp %102 : vector<4x8x8xf32>
    %cst_40 = arith.constant dense<0.000000e+00> : vector<4x8xf32>
    %104 = vector.multi_reduction <add>, %103, %cst_40 [2] : vector<4x8x8xf32> to vector<4x8xf32>
    %105 = vector.shape_cast %104 : vector<4x8xf32> to vector<4x8x1xf32>
    %106 = tpu.reciprocal %105 {approx = true} : vector<4x8x1xf32> -> vector<4x8x1xf32>
    %107 = vector.broadcast %106 : vector<4x8x1xf32> to vector<4x8x8xf32>
    %108 = arith.mulf %103, %107 : vector<4x8x8xf32>
    %109 = arith.truncf %108 : vector<4x8x8xf32> to vector<4x8x8xbf16>
    "tpu.trace_start"() <{level = 10 : i32, message = "hqk,hkd->hqd"}> : () -> ()
    %cst_41 = arith.constant dense<0.000000e+00> : vector<4x8x8xf32>
    %110 = tpu.matmul %109, %94, %cst_41 {dimension_numbers = #tpu.dot_dimension_numbers<[2], [1], [1], [2], [0, 0, 0, 1, 1, 2], [0], [0]>} : vector<4x8x8xbf16>, vector<4x8x8xbf16>, vector<4x8x8xf32> -> vector<4x8x8xf32>
    "tpu.trace_stop"() : () -> ()
    %111 = vector.extract_strided_slice %110 {offsets = [0, 0, 0], sizes = [1, 8, 8], strides = [1, 1, 1]} : vector<4x8x8xf32> to vector<1x8x8xf32>
    %112 = vector.shape_cast %111 : vector<1x8x8xf32> to vector<8x8xf32>
    %113 = vector.extract_strided_slice %110 {offsets = [1, 0, 0], sizes = [1, 8, 8], strides = [1, 1, 1]} : vector<4x8x8xf32> to vector<1x8x8xf32>
    %114 = vector.shape_cast %113 : vector<1x8x8xf32> to vector<8x8xf32>
    %115 = vector.extract_strided_slice %110 {offsets = [2, 0, 0], sizes = [1, 8, 8], strides = [1, 1, 1]} : vector<4x8x8xf32> to vector<1x8x8xf32>
    %116 = vector.shape_cast %115 : vector<1x8x8xf32> to vector<8x8xf32>
    %117 = vector.extract_strided_slice %110 {offsets = [3, 0, 0], sizes = [1, 8, 8], strides = [1, 1, 1]} : vector<4x8x8xf32> to vector<1x8x8xf32>
    %118 = vector.shape_cast %117 : vector<1x8x8xf32> to vector<8x8xf32>
    %119 = tpu.concatenate %112, %114, %116, %118 in 1 : vector<8x8xf32>, vector<8x8xf32>, vector<8x8xf32>, vector<8x8xf32> -> vector<8x32xf32>
    %120 = arith.truncf %119 : vector<8x32xf32> to vector<8x32xbf16>
    %c0_42 = arith.constant 0 : index
    %c0_43 = arith.constant 0 : index
    %c0_44 = arith.constant 0 : index
    %121 = vector.load %arg10[%c0_42, %c0_43, %c0_44] : memref<1x32x32xbf16, #tpu.memory_space<vmem>>, vector<1x32x32xbf16>
    %122 = vector.shape_cast %121 : vector<1x32x32xbf16> to vector<32x32xbf16>
    %cst_45 = arith.constant dense<0.000000e+00> : vector<8x32xf32>
    %123 = tpu.matmul %120, %122, %cst_45 {dimension_numbers = #tpu.dot_dimension_numbers<[1], [0], [0], [1], [0, 0, 1, 1], [], []>} : vector<8x32xbf16>, vector<32x32xbf16>, vector<8x32xf32> -> vector<8x32xf32>
    %c0_46 = arith.constant 0 : index
    %c0_47 = arith.constant 0 : index
    %c0_48 = arith.constant 0 : index
    %124 = vector.load %arg11[%c0_46, %c0_47, %c0_48] : memref<1x1x32xf32, #tpu.memory_space<vmem>>, vector<1x1x32xf32>
    %125 = vector.shape_cast %124 : vector<1x1x32xf32> to vector<1x32xf32>
    %126 = vector.broadcast %125 : vector<1x32xf32> to vector<8x32xf32>
    %127 = arith.addf %123, %126 : vector<8x32xf32>
    %128 = arith.addf %127, %3 : vector<8x32xf32>
    %c0_49 = arith.constant 0 : index
    %c0_50 = arith.constant 0 : index
    %c0_51 = arith.constant 0 : index
    %129 = vector.load %arg12[%c0_49, %c0_50, %c0_51] : memref<1x1x32xf32, #tpu.memory_space<vmem>>, vector<1x1x32xf32>
    %130 = vector.shape_cast %129 : vector<1x1x32xf32> to vector<1x32xf32>
    %c0_52 = arith.constant 0 : index
    %c0_53 = arith.constant 0 : index
    %c0_54 = arith.constant 0 : index
    %131 = vector.load %arg13[%c0_52, %c0_53, %c0_54] : memref<1x1x32xf32, #tpu.memory_space<vmem>>, vector<1x1x32xf32>
    %132 = vector.shape_cast %131 : vector<1x1x32xf32> to vector<1x32xf32>
    %cst_55 = arith.constant dense<0.000000e+00> : vector<8xf32>
    %133 = vector.multi_reduction <add>, %128, %cst_55 [1] : vector<8x32xf32> to vector<8xf32>
    %134 = vector.shape_cast %133 : vector<8xf32> to vector<8x1xf32>
    %cst_56 = arith.constant 3.200000e+01 : f32
    %135 = vector.broadcast %cst_56 : f32 to vector<8x1xf32>
    %136 = arith.divf %134, %135 : vector<8x1xf32>
    %137 = vector.broadcast %136 : vector<8x1xf32> to vector<8x32xf32>
    %138 = arith.subf %128, %137 : vector<8x32xf32>
    %139 = arith.mulf %138, %138 : vector<8x32xf32>
    %cst_57 = arith.constant dense<0.000000e+00> : vector<8xf32>
    %140 = vector.multi_reduction <add>, %139, %cst_57 [1] : vector<8x32xf32> to vector<8xf32>
    %141 = vector.shape_cast %140 : vector<8xf32> to vector<8x1xf32>
    %cst_58 = arith.constant 3.200000e+01 : f32
    %142 = vector.broadcast %cst_58 : f32 to vector<8x1xf32>
    %143 = arith.divf %141, %142 : vector<8x1xf32>
    %144 = vector.broadcast %136 : vector<8x1xf32> to vector<8x32xf32>
    %145 = arith.subf %128, %144 : vector<8x32xf32>
    %cst_59 = arith.constant 9.99999997E-7 : f32
    %146 = vector.broadcast %cst_59 : f32 to vector<8x1xf32>
    %147 = arith.addf %143, %146 : vector<8x1xf32>
    %148 = math.rsqrt %147 : vector<8x1xf32>
    %149 = vector.broadcast %148 : vector<8x1xf32> to vector<8x32xf32>
    %150 = arith.mulf %145, %149 : vector<8x32xf32>
    %151 = vector.broadcast %130 : vector<1x32xf32> to vector<8x32xf32>
    %152 = arith.mulf %150, %151 : vector<8x32xf32>
    %153 = vector.broadcast %132 : vector<1x32xf32> to vector<8x32xf32>
    %154 = arith.addf %152, %153 : vector<8x32xf32>
    %155 = arith.truncf %154 : vector<8x32xf32> to vector<8x32xbf16>
    %c0_60 = arith.constant 0 : index
    %c0_61 = arith.constant 0 : index
    %c0_62 = arith.constant 0 : index
    %156 = vector.load %arg14[%c0_60, %c0_61, %c0_62] : memref<1x32x32xbf16, #tpu.memory_space<vmem>>, vector<1x32x32xbf16>
    %157 = vector.shape_cast %156 : vector<1x32x32xbf16> to vector<32x32xbf16>
    %cst_63 = arith.constant dense<0.000000e+00> : vector<8x32xf32>
    %158 = tpu.matmul %155, %157, %cst_63 {dimension_numbers = #tpu.dot_dimension_numbers<[1], [0], [0], [1], [0, 0, 1, 1], [], []>} : vector<8x32xbf16>, vector<32x32xbf16>, vector<8x32xf32> -> vector<8x32xf32>
    %c0_64 = arith.constant 0 : index
    %c0_65 = arith.constant 0 : index
    %c0_66 = arith.constant 0 : index
    %159 = vector.load %arg15[%c0_64, %c0_65, %c0_66] : memref<1x1x32xf32, #tpu.memory_space<vmem>>, vector<1x1x32xf32>
    %160 = vector.shape_cast %159 : vector<1x1x32xf32> to vector<1x32xf32>
    %161 = vector.broadcast %160 : vector<1x32xf32> to vector<8x32xf32>
    %162 = arith.addf %158, %161 : vector<8x32xf32>
    %c0_67 = arith.constant 0 : index
    %c0_68 = arith.constant 0 : index
    %c0_69 = arith.constant 0 : index
    %163 = vector.load %arg16[%c0_67, %c0_68, %c0_69] : memref<1x32x64xbf16, #tpu.memory_space<vmem>>, vector<1x32x64xbf16>
    %164 = vector.shape_cast %163 : vector<1x32x64xbf16> to vector<32x64xbf16>
    %cst_70 = arith.constant dense<0.000000e+00> : vector<16x64xf32>
    %165 = tpu.matmul %5, %164, %cst_70 {dimension_numbers = #tpu.dot_dimension_numbers<[1], [0], [0], [1], [0, 0, 1, 1], [], []>} : vector<16x32xbf16>, vector<32x64xbf16>, vector<16x64xf32> -> vector<16x64xf32>
    %c0_71 = arith.constant 0 : index
    %c0_72 = arith.constant 0 : index
    %c0_73 = arith.constant 0 : index
    %166 = vector.load %arg17[%c0_71, %c0_72, %c0_73] : memref<1x1x64xf32, #tpu.memory_space<vmem>>, vector<1x1x64xf32>
    %167 = vector.shape_cast %166 : vector<1x1x64xf32> to vector<1x64xf32>
    %168 = vector.broadcast %167 : vector<1x64xf32> to vector<16x64xf32>
    %169 = arith.addf %165, %168 : vector<16x64xf32>
    %170 = vector.extract_strided_slice %162 {offsets = [0, 0], sizes = [8, 8], strides = [1, 1]} : vector<8x32xf32> to vector<8x8xf32>
    %171 = vector.extract_strided_slice %162 {offsets = [0, 8], sizes = [8, 8], strides = [1, 1]} : vector<8x32xf32> to vector<8x8xf32>
    %172 = vector.extract_strided_slice %162 {offsets = [0, 16], sizes = [8, 8], strides = [1, 1]} : vector<8x32xf32> to vector<8x8xf32>
    %173 = vector.extract_strided_slice %162 {offsets = [0, 24], sizes = [8, 8], strides = [1, 1]} : vector<8x32xf32> to vector<8x8xf32>
    %174 = vector.shape_cast %170 : vector<8x8xf32> to vector<1x8x8xf32>
    %175 = vector.shape_cast %171 : vector<8x8xf32> to vector<1x8x8xf32>
    %176 = vector.shape_cast %172 : vector<8x8xf32> to vector<1x8x8xf32>
    %177 = vector.shape_cast %173 : vector<8x8xf32> to vector<1x8x8xf32>
    %178 = tpu.concatenate %174, %175, %176, %177 in 0 : vector<1x8x8xf32>, vector<1x8x8xf32>, vector<1x8x8xf32>, vector<1x8x8xf32> -> vector<4x8x8xf32>
    %179 = arith.truncf %178 : vector<4x8x8xf32> to vector<4x8x8xbf16>
    %180 = vector.extract_strided_slice %169 {offsets = [0, 0], sizes = [16, 32], strides = [1, 1]} : vector<16x64xf32> to vector<16x32xf32>
    %181 = vector.extract_strided_slice %180 {offsets = [0, 0], sizes = [16, 8], strides = [1, 1]} : vector<16x32xf32> to vector<16x8xf32>
    %182 = vector.extract_strided_slice %180 {offsets = [0, 8], sizes = [16, 8], strides = [1, 1]} : vector<16x32xf32> to vector<16x8xf32>
    %183 = vector.extract_strided_slice %180 {offsets = [0, 16], sizes = [16, 8], strides = [1, 1]} : vector<16x32xf32> to vector<16x8xf32>
    %184 = vector.extract_strided_slice %180 {offsets = [0, 24], sizes = [16, 8], strides = [1, 1]} : vector<16x32xf32> to vector<16x8xf32>
    %185 = vector.shape_cast %181 : vector<16x8xf32> to vector<1x16x8xf32>
    %186 = vector.shape_cast %182 : vector<16x8xf32> to vector<1x16x8xf32>
    %187 = vector.shape_cast %183 : vector<16x8xf32> to vector<1x16x8xf32>
    %188 = vector.shape_cast %184 : vector<16x8xf32> to vector<1x16x8xf32>
    %189 = tpu.concatenate %185, %186, %187, %188 in 0 : vector<1x16x8xf32>, vector<1x16x8xf32>, vector<1x16x8xf32>, vector<1x16x8xf32> -> vector<4x16x8xf32>
    %190 = arith.truncf %189 : vector<4x16x8xf32> to vector<4x16x8xbf16>
    %191 = vector.extract_strided_slice %169 {offsets = [0, 32], sizes = [16, 32], strides = [1, 1]} : vector<16x64xf32> to vector<16x32xf32>
    %192 = vector.extract_strided_slice %191 {offsets = [0, 0], sizes = [16, 8], strides = [1, 1]} : vector<16x32xf32> to vector<16x8xf32>
    %193 = vector.extract_strided_slice %191 {offsets = [0, 8], sizes = [16, 8], strides = [1, 1]} : vector<16x32xf32> to vector<16x8xf32>
    %194 = vector.extract_strided_slice %191 {offsets = [0, 16], sizes = [16, 8], strides = [1, 1]} : vector<16x32xf32> to vector<16x8xf32>
    %195 = vector.extract_strided_slice %191 {offsets = [0, 24], sizes = [16, 8], strides = [1, 1]} : vector<16x32xf32> to vector<16x8xf32>
    %196 = vector.shape_cast %192 : vector<16x8xf32> to vector<1x16x8xf32>
    %197 = vector.shape_cast %193 : vector<16x8xf32> to vector<1x16x8xf32>
    %198 = vector.shape_cast %194 : vector<16x8xf32> to vector<1x16x8xf32>
    %199 = vector.shape_cast %195 : vector<16x8xf32> to vector<1x16x8xf32>
    %200 = tpu.concatenate %196, %197, %198, %199 in 0 : vector<1x16x8xf32>, vector<1x16x8xf32>, vector<1x16x8xf32>, vector<1x16x8xf32> -> vector<4x16x8xf32>
    %201 = arith.truncf %200 : vector<4x16x8xf32> to vector<4x16x8xbf16>
    %202 = vector.shape_cast %24 : vector<1x16xf32> to vector<1x1x16xf32>
    "tpu.trace_start"() <{level = 10 : i32, message = "hqd,hkd->hqk"}> : () -> ()
    %cst_74 = arith.constant dense<0.000000e+00> : vector<4x8x16xf32>
    %203 = tpu.matmul %179, %190, %cst_74 {dimension_numbers = #tpu.dot_dimension_numbers<[2], [2], [1], [1], [0, 0, 0, 1, 1, 1], [0], [0]>} : vector<4x8x8xbf16>, vector<4x16x8xbf16>, vector<4x8x16xf32> -> vector<4x8x16xf32>
    "tpu.trace_stop"() : () -> ()
    %204 = vector.broadcast %202 : vector<1x1x16xf32> to vector<4x8x16xf32>
    %205 = arith.addf %203, %204 : vector<4x8x16xf32>
    %cst_75 = arith.constant dense<0xFF800000> : vector<4x8xf32>
    %206 = vector.multi_reduction <maximumf>, %205, %cst_75 [2] : vector<4x8x16xf32> to vector<4x8xf32>
    %207 = vector.shape_cast %206 : vector<4x8xf32> to vector<4x8x1xf32>
    %208 = vector.broadcast %207 : vector<4x8x1xf32> to vector<4x8x16xf32>
    %209 = arith.subf %205, %208 : vector<4x8x16xf32>
    %210 = math.exp %209 : vector<4x8x16xf32>
    %cst_76 = arith.constant dense<0.000000e+00> : vector<4x8xf32>
    %211 = vector.multi_reduction <add>, %210, %cst_76 [2] : vector<4x8x16xf32> to vector<4x8xf32>
    %212 = vector.shape_cast %211 : vector<4x8xf32> to vector<4x8x1xf32>
    %213 = tpu.reciprocal %212 {approx = true} : vector<4x8x1xf32> -> vector<4x8x1xf32>
    %214 = vector.broadcast %213 : vector<4x8x1xf32> to vector<4x8x16xf32>
    %215 = arith.mulf %210, %214 : vector<4x8x16xf32>
    %216 = arith.truncf %215 : vector<4x8x16xf32> to vector<4x8x16xbf16>
    "tpu.trace_start"() <{level = 10 : i32, message = "hqk,hkd->hqd"}> : () -> ()
    %cst_77 = arith.constant dense<0.000000e+00> : vector<4x8x8xf32>
    %217 = tpu.matmul %216, %201, %cst_77 {dimension_numbers = #tpu.dot_dimension_numbers<[2], [1], [1], [2], [0, 0, 0, 1, 1, 2], [0], [0]>} : vector<4x8x16xbf16>, vector<4x16x8xbf16>, vector<4x8x8xf32> -> vector<4x8x8xf32>
    "tpu.trace_stop"() : () -> ()
    %218 = vector.extract_strided_slice %217 {offsets = [0, 0, 0], sizes = [1, 8, 8], strides = [1, 1, 1]} : vector<4x8x8xf32> to vector<1x8x8xf32>
    %219 = vector.shape_cast %218 : vector<1x8x8xf32> to vector<8x8xf32>
    %220 = vector.extract_strided_slice %217 {offsets = [1, 0, 0], sizes = [1, 8, 8], strides = [1, 1, 1]} : vector<4x8x8xf32> to vector<1x8x8xf32>
    %221 = vector.shape_cast %220 : vector<1x8x8xf32> to vector<8x8xf32>
    %222 = vector.extract_strided_slice %217 {offsets = [2, 0, 0], sizes = [1, 8, 8], strides = [1, 1, 1]} : vector<4x8x8xf32> to vector<1x8x8xf32>
    %223 = vector.shape_cast %222 : vector<1x8x8xf32> to vector<8x8xf32>
    %224 = vector.extract_strided_slice %217 {offsets = [3, 0, 0], sizes = [1, 8, 8], strides = [1, 1, 1]} : vector<4x8x8xf32> to vector<1x8x8xf32>
    %225 = vector.shape_cast %224 : vector<1x8x8xf32> to vector<8x8xf32>
    %226 = tpu.concatenate %219, %221, %223, %225 in 1 : vector<8x8xf32>, vector<8x8xf32>, vector<8x8xf32>, vector<8x8xf32> -> vector<8x32xf32>
    %227 = arith.truncf %226 : vector<8x32xf32> to vector<8x32xbf16>
    %c0_78 = arith.constant 0 : index
    %c0_79 = arith.constant 0 : index
    %c0_80 = arith.constant 0 : index
    %228 = vector.load %arg18[%c0_78, %c0_79, %c0_80] : memref<1x32x32xbf16, #tpu.memory_space<vmem>>, vector<1x32x32xbf16>
    %229 = vector.shape_cast %228 : vector<1x32x32xbf16> to vector<32x32xbf16>
    %cst_81 = arith.constant dense<0.000000e+00> : vector<8x32xf32>
    %230 = tpu.matmul %227, %229, %cst_81 {dimension_numbers = #tpu.dot_dimension_numbers<[1], [0], [0], [1], [0, 0, 1, 1], [], []>} : vector<8x32xbf16>, vector<32x32xbf16>, vector<8x32xf32> -> vector<8x32xf32>
    %c0_82 = arith.constant 0 : index
    %c0_83 = arith.constant 0 : index
    %c0_84 = arith.constant 0 : index
    %231 = vector.load %arg19[%c0_82, %c0_83, %c0_84] : memref<1x1x32xf32, #tpu.memory_space<vmem>>, vector<1x1x32xf32>
    %232 = vector.shape_cast %231 : vector<1x1x32xf32> to vector<1x32xf32>
    %233 = vector.broadcast %232 : vector<1x32xf32> to vector<8x32xf32>
    %234 = arith.addf %230, %233 : vector<8x32xf32>
    %235 = arith.addf %234, %128 : vector<8x32xf32>
    %c0_85 = arith.constant 0 : index
    %c0_86 = arith.constant 0 : index
    %c0_87 = arith.constant 0 : index
    %236 = vector.load %arg20[%c0_85, %c0_86, %c0_87] : memref<1x1x32xf32, #tpu.memory_space<vmem>>, vector<1x1x32xf32>
    %237 = vector.shape_cast %236 : vector<1x1x32xf32> to vector<1x32xf32>
    %c0_88 = arith.constant 0 : index
    %c0_89 = arith.constant 0 : index
    %c0_90 = arith.constant 0 : index
    %238 = vector.load %arg21[%c0_88, %c0_89, %c0_90] : memref<1x1x32xf32, #tpu.memory_space<vmem>>, vector<1x1x32xf32>
    %239 = vector.shape_cast %238 : vector<1x1x32xf32> to vector<1x32xf32>
    %cst_91 = arith.constant dense<0.000000e+00> : vector<8xf32>
    %240 = vector.multi_reduction <add>, %235, %cst_91 [1] : vector<8x32xf32> to vector<8xf32>
    %241 = vector.shape_cast %240 : vector<8xf32> to vector<8x1xf32>
    %cst_92 = arith.constant 3.200000e+01 : f32
    %242 = vector.broadcast %cst_92 : f32 to vector<8x1xf32>
    %243 = arith.divf %241, %242 : vector<8x1xf32>
    %244 = vector.broadcast %243 : vector<8x1xf32> to vector<8x32xf32>
    %245 = arith.subf %235, %244 : vector<8x32xf32>
    %246 = arith.mulf %245, %245 : vector<8x32xf32>
    %cst_93 = arith.constant dense<0.000000e+00> : vector<8xf32>
    %247 = vector.multi_reduction <add>, %246, %cst_93 [1] : vector<8x32xf32> to vector<8xf32>
    %248 = vector.shape_cast %247 : vector<8xf32> to vector<8x1xf32>
    %cst_94 = arith.constant 3.200000e+01 : f32
    %249 = vector.broadcast %cst_94 : f32 to vector<8x1xf32>
    %250 = arith.divf %248, %249 : vector<8x1xf32>
    %251 = vector.broadcast %243 : vector<8x1xf32> to vector<8x32xf32>
    %252 = arith.subf %235, %251 : vector<8x32xf32>
    %cst_95 = arith.constant 9.99999997E-7 : f32
    %253 = vector.broadcast %cst_95 : f32 to vector<8x1xf32>
    %254 = arith.addf %250, %253 : vector<8x1xf32>
    %255 = math.rsqrt %254 : vector<8x1xf32>
    %256 = vector.broadcast %255 : vector<8x1xf32> to vector<8x32xf32>
    %257 = arith.mulf %252, %256 : vector<8x32xf32>
    %258 = vector.broadcast %237 : vector<1x32xf32> to vector<8x32xf32>
    %259 = arith.mulf %257, %258 : vector<8x32xf32>
    %260 = vector.broadcast %239 : vector<1x32xf32> to vector<8x32xf32>
    %261 = arith.addf %259, %260 : vector<8x32xf32>
    %262 = arith.truncf %261 : vector<8x32xf32> to vector<8x32xbf16>
    %c0_96 = arith.constant 0 : index
    %c0_97 = arith.constant 0 : index
    %c0_98 = arith.constant 0 : index
    %263 = vector.load %arg22[%c0_96, %c0_97, %c0_98] : memref<1x32x64xbf16, #tpu.memory_space<vmem>>, vector<1x32x64xbf16>
    %264 = vector.shape_cast %263 : vector<1x32x64xbf16> to vector<32x64xbf16>
    %cst_99 = arith.constant dense<0.000000e+00> : vector<8x64xf32>
    %265 = tpu.matmul %262, %264, %cst_99 {dimension_numbers = #tpu.dot_dimension_numbers<[1], [0], [0], [1], [0, 0, 1, 1], [], []>} : vector<8x32xbf16>, vector<32x64xbf16>, vector<8x64xf32> -> vector<8x64xf32>
    %c0_100 = arith.constant 0 : index
    %c0_101 = arith.constant 0 : index
    %c0_102 = arith.constant 0 : index
    %266 = vector.load %arg23[%c0_100, %c0_101, %c0_102] : memref<1x1x64xf32, #tpu.memory_space<vmem>>, vector<1x1x64xf32>
    %267 = vector.shape_cast %266 : vector<1x1x64xf32> to vector<1x64xf32>
    %268 = vector.broadcast %267 : vector<1x64xf32> to vector<8x64xf32>
    %269 = arith.addf %265, %268 : vector<8x64xf32>
    %cst_103 = arith.constant 5.000000e-01 : f32
    %270 = vector.broadcast %cst_103 : f32 to vector<8x64xf32>
    %271 = arith.mulf %270, %269 : vector<8x64xf32>
    %cst_104 = arith.constant 4.471500e-02 : f32
    %272 = vector.broadcast %cst_104 : f32 to vector<8x64xf32>
    %273 = arith.mulf %272, %269 : vector<8x64xf32>
    %274 = arith.mulf %273, %269 : vector<8x64xf32>
    %275 = arith.mulf %274, %269 : vector<8x64xf32>
    %276 = arith.addf %269, %275 : vector<8x64xf32>
    %cst_105 = arith.constant 0.797884583 : f32
    %277 = vector.broadcast %cst_105 : f32 to vector<8x64xf32>
    %278 = arith.mulf %277, %276 : vector<8x64xf32>
    %279 = math.tanh %278 : vector<8x64xf32>
    %cst_106 = arith.constant 1.000000e+00 : f32
    %280 = vector.broadcast %cst_106 : f32 to vector<8x64xf32>
    %281 = arith.addf %280, %279 : vector<8x64xf32>
    %282 = arith.mulf %271, %281 : vector<8x64xf32>
    %283 = arith.truncf %282 : vector<8x64xf32> to vector<8x64xbf16>
    %c0_107 = arith.constant 0 : index
    %c0_108 = arith.constant 0 : index
    %c0_109 = arith.constant 0 : index
    %284 = vector.load %arg24[%c0_107, %c0_108, %c0_109] : memref<1x64x32xbf16, #tpu.memory_space<vmem>>, vector<1x64x32xbf16>
    %285 = vector.shape_cast %284 : vector<1x64x32xbf16> to vector<64x32xbf16>
    %cst_110 = arith.constant dense<0.000000e+00> : vector<8x32xf32>
    %286 = tpu.matmul %283, %285, %cst_110 {dimension_numbers = #tpu.dot_dimension_numbers<[1], [0], [0], [1], [0, 0, 1, 1], [], []>} : vector<8x64xbf16>, vector<64x32xbf16>, vector<8x32xf32> -> vector<8x32xf32>
    %c0_111 = arith.constant 0 : index
    %c0_112 = arith.constant 0 : index
    %c0_113 = arith.constant 0 : index
    %287 = vector.load %arg25[%c0_111, %c0_112, %c0_113] : memref<1x1x32xf32, #tpu.memory_space<vmem>>, vector<1x1x32xf32>
    %288 = vector.shape_cast %287 : vector<1x1x32xf32> to vector<1x32xf32>
    %289 = vector.broadcast %288 : vector<1x32xf32> to vector<8x32xf32>
    %290 = arith.addf %286, %289 : vector<8x32xf32>
    %291 = arith.addf %290, %235 : vector<8x32xf32>
    %c0_114 = arith.constant 0 : index
    %c0_115 = arith.constant 0 : index
    %292 = vector.load %arg30[%c0_114, %c0_115] : memref<8x32xf32, #tpu.memory_space<vmem>>, vector<8x32xf32>
    tpu.vector_store %arg30[%c0_114, %c0_115], %291 {strides = array<i32>} : memref<8x32xf32, #tpu.memory_space<vmem>>, vector<8x32xf32>,
    %c1_i32 = arith.constant 1 : i32
    %293 = arith.cmpi eq, %arg1, %c1_i32 : i32
    %294 = arith.extui %293 : i1 to i32
    %c0_i32_116 = arith.constant 0 : i32
    %295 = arith.cmpi ne, %294, %c0_i32_116 : i32
    scf.if %295 {
      %c0_117 = arith.constant 0 : index
      %c0_118 = arith.constant 0 : index
      %296 = vector.load %arg26[%c0_117, %c0_118] : memref<1x32xf32, #tpu.memory_space<vmem>>, vector<1x32xf32>
      %c0_119 = arith.constant 0 : index
      %c0_120 = arith.constant 0 : index
      %297 = vector.load %arg27[%c0_119, %c0_120] : memref<1x32xf32, #tpu.memory_space<vmem>>, vector<1x32xf32>
      %cst_121 = arith.constant dense<0.000000e+00> : vector<8xf32>
      %298 = vector.multi_reduction <add>, %291, %cst_121 [1] : vector<8x32xf32> to vector<8xf32>
      %299 = vector.shape_cast %298 : vector<8xf32> to vector<8x1xf32>
      %cst_122 = arith.constant 3.200000e+01 : f32
      %300 = vector.broadcast %cst_122 : f32 to vector<8x1xf32>
      %301 = arith.divf %299, %300 : vector<8x1xf32>
      %302 = vector.broadcast %301 : vector<8x1xf32> to vector<8x32xf32>
      %303 = arith.subf %291, %302 : vector<8x32xf32>
      %304 = arith.mulf %303, %303 : vector<8x32xf32>
      %cst_123 = arith.constant dense<0.000000e+00> : vector<8xf32>
      %305 = vector.multi_reduction <add>, %304, %cst_123 [1] : vector<8x32xf32> to vector<8xf32>
      %306 = vector.shape_cast %305 : vector<8xf32> to vector<8x1xf32>
      %cst_124 = arith.constant 3.200000e+01 : f32
      %307 = vector.broadcast %cst_124 : f32 to vector<8x1xf32>
      %308 = arith.divf %306, %307 : vector<8x1xf32>
      %309 = vector.broadcast %301 : vector<8x1xf32> to vector<8x32xf32>
      %310 = arith.subf %291, %309 : vector<8x32xf32>
      %cst_125 = arith.constant 9.99999997E-7 : f32
      %311 = vector.broadcast %cst_125 : f32 to vector<8x1xf32>
      %312 = arith.addf %308, %311 : vector<8x1xf32>
      %313 = math.rsqrt %312 : vector<8x1xf32>
      %314 = vector.broadcast %313 : vector<8x1xf32> to vector<8x32xf32>
      %315 = arith.mulf %310, %314 : vector<8x32xf32>
      %316 = vector.broadcast %296 : vector<1x32xf32> to vector<8x32xf32>
      %317 = arith.mulf %315, %316 : vector<8x32xf32>
      %318 = vector.broadcast %297 : vector<1x32xf32> to vector<8x32xf32>
      %319 = arith.addf %317, %318 : vector<8x32xf32>
      %c0_126 = arith.constant 0 : index
      %c0_127 = arith.constant 0 : index
      %c0_128 = arith.constant 0 : index
      %320 = vector.load %arg28[%c0_126, %c0_127, %c0_128] : memref<1x8x32xf32, #tpu.memory_space<vmem>>, vector<1x8x32xf32>
      %321 = vector.shape_cast %320 : vector<1x8x32xf32> to vector<8x32xf32>
      %322 = vector.shape_cast %319 : vector<8x32xf32> to vector<1x8x32xf32>
      tpu.vector_store %arg28[%c0_126, %c0_127, %c0_128], %322 {strides = array<i32>} : memref<1x8x32xf32, #tpu.memory_space<vmem>>, vector<1x8x32xf32>,
    } else {
    }
    return
  }
  func.func @transform_0(%arg0: i32, %arg1: i32) -> (i32, i32, i32) {
    %c0_i32 = arith.constant 0 : i32
    %c0_i32_0 = arith.constant 0 : i32
    %c0_i32_1 = arith.constant 0 : i32
    return %arg0, %c0_i32, %c0_i32_0 : i32, i32, i32
  }
  func.func @transform_1(%arg0: i32, %arg1: i32) -> (i32, i32, i32) {
    %c0_i32 = arith.constant 0 : i32
    %c0_i32_0 = arith.constant 0 : i32
    %c0_i32_1 = arith.constant 0 : i32
    return %arg0, %c0_i32, %c0_i32_0 : i32, i32, i32
  }
  func.func @transform_2(%arg0: i32, %arg1: i32) -> (i32, i32, i32) {
    %c0_i32 = arith.constant 0 : i32
    %c0_i32_0 = arith.constant 0 : i32
    %c0_i32_1 = arith.constant 0 : i32
    return %arg0, %c0_i32, %c0_i32_0 : i32, i32, i32
  }
  func.func @transform_3(%arg0: i32, %arg1: i32) -> (i32, i32, i32) {
    %c0_i32 = arith.constant 0 : i32
    %c0_i32_0 = arith.constant 0 : i32
    %c0_i32_1 = arith.constant 0 : i32
    return %arg0, %c0_i32, %c0_i32_0 : i32, i32, i32
  }
  func.func @transform_4(%arg0: i32, %arg1: i32) -> (i32, i32, i32) {
    %c0_i32 = arith.constant 0 : i32
    %c0_i32_0 = arith.constant 0 : i32
    %c0_i32_1 = arith.constant 0 : i32
    return %arg1, %c0_i32, %c0_i32_0 : i32, i32, i32
  }
  func.func @transform_5(%arg0: i32, %arg1: i32) -> (i32, i32, i32) {
    %c0_i32 = arith.constant 0 : i32
    %c0_i32_0 = arith.constant 0 : i32
    %c0_i32_1 = arith.constant 0 : i32
    return %arg1, %c0_i32, %c0_i32_0 : i32, i32, i32
  }
  func.func @transform_6(%arg0: i32, %arg1: i32) -> (i32, i32, i32) {
    %c0_i32 = arith.constant 0 : i32
    %c0_i32_0 = arith.constant 0 : i32
    %c0_i32_1 = arith.constant 0 : i32
    return %arg1, %c0_i32, %c0_i32_0 : i32, i32, i32
  }
  func.func @transform_7(%arg0: i32, %arg1: i32) -> (i32, i32, i32) {
    %c0_i32 = arith.constant 0 : i32
    %c0_i32_0 = arith.constant 0 : i32
    %c0_i32_1 = arith.constant 0 : i32
    return %arg1, %c0_i32, %c0_i32_0 : i32, i32, i32
  }
  func.func @transform_8(%arg0: i32, %arg1: i32) -> (i32, i32, i32) {
    %c0_i32 = arith.constant 0 : i32
    %c0_i32_0 = arith.constant 0 : i32
    %c0_i32_1 = arith.constant 0 : i32
    return %arg1, %c0_i32, %c0_i32_0 : i32, i32, i32
  }
  func.func @transform_9(%arg0: i32, %arg1: i32) -> (i32, i32, i32) {
    %c0_i32 = arith.constant 0 : i32
    %c0_i32_0 = arith.constant 0 : i32
    %c0_i32_1 = arith.constant 0 : i32
    return %arg1, %c0_i32, %c0_i32_0 : i32, i32, i32
  }
  func.func @transform_10(%arg0: i32, %arg1: i32) -> (i32, i32, i32) {
    %c0_i32 = arith.constant 0 : i32
    %c0_i32_0 = arith.constant 0 : i32
    %c0_i32_1 = arith.constant 0 : i32
    return %arg1, %c0_i32, %c0_i32_0 : i32, i32, i32
  }
  func.func @transform_11(%arg0: i32, %arg1: i32) -> (i32, i32, i32) {
    %c0_i32 = arith.constant 0 : i32
    %c0_i32_0 = arith.constant 0 : i32
    %c0_i32_1 = arith.constant 0 : i32
    return %arg1, %c0_i32, %c0_i32_0 : i32, i32, i32
  }
  func.func @transform_12(%arg0: i32, %arg1: i32) -> (i32, i32, i32) {
    %c0_i32 = arith.constant 0 : i32
    %c0_i32_0 = arith.constant 0 : i32
    %c0_i32_1 = arith.constant 0 : i32
    return %arg1, %c0_i32, %c0_i32_0 : i32, i32, i32
  }
  func.func @transform_13(%arg0: i32, %arg1: i32) -> (i32, i32, i32) {
    %c0_i32 = arith.constant 0 : i32
    %c0_i32_0 = arith.constant 0 : i32
    %c0_i32_1 = arith.constant 0 : i32
    return %arg1, %c0_i32, %c0_i32_0 : i32, i32, i32
  }
  func.func @transform_14(%arg0: i32, %arg1: i32) -> (i32, i32, i32) {
    %c0_i32 = arith.constant 0 : i32
    %c0_i32_0 = arith.constant 0 : i32
    %c0_i32_1 = arith.constant 0 : i32
    return %arg1, %c0_i32, %c0_i32_0 : i32, i32, i32
  }
  func.func @transform_15(%arg0: i32, %arg1: i32) -> (i32, i32, i32) {
    %c0_i32 = arith.constant 0 : i32
    %c0_i32_0 = arith.constant 0 : i32
    %c0_i32_1 = arith.constant 0 : i32
    return %arg1, %c0_i32, %c0_i32_0 : i32, i32, i32
  }
  func.func @transform_16(%arg0: i32, %arg1: i32) -> (i32, i32, i32) {
    %c0_i32 = arith.constant 0 : i32
    %c0_i32_0 = arith.constant 0 : i32
    %c0_i32_1 = arith.constant 0 : i32
    return %arg1, %c0_i32, %c0_i32_0 : i32, i32, i32
  }
  func.func @transform_17(%arg0: i32, %arg1: i32) -> (i32, i32, i32) {
    %c0_i32 = arith.constant 0 : i32
    %c0_i32_0 = arith.constant 0 : i32
    %c0_i32_1 = arith.constant 0 : i32
    return %arg1, %c0_i32, %c0_i32_0 : i32, i32, i32
  }
  func.func @transform_18(%arg0: i32, %arg1: i32) -> (i32, i32, i32) {
    %c0_i32 = arith.constant 0 : i32
    %c0_i32_0 = arith.constant 0 : i32
    %c0_i32_1 = arith.constant 0 : i32
    return %arg1, %c0_i32, %c0_i32_0 : i32, i32, i32
  }
  func.func @transform_19(%arg0: i32, %arg1: i32) -> (i32, i32, i32) {
    %c0_i32 = arith.constant 0 : i32
    %c0_i32_0 = arith.constant 0 : i32
    %c0_i32_1 = arith.constant 0 : i32
    return %arg1, %c0_i32, %c0_i32_0 : i32, i32, i32
  }
  func.func @transform_20(%arg0: i32, %arg1: i32) -> (i32, i32, i32) {
    %c0_i32 = arith.constant 0 : i32
    %c0_i32_0 = arith.constant 0 : i32
    %c0_i32_1 = arith.constant 0 : i32
    return %arg1, %c0_i32, %c0_i32_0 : i32, i32, i32
  }
  func.func @transform_21(%arg0: i32, %arg1: i32) -> (i32, i32, i32) {
    %c0_i32 = arith.constant 0 : i32
    %c0_i32_0 = arith.constant 0 : i32
    %c0_i32_1 = arith.constant 0 : i32
    return %arg1, %c0_i32, %c0_i32_0 : i32, i32, i32
  }
  func.func @transform_22(%arg0: i32, %arg1: i32) -> (i32, i32, i32) {
    %c0_i32 = arith.constant 0 : i32
    %c0_i32_0 = arith.constant 0 : i32
    %c0_i32_1 = arith.constant 0 : i32
    return %arg1, %c0_i32, %c0_i32_0 : i32, i32, i32
  }
  func.func @transform_23(%arg0: i32, %arg1: i32) -> (i32, i32, i32) {
    %c0_i32 = arith.constant 0 : i32
    %c0_i32_0 = arith.constant 0 : i32
    %c0_i32_1 = arith.constant 0 : i32
    return %arg1, %c0_i32, %c0_i32_0 : i32, i32, i32
  }
  func.func @transform_24(%arg0: i32, %arg1: i32) -> (i32, i32) {
    %c0_i32 = arith.constant 0 : i32
    %c0_i32_0 = arith.constant 0 : i32
    %c0_i32_1 = arith.constant 0 : i32
    return %c0_i32, %c0_i32_0 : i32, i32
  }
  func.func @transform_25(%arg0: i32, %arg1: i32) -> (i32, i32) {
    %c0_i32 = arith.constant 0 : i32
    %c0_i32_0 = arith.constant 0 : i32
    %c0_i32_1 = arith.constant 0 : i32
    return %c0_i32, %c0_i32_0 : i32, i32
  }
  func.func @transform_26(%arg0: i32, %arg1: i32) -> (i32, i32, i32) {
    %c0_i32 = arith.constant 0 : i32
    %c0_i32_0 = arith.constant 0 : i32
    %c0_i32_1 = arith.constant 0 : i32
    return %arg0, %c0_i32, %c0_i32_0 : i32, i32, i32
  }
  func.func @transform_27(%arg0: i32, %arg1: i32) -> (i32, i32, i32, i32) {
    %c0_i32 = arith.constant 0 : i32
    %c0_i32_0 = arith.constant 0 : i32
    %c0_i32_1 = arith.constant 0 : i32
    return %arg1, %arg0, %c0_i32, %c0_i32_0 : i32, i32, i32, i32
  }
}

</mosaic_0001>

<llo_original>
// kernel: tpu_custom_call.1
$region0: #{tpu_custom_call.1}
  #allocation0 [shape = 'u32[]', space=smem, size = 0x4, offset = 0x4, fixed_abs, tag = 'smem constant byte address 0x4 - core index']
  #allocation1 [shape = 'u32[72,128]{1,0:T(1,128)}', space=vmem, size = 0x9000, scoped, tag = 'internal scratch']
  #allocation2 [shape = 'f32[8,32]{1,0:T(8,128)}', space=vmem, size = 0x1000, scoped, tag = 'scratch operand']
  %s0 = inlined_call_operand.hbm [shape: f32[2,8,32], index: 0, kind: input, shape index: {}]
  %s1 = inlined_call_operand.hbm [shape: bf16[2,16,32], index: 1, kind: input, shape index: {}]
  %s2 = inlined_call_operand.hbm [shape: f32[2,1,8], index: 2, kind: input, shape index: {}]
  %s3 = inlined_call_operand.hbm [shape: f32[2,1,16], index: 3, kind: input, shape index: {}]
  %s4 = inlined_call_operand.vmem [shape: f32[2,1,32], index: 4, kind: input, shape index: {}]
  %s5 = inlined_call_operand.hbm [shape: f32[2,1,32], index: 5, kind: input, shape index: {}]
  %s6 = inlined_call_operand.vmem [shape: bf16[2,32,96], index: 6, kind: input, shape index: {}]
  %s7 = inlined_call_operand.vmem [shape: f32[2,1,96], index: 7, kind: input, shape index: {}]
  %s8 = inlined_call_operand.vmem [shape: bf16[2,32,32], index: 8, kind: input, shape index: {}]
  %s9 = inlined_call_operand.vmem [shape: f32[2,1,32], index: 9, kind: input, shape index: {}]
  %s10 = inlined_call_operand.vmem [shape: f32[2,1,32], index: 10, kind: input, shape index: {}]
  %s11 = inlined_call_operand.hbm [shape: f32[2,1,32], index: 11, kind: input, shape index: {}]
  %s12 = inlined_call_operand.vmem [shape: bf16[2,32,32], index: 12, kind: input, shape index: {}]
  %s13 = inlined_call_operand.vmem [shape: f32[2,1,32], index: 13, kind: input, shape index: {}]
  %s14 = inlined_call_operand.hbm [shape: bf16[2,32,64], index: 14, kind: input, shape index: {}]
  %s15 = inlined_call_operand.vmem [shape: f32[2,1,64], index: 15, kind: input, shape index: {}]
  %s16 = inlined_call_operand.hbm [shape: bf16[2,32,32], index: 16, kind: input, shape index: {}]
  %s17 = inlined_call_operand.vmem [shape: f32[2,1,32], index: 17, kind: input, shape index: {}]
  %s18 = inlined_call_operand.vmem [shape: f32[2,1,32], index: 18, kind: input, shape index: {}]
  %s19 = inlined_call_operand.hbm [shape: f32[2,1,32], index: 19, kind: input, shape index: {}]
  %s20 = inlined_call_operand.hbm [shape: bf16[2,32,64], index: 20, kind: input, shape index: {}]
  %s21 = inlined_call_operand.vmem [shape: f32[2,1,64], index: 21, kind: input, shape index: {}]
  %s22 = inlined_call_operand.vmem [shape: bf16[2,64,32], index: 22, kind: input, shape index: {}]
  %s23 = inlined_call_operand.vmem [shape: f32[2,1,32], index: 23, kind: input, shape index: {}]
  %s24 = inlined_call_operand.vmem [shape: f32[1,32], index: 24, kind: input, shape index: {}]
  %s25 = inlined_call_operand.vmem [shape: f32[1,32], index: 25, kind: input, shape index: {}]
  %s26 = inlined_call_operand.hbm [shape: f32[2,8,32], index: 26, kind: output, shape index: {0}]
  %s27 = inlined_call_operand.hbm [shape: f32[2,2,8,32], index: 27, kind: output, shape index: {1}]
  %28 = xla_tuple %s26, %s27
  %s29 = sld [smem:[#allocation0]]
  $region193: #{tpu_custom_call.1} parent=0
    _
  %s31 = ssub.s32 1, %s29
  %s32 = scalar_select 0, %s31, %s29
  $region1: #{tpu_custom_call.1} parent=0
    #allocation3 [shape = 'u8[8192]{0}', space=vmem, size = 0x2000, scoped, tag = 'input window, operand 0']
    #allocation4 [shape = 's32[2]{0}', space=sflag, size = 0x8, scoped, tag = 'scoped memory for tpu_custom_call.1']
    #allocation5 [shape = 's32[2]{0}', space=sflag, size = 0x8, scoped, tag = 'scoped memory for tpu_custom_call.1']
    #allocation6 [shape = 'u8[8192]{0}', space=vmem, size = 0x2000, scoped, tag = 'input window, operand 1']
    #allocation7 [shape = 's32[2]{0}', space=sflag, size = 0x8, scoped, tag = 'scoped memory for tpu_custom_call.1']
    #allocation8 [shape = 'u8[1024]{0}', space=vmem, size = 0x400, scoped, tag = 'input window, operand 2']
    #allocation9 [shape = 'u8[1024]{0}', space=vmem, size = 0x400, scoped, tag = 'input window, operand 3']
    #allocation10 [shape = 's32[2]{0}', space=sflag, size = 0x8, scoped, tag = 'scoped memory for tpu_custom_call.1']
    #allocation11 [shape = 'u8[1024]{0}', space=vmem, size = 0x400, scoped, tag = 'input window, operand 5']
    #allocation12 [shape = 'u8[1024]{0}', space=vmem, size = 0x400, scoped, tag = 'input window, operand 11']
    #allocation13 [shape = 's32[2]{0}', space=sflag, size = 0x8, scoped, tag = 'scoped memory for tpu_custom_call.1']
    #allocation14 [shape = 'u8[16384]{0}', space=vmem, size = 0x4000, scoped, tag = 'input window, operand 14']
    #allocation15 [shape = 'u8[16384]{0}', space=vmem, size = 0x4000, scoped, tag = 'input window, operand 16']
    #allocation16 [shape = 's32[2]{0}', space=sflag, size = 0x8, scoped, tag = 'scoped memory for tpu_custom_call.1']
    #allocation17 [shape = 'u8[1024]{0}', space=vmem, size = 0x400, scoped, tag = 'input window, operand 19']
    #allocation18 [shape = 'u8[16384]{0}', space=vmem, size = 0x4000, scoped, tag = 'input window, operand 20']
    #allocation19 [shape = 's32[2]{0}', space=sflag, size = 0x8, scoped, tag = 'scoped memory for tpu_custom_call.1']
    #allocation20 [shape = 'u8[8192]{0}', space=vmem, size = 0x2000, scoped, tag = 'output window, operand 0']
    #allocation21 [shape = 'u8[8192]{0}', space=vmem, size = 0x2000, scoped, tag = 'output window, operand 1']
    #allocation22 [shape = 's32[2]{0}', space=sflag, size = 0x8, scoped, tag = 'scoped memory for tpu_custom_call.1']
    %33 = vsyncpa [#allocation4], 0
    %s34 = scalar_lea.sflag [#allocation4], 1
    %35 = vsyncpa %s34, 0
    %36 = vsyncpa [#allocation7], 0
    %s37 = scalar_lea.sflag [#allocation7], 1
    %38 = vsyncpa %s37, 0
    %39 = vsyncpa [#allocation10], 0
    %s40 = scalar_lea.sflag [#allocation10], 1
    %41 = vsyncpa %s40, 0
    %42 = vsyncpa [#allocation13], 0
    %s43 = scalar_lea.sflag [#allocation13], 1
    %44 = vsyncpa %s43, 0
    %45 = vsyncpa [#allocation16], 0
    %s46 = scalar_lea.sflag [#allocation16], 1
    %47 = vsyncpa %s46, 0
    %48 = vsyncpa [#allocation19], 0
    %s49 = scalar_lea.sflag [#allocation19], 1
    %50 = vsyncpa %s49, 0
    %51 = vsyncpa [#allocation5], 0
    %s52 = scalar_lea.sflag [#allocation5], 1
    %53 = vsyncpa %s52, 0
    %54 = vsyncpa [#allocation22], 0
    %s55 = scalar_lea.sflag [#allocation22], 1
    %56 = vsyncpa %s55, 0
    loop: start=0, step=1, limit=6
    $region2: #{tpu_custom_call.1} parent=1 // loop_pre_header
      _
    $region3: #{tpu_custom_call.1} parent=1 // loop_header
      %s58 = sphi 0, %s62
      %p59 = scmp.ge.s32.totalorder %s58, 6
      %s65 = sphi 0, %s77
      %s66 = sphi 0, %s73
      %s67 = sphi 0, %s65
      %s68 = sphi 0, %s66
      %s69 = sphi 0, %s67
      %s70 = sphi 0, %s68
      %s80 = sphi 0, %s82
      %s83 = sphi 0, %s80
      %s84 = sphi 0, %s83
      %s100 = sphi 0, %s84
      %s106 = sphi 0, %s108
      %s109 = sphi 0, %s106
      %s110 = sphi 0, %s109
      %s126 = sphi 0, %s110
      %s132 = sphi 0, %s134
      %s135 = sphi 0, %s132
      %s136 = sphi 0, %s135
      %s152 = sphi 0, %s136
      %s158 = sphi 0, %s160
      %s161 = sphi 0, %s158
      %s162 = sphi 0, %s161
      %s178 = sphi 0, %s162
      %s184 = sphi 0, %s186
      %s187 = sphi 0, %s184
      %s188 = sphi 0, %s187
      %s204 = sphi 0, %s188
      %s210 = sphi 0, %s212
      %s213 = sphi 0, %s210
      %s214 = sphi 0, %s213
      %s230 = sphi 0, %s214
      %s236 = sphi 0, %s238
      %s239 = sphi 0, %s236
      %s240 = sphi 0, %s239
      %s256 = sphi 0, %s240
      %s262 = sphi 0, %s264
      %s265 = sphi 0, %s262
      %s266 = sphi 0, %s265
      %s282 = sphi 0, %s266
      %s288 = sphi 0, %s290
      %s291 = sphi 0, %s288
      %s292 = sphi 0, %s291
      %s308 = sphi 0, %s292
      %s314 = sphi 0, %s316
      %s317 = sphi 0, %s314
      %s318 = sphi 0, %s317
      %s334 = sphi 0, %s318
      %s340 = sphi 0, %s342
      %s343 = sphi 0, %s340
      %s344 = sphi 0, %s343
      %s360 = sphi 0, %s344
      %s366 = sphi 0, %s368
      %s369 = sphi 0, %s366
      %s370 = sphi 0, %s369
      %s386 = sphi 0, %s370
      %s392 = sphi 0, %s394
      %s395 = sphi 0, %s392
      %s396 = sphi 0, %s395
      %s412 = sphi 0, %s396
      %s418 = sphi 0, %s420
      %s421 = sphi 0, %s418
      %s422 = sphi 0, %s421
      %s438 = sphi 0, %s422
      %s444 = sphi 0, %s446
      %s447 = sphi 0, %s444
      %s448 = sphi 0, %s447
      %s464 = sphi 0, %s448
      %s470 = sphi 0, %s472
      %s473 = sphi 0, %s470
      %s474 = sphi 0, %s473
      %s490 = sphi 0, %s474
      %s496 = sphi 0, %s498
      %s499 = sphi 0, %s496
      %s500 = sphi 0, %s499
      %s516 = sphi 0, %s500
      %s522 = sphi 0, %s524
      %s525 = sphi 0, %s522
      %s526 = sphi 0, %s525
      %s542 = sphi 0, %s526
      %s548 = sphi 0, %s550
      %s551 = sphi 0, %s548
      %s552 = sphi 0, %s551
      %s568 = sphi 0, %s552
      %s574 = sphi 0, %s576
      %s577 = sphi 0, %s574
      %s578 = sphi 0, %s577
      %s594 = sphi 0, %s578
      %s600 = sphi 0, %s602
      %s603 = sphi 0, %s600
      %s604 = sphi 0, %s603
      %s620 = sphi 0, %s604
      %s626 = sphi 0, %s628
      %s629 = sphi 0, %s626
      %s630 = sphi 0, %s629
      %s646 = sphi 0, %s630
      %s652 = sphi 0, %s654
      %s655 = sphi 0, %s652
      %s656 = sphi 0, %s655
      %s672 = sphi 0, %s656
      %s678 = sphi 0, %s680
      %s681 = sphi 0, %s678
      %s682 = sphi 0, %s681
      %s698 = sphi 0, %s682
      %s702 = sphi 0, %s702
      %s704 = sphi 0, %s702
      %s705 = sphi 0, %s704
      %s719 = sphi 0, %s705
      %s723 = sphi 0, %s723
      %s725 = sphi 0, %s723
      %s726 = sphi 0, %s725
      %s740 = sphi 0, %s726
      %s746 = sphi 0, %s748
      %s749 = sphi 0, %s746
      %s750 = sphi 0, %s749
      %s766 = sphi 0, %s750
      %s774 = sphi 0, %s776
      %s777 = sphi 0, %s774
      %s778 = sphi 0, %s777
      %s794 = sphi 0, %s778
    $region4: #{tpu_custom_call.1} parent=1 // loop_header_branch
      %61 = sbr.rel (%p59) target = $region8
    $region5: #{tpu_custom_call.1} parent=1 // loop_body
      %s63 = ssub.s32 %s58, 1
      %s64 = ssub.s32 %s58, 2
      %s71 = sadd.s32 1, %s66
      %p72 = scmp.ge.s32.totalorder %s71, 2
      %s73 = scalar_select %p72, 0, %s71
      %s74 = sadd.s32 1, %s65
      %s75 = scalar_select %p72, %s74, %s65
      %p76 = scmp.ge.s32.totalorder %s75, 2
      %s77 = scalar_select %p76, 0, %s75
      %s78 = ssub.s32 %s65, %s77
      %p79 = scmp.eq.s32.totalorder %s78, 0
      %s81 = sadd.s32 %s80, 1
      %s82 = scalar_select %p79, %s80, %s81
      %p85 = pneg %p79
      %p86 = scmp.eq.s32.totalorder %s58, 3
      %p87 = por %p85, %p86
      %p88 = scmp.ne.s32.totalorder %s80, %s83
      %p89 = scmp.eq.s32.totalorder %s58, 0
      %p90 = por %p88, %p89
      %p91 = scmp.ne.s32.totalorder %s80, %s83
      %p92 = scmp.eq.s32.totalorder %s63, 3
      %p93 = por %p91, %p92
      %p94 = scmp.ne.s32.totalorder %s83, %s84
      %p95 = scmp.eq.s32.totalorder %s63, 0
      %p96 = por %p94, %p95
      %p97 = scmp.ne.s32.totalorder %s83, %s84
      %p98 = scmp.eq.s32.totalorder %s64, 3
      %p99 = por %p97, %p98
      %p101 = scmp.ne.s32.totalorder %s84, %s100
      %p102 = scmp.eq.s32.totalorder %s64, 0
      %p103 = por %p101, %p102
      %s104 = ssub.s32 %s65, %s77
      %p105 = scmp.eq.s32.totalorder %s104, 0
      %s107 = sadd.s32 %s106, 1
      %s108 = scalar_select %p105, %s106, %s107
      %p111 = pneg %p105
      %p112 = scmp.eq.s32.totalorder %s58, 3
      %p113 = por %p111, %p112
      %p114 = scmp.ne.s32.totalorder %s106, %s109
      %p115 = scmp.eq.s32.totalorder %s58, 0
      %p116 = por %p114, %p115
      %p117 = scmp.ne.s32.totalorder %s106, %s109
      %p118 = scmp.eq.s32.totalorder %s63, 3
      %p119 = por %p117, %p118
      %p120 = scmp.ne.s32.totalorder %s109, %s110
      %p121 = scmp.eq.s32.totalorder %s63, 0
      %p122 = por %p120, %p121
      %p123 = scmp.ne.s32.totalorder %s109, %s110
      %p124 = scmp.eq.s32.totalorder %s64, 3
      %p125 = por %p123, %p124
      %p127 = scmp.ne.s32.totalorder %s110, %s126
      %p128 = scmp.eq.s32.totalorder %s64, 0
      %p129 = por %p127, %p128
      %s130 = ssub.s32 %s65, %s77
      %p131 = scmp.eq.s32.totalorder %s130, 0
      %s133 = sadd.s32 %s132, 1
      %s134 = scalar_select %p131, %s132, %s133
      %p137 = pneg %p131
      %p138 = scmp.eq.s32.totalorder %s58, 3
      %p139 = por %p137, %p138
      %p140 = scmp.ne.s32.totalorder %s132, %s135
      %p141 = scmp.eq.s32.totalorder %s58, 0
      %p142 = por %p140, %p141
      %p143 = scmp.ne.s32.totalorder %s132, %s135
      %p144 = scmp.eq.s32.totalorder %s63, 3
      %p145 = por %p143, %p144
      %p146 = scmp.ne.s32.totalorder %s135, %s136
      %p147 = scmp.eq.s32.totalorder %s63, 0
      %p148 = por %p146, %p147
      %p149 = scmp.ne.s32.totalorder %s135, %s136
      %p150 = scmp.eq.s32.totalorder %s64, 3
      %p151 = por %p149, %p150
      %p153 = scmp.ne.s32.totalorder %s136, %s152
      %p154 = scmp.eq.s32.totalorder %s64, 0
      %p155 = por %p153, %p154
      %s156 = ssub.s32 %s65, %s77
      %p157 = scmp.eq.s32.totalorder %s156, 0
      %s159 = sadd.s32 %s158, 1
      %s160 = scalar_select %p157, %s158, %s159
      %p163 = pneg %p157
      %p164 = scmp.eq.s32.totalorder %s58, 3
      %p165 = por %p163, %p164
      %p166 = scmp.ne.s32.totalorder %s158, %s161
      %p167 = scmp.eq.s32.totalorder %s58, 0
      %p168 = por %p166, %p167
      %p169 = scmp.ne.s32.totalorder %s158, %s161
      %p170 = scmp.eq.s32.totalorder %s63, 3
      %p171 = por %p169, %p170
      %p172 = scmp.ne.s32.totalorder %s161, %s162
      %p173 = scmp.eq.s32.totalorder %s63, 0
      %p174 = por %p172, %p173
      %p175 = scmp.ne.s32.totalorder %s161, %s162
      %p176 = scmp.eq.s32.totalorder %s64, 3
      %p177 = por %p175, %p176
      %p179 = scmp.ne.s32.totalorder %s162, %s178
      %p180 = scmp.eq.s32.totalorder %s64, 0
      %p181 = por %p179, %p180
      %s182 = ssub.s32 %s66, %s73
      %p183 = scmp.eq.s32.totalorder %s182, 0
      %s185 = sadd.s32 %s184, 1
      %s186 = scalar_select %p183, %s184, %s185
      %p189 = pneg %p183
      %p190 = scmp.eq.s32.totalorder %s58, 3
      %p191 = por %p189, %p190
      %p192 = scmp.ne.s32.totalorder %s184, %s187
      %p193 = scmp.eq.s32.totalorder %s58, 0
      %p194 = por %p192, %p193
      %p195 = scmp.ne.s32.totalorder %s184, %s187
      %p196 = scmp.eq.s32.totalorder %s63, 3
      %p197 = por %p195, %p196
      %p198 = scmp.ne.s32.totalorder %s187, %s188
      %p199 = scmp.eq.s32.totalorder %s63, 0
      %p200 = por %p198, %p199
      %p201 = scmp.ne.s32.totalorder %s187, %s188
      %p202 = scmp.eq.s32.totalorder %s64, 3
      %p203 = por %p201, %p202
      %p205 = scmp.ne.s32.totalorder %s188, %s204
      %p206 = scmp.eq.s32.totalorder %s64, 0
      %p207 = por %p205, %p206
      %s208 = ssub.s32 %s66, %s73
      %p209 = scmp.eq.s32.totalorder %s208, 0
      %s211 = sadd.s32 %s210, 1
      %s212 = scalar_select %p209, %s210, %s211
      %p215 = pneg %p209
      %p216 = scmp.eq.s32.totalorder %s58, 3
      %p217 = por %p215, %p216
      %p218 = scmp.ne.s32.totalorder %s210, %s213
      %p219 = scmp.eq.s32.totalorder %s58, 0
      %p220 = por %p218, %p219
      %p221 = scmp.ne.s32.totalorder %s210, %s213
      %p222 = scmp.eq.s32.totalorder %s63, 3
      %p223 = por %p221, %p222
      %p224 = scmp.ne.s32.totalorder %s213, %s214
      %p225 = scmp.eq.s32.totalorder %s63, 0
      %p226 = por %p224, %p225
      %p227 = scmp.ne.s32.totalorder %s213, %s214
      %p228 = scmp.eq.s32.totalorder %s64, 3
      %p229 = por %p227, %p228
      %p231 = scmp.ne.s32.totalorder %s214, %s230
      %p232 = scmp.eq.s32.totalorder %s64, 0
      %p233 = por %p231, %p232
      %s234 = ssub.s32 %s66, %s73
      %p235 = scmp.eq.s32.totalorder %s234, 0
      %s237 = sadd.s32 %s236, 1
      %s238 = scalar_select %p235, %s236, %s237
      %p241 = pneg %p235
      %p242 = scmp.eq.s32.totalorder %s58, 3
      %p243 = por %p241, %p242
      %p244 = scmp.ne.s32.totalorder %s236, %s239
      %p245 = scmp.eq.s32.totalorder %s58, 0
      %p246 = por %p244, %p245
      %p247 = scmp.ne.s32.totalorder %s236, %s239
      %p248 = scmp.eq.s32.totalorder %s63, 3
      %p249 = por %p247, %p248
      %p250 = scmp.ne.s32.totalorder %s239, %s240
      %p251 = scmp.eq.s32.totalorder %s63, 0
      %p252 = por %p250, %p251
      %p253 = scmp.ne.s32.totalorder %s239, %s240
      %p254 = scmp.eq.s32.totalorder %s64, 3
      %p255 = por %p253, %p254
      %p257 = scmp.ne.s32.totalorder %s240, %s256
      %p258 = scmp.eq.s32.totalorder %s64, 0
      %p259 = por %p257, %p258
      %s260 = ssub.s32 %s66, %s73
      %p261 = scmp.eq.s32.totalorder %s260, 0
      %s263 = sadd.s32 %s262, 1
      %s264 = scalar_select %p261, %s262, %s263
      %p267 = pneg %p261
      %p268 = scmp.eq.s32.totalorder %s58, 3
      %p269 = por %p267, %p268
      %p270 = scmp.ne.s32.totalorder %s262, %s265
      %p271 = scmp.eq.s32.totalorder %s58, 0
      %p272 = por %p270, %p271
      %p273 = scmp.ne.s32.totalorder %s262, %s265
      %p274 = scmp.eq.s32.totalorder %s63, 3
      %p275 = por %p273, %p274
      %p276 = scmp.ne.s32.totalorder %s265, %s266
      %p277 = scmp.eq.s32.totalorder %s63, 0
      %p278 = por %p276, %p277
      %p279 = scmp.ne.s32.totalorder %s265, %s266
      %p280 = scmp.eq.s32.totalorder %s64, 3
      %p281 = por %p279, %p280
      %p283 = scmp.ne.s32.totalorder %s266, %s282
      %p284 = scmp.eq.s32.totalorder %s64, 0
      %p285 = por %p283, %p284
      %s286 = ssub.s32 %s66, %s73
      %p287 = scmp.eq.s32.totalorder %s286, 0
      %s289 = sadd.s32 %s288, 1
      %s290 = scalar_select %p287, %s288, %s289
      %p293 = pneg %p287
      %p294 = scmp.eq.s32.totalorder %s58, 3
      %p295 = por %p293, %p294
      %p296 = scmp.ne.s32.totalorder %s288, %s291
      %p297 = scmp.eq.s32.totalorder %s58, 0
      %p298 = por %p296, %p297
      %p299 = scmp.ne.s32.totalorder %s288, %s291
      %p300 = scmp.eq.s32.totalorder %s63, 3
      %p301 = por %p299, %p300
      %p302 = scmp.ne.s32.totalorder %s291, %s292
      %p303 = scmp.eq.s32.totalorder %s63, 0
      %p304 = por %p302, %p303
      %p305 = scmp.ne.s32.totalorder %s291, %s292
      %p306 = scmp.eq.s32.totalorder %s64, 3
      %p307 = por %p305, %p306
      %p309 = scmp.ne.s32.totalorder %s292, %s308
      %p310 = scmp.eq.s32.totalorder %s64, 0
      %p311 = por %p309, %p310
      %s312 = ssub.s32 %s66, %s73
      %p313 = scmp.eq.s32.totalorder %s312, 0
      %s315 = sadd.s32 %s314, 1
      %s316 = scalar_select %p313, %s314, %s315
      %p319 = pneg %p313
      %p320 = scmp.eq.s32.totalorder %s58, 3
      %p321 = por %p319, %p320
      %p322 = scmp.ne.s32.totalorder %s314, %s317
      %p323 = scmp.eq.s32.totalorder %s58, 0
      %p324 = por %p322, %p323
      %p325 = scmp.ne.s32.totalorder %s314, %s317
      %p326 = scmp.eq.s32.totalorder %s63, 3
      %p327 = por %p325, %p326
      %p328 = scmp.ne.s32.totalorder %s317, %s318
      %p329 = scmp.eq.s32.totalorder %s63, 0
      %p330 = por %p328, %p329
      %p331 = scmp.ne.s32.totalorder %s317, %s318
      %p332 = scmp.eq.s32.totalorder %s64, 3
      %p333 = por %p331, %p332
      %p335 = scmp.ne.s32.totalorder %s318, %s334
      %p336 = scmp.eq.s32.totalorder %s64, 0
      %p337 = por %p335, %p336
      %s338 = ssub.s32 %s66, %s73
      %p339 = scmp.eq.s32.totalorder %s338, 0
      %s341 = sadd.s32 %s340, 1
      %s342 = scalar_select %p339, %s340, %s341
      %p345 = pneg %p339
      %p346 = scmp.eq.s32.totalorder %s58, 3
      %p347 = por %p345, %p346
      %p348 = scmp.ne.s32.totalorder %s340, %s343
      %p349 = scmp.eq.s32.totalorder %s58, 0
      %p350 = por %p348, %p349
      %p351 = scmp.ne.s32.totalorder %s340, %s343
      %p352 = scmp.eq.s32.totalorder %s63, 3
      %p353 = por %p351, %p352
      %p354 = scmp.ne.s32.totalorder %s343, %s344
      %p355 = scmp.eq.s32.totalorder %s63, 0
      %p356 = por %p354, %p355
      %p357 = scmp.ne.s32.totalorder %s343, %s344
      %p358 = scmp.eq.s32.totalorder %s64, 3
      %p359 = por %p357, %p358
      %p361 = scmp.ne.s32.totalorder %s344, %s360
      %p362 = scmp.eq.s32.totalorder %s64, 0
      %p363 = por %p361, %p362
      %s364 = ssub.s32 %s66, %s73
      %p365 = scmp.eq.s32.totalorder %s364, 0
      %s367 = sadd.s32 %s366, 1
      %s368 = scalar_select %p365, %s366, %s367
      %p371 = pneg %p365
      %p372 = scmp.eq.s32.totalorder %s58, 3
      %p373 = por %p371, %p372
      %p374 = scmp.ne.s32.totalorder %s366, %s369
      %p375 = scmp.eq.s32.totalorder %s58, 0
      %p376 = por %p374, %p375
      %p377 = scmp.ne.s32.totalorder %s366, %s369
      %p378 = scmp.eq.s32.totalorder %s63, 3
      %p379 = por %p377, %p378
      %p380 = scmp.ne.s32.totalorder %s369, %s370
      %p381 = scmp.eq.s32.totalorder %s63, 0
      %p382 = por %p380, %p381
      %p383 = scmp.ne.s32.totalorder %s369, %s370
      %p384 = scmp.eq.s32.totalorder %s64, 3
      %p385 = por %p383, %p384
      %p387 = scmp.ne.s32.totalorder %s370, %s386
      %p388 = scmp.eq.s32.totalorder %s64, 0
      %p389 = por %p387, %p388
      %s390 = ssub.s32 %s66, %s73
      %p391 = scmp.eq.s32.totalorder %s390, 0
      %s393 = sadd.s32 %s392, 1
      %s394 = scalar_select %p391, %s392, %s393
      %p397 = pneg %p391
      %p398 = scmp.eq.s32.totalorder %s58, 3
      %p399 = por %p397, %p398
      %p400 = scmp.ne.s32.totalorder %s392, %s395
      %p401 = scmp.eq.s32.totalorder %s58, 0
      %p402 = por %p400, %p401
      %p403 = scmp.ne.s32.totalorder %s392, %s395
      %p404 = scmp.eq.s32.totalorder %s63, 3
      %p405 = por %p403, %p404
      %p406 = scmp.ne.s32.totalorder %s395, %s396
      %p407 = scmp.eq.s32.totalorder %s63, 0
      %p408 = por %p406, %p407
      %p409 = scmp.ne.s32.totalorder %s395, %s396
      %p410 = scmp.eq.s32.totalorder %s64, 3
      %p411 = por %p409, %p410
      %p413 = scmp.ne.s32.totalorder %s396, %s412
      %p414 = scmp.eq.s32.totalorder %s64, 0
      %p415 = por %p413, %p414
      %s416 = ssub.s32 %s66, %s73
      %p417 = scmp.eq.s32.totalorder %s416, 0
      %s419 = sadd.s32 %s418, 1
      %s420 = scalar_select %p417, %s418, %s419
      %p423 = pneg %p417
      %p424 = scmp.eq.s32.totalorder %s58, 3
      %p425 = por %p423, %p424
      %p426 = scmp.ne.s32.totalorder %s418, %s421
      %p427 = scmp.eq.s32.totalorder %s58, 0
      %p428 = por %p426, %p427
      %p429 = scmp.ne.s32.totalorder %s418, %s421
      %p430 = scmp.eq.s32.totalorder %s63, 3
      %p431 = por %p429, %p430
      %p432 = scmp.ne.s32.totalorder %s421, %s422
      %p433 = scmp.eq.s32.totalorder %s63, 0
      %p434 = por %p432, %p433
      %p435 = scmp.ne.s32.totalorder %s421, %s422
      %p436 = scmp.eq.s32.totalorder %s64, 3
      %p437 = por %p435, %p436
      %p439 = scmp.ne.s32.totalorder %s422, %s438
      %p440 = scmp.eq.s32.totalorder %s64, 0
      %p441 = por %p439, %p440
      %s442 = ssub.s32 %s66, %s73
      %p443 = scmp.eq.s32.totalorder %s442, 0
      %s445 = sadd.s32 %s444, 1
      %s446 = scalar_select %p443, %s444, %s445
      %p449 = pneg %p443
      %p450 = scmp.eq.s32.totalorder %s58, 3
      %p451 = por %p449, %p450
      %p452 = scmp.ne.s32.totalorder %s444, %s447
      %p453 = scmp.eq.s32.totalorder %s58, 0
      %p454 = por %p452, %p453
      %p455 = scmp.ne.s32.totalorder %s444, %s447
      %p456 = scmp.eq.s32.totalorder %s63, 3
      %p457 = por %p455, %p456
      %p458 = scmp.ne.s32.totalorder %s447, %s448
      %p459 = scmp.eq.s32.totalorder %s63, 0
      %p460 = por %p458, %p459
      %p461 = scmp.ne.s32.totalorder %s447, %s448
      %p462 = scmp.eq.s32.totalorder %s64, 3
      %p463 = por %p461, %p462
      %p465 = scmp.ne.s32.totalorder %s448, %s464
      %p466 = scmp.eq.s32.totalorder %s64, 0
      %p467 = por %p465, %p466
      %s468 = ssub.s32 %s66, %s73
      %p469 = scmp.eq.s32.totalorder %s468, 0
      %s471 = sadd.s32 %s470, 1
      %s472 = scalar_select %p469, %s470, %s471
      %p475 = pneg %p469
      %p476 = scmp.eq.s32.totalorder %s58, 3
      %p477 = por %p475, %p476
      %p478 = scmp.ne.s32.totalorder %s470, %s473
      %p479 = scmp.eq.s32.totalorder %s58, 0
      %p480 = por %p478, %p479
      %p481 = scmp.ne.s32.totalorder %s470, %s473
      %p482 = scmp.eq.s32.totalorder %s63, 3
      %p483 = por %p481, %p482
      %p484 = scmp.ne.s32.totalorder %s473, %s474
      %p485 = scmp.eq.s32.totalorder %s63, 0
      %p486 = por %p484, %p485
      %p487 = scmp.ne.s32.totalorder %s473, %s474
      %p488 = scmp.eq.s32.totalorder %s64, 3
      %p489 = por %p487, %p488
      %p491 = scmp.ne.s32.totalorder %s474, %s490
      %p492 = scmp.eq.s32.totalorder %s64, 0
      %p493 = por %p491, %p492
      %s494 = ssub.s32 %s66, %s73
      %p495 = scmp.eq.s32.totalorder %s494, 0
      %s497 = sadd.s32 %s496, 1
      %s498 = scalar_select %p495, %s496, %s497
      %p501 = pneg %p495
      %p502 = scmp.eq.s32.totalorder %s58, 3
      %p503 = por %p501, %p502
      %p504 = scmp.ne.s32.totalorder %s496, %s499
      %p505 = scmp.eq.s32.totalorder %s58, 0
      %p506 = por %p504, %p505
      %p507 = scmp.ne.s32.totalorder %s496, %s499
      %p508 = scmp.eq.s32.totalorder %s63, 3
      %p509 = por %p507, %p508
      %p510 = scmp.ne.s32.totalorder %s499, %s500
      %p511 = scmp.eq.s32.totalorder %s63, 0
      %p512 = por %p510, %p511
      %p513 = scmp.ne.s32.totalorder %s499, %s500
      %p514 = scmp.eq.s32.totalorder %s64, 3
      %p515 = por %p513, %p514
      %p517 = scmp.ne.s32.totalorder %s500, %s516
      %p518 = scmp.eq.s32.totalorder %s64, 0
      %p519 = por %p517, %p518
      %s520 = ssub.s32 %s66, %s73
      %p521 = scmp.eq.s32.totalorder %s520, 0
      %s523 = sadd.s32 %s522, 1
      %s524 = scalar_select %p521, %s522, %s523
      %p527 = pneg %p521
      %p528 = scmp.eq.s32.totalorder %s58, 3
      %p529 = por %p527, %p528
      %p530 = scmp.ne.s32.totalorder %s522, %s525
      %p531 = scmp.eq.s32.totalorder %s58, 0
      %p532 = por %p530, %p531
      %p533 = scmp.ne.s32.totalorder %s522, %s525
      %p534 = scmp.eq.s32.totalorder %s63, 3
      %p535 = por %p533, %p534
      %p536 = scmp.ne.s32.totalorder %s525, %s526
      %p537 = scmp.eq.s32.totalorder %s63, 0
      %p538 = por %p536, %p537
      %p539 = scmp.ne.s32.totalorder %s525, %s526
      %p540 = scmp.eq.s32.totalorder %s64, 3
      %p541 = por %p539, %p540
      %p543 = scmp.ne.s32.totalorder %s526, %s542
      %p544 = scmp.eq.s32.totalorder %s64, 0
      %p545 = por %p543, %p544
      %s546 = ssub.s32 %s66, %s73
      %p547 = scmp.eq.s32.totalorder %s546, 0
      %s549 = sadd.s32 %s548, 1
      %s550 = scalar_select %p547, %s548, %s549
      %p553 = pneg %p547
      %p554 = scmp.eq.s32.totalorder %s58, 3
      %p555 = por %p553, %p554
      %p556 = scmp.ne.s32.totalorder %s548, %s551
      %p557 = scmp.eq.s32.totalorder %s58, 0
      %p558 = por %p556, %p557
      %p559 = scmp.ne.s32.totalorder %s548, %s551
      %p560 = scmp.eq.s32.totalorder %s63, 3
      %p561 = por %p559, %p560
      %p562 = scmp.ne.s32.totalorder %s551, %s552
      %p563 = scmp.eq.s32.totalorder %s63, 0
      %p564 = por %p562, %p563
      %p565 = scmp.ne.s32.totalorder %s551, %s552
      %p566 = scmp.eq.s32.totalorder %s64, 3
      %p567 = por %p565, %p566
      %p569 = scmp.ne.s32.totalorder %s552, %s568
      %p570 = scmp.eq.s32.totalorder %s64, 0
      %p571 = por %p569, %p570
      %s572 = ssub.s32 %s66, %s73
      %p573 = scmp.eq.s32.totalorder %s572, 0
      %s575 = sadd.s32 %s574, 1
      %s576 = scalar_select %p573, %s574, %s575
      %p579 = pneg %p573
      %p580 = scmp.eq.s32.totalorder %s58, 3
      %p581 = por %p579, %p580
      %p582 = scmp.ne.s32.totalorder %s574, %s577
      %p583 = scmp.eq.s32.totalorder %s58, 0
      %p584 = por %p582, %p583
      %p585 = scmp.ne.s32.totalorder %s574, %s577
      %p586 = scmp.eq.s32.totalorder %s63, 3
      %p587 = por %p585, %p586
      %p588 = scmp.ne.s32.totalorder %s577, %s578
      %p589 = scmp.eq.s32.totalorder %s63, 0
      %p590 = por %p588, %p589
      %p591 = scmp.ne.s32.totalorder %s577, %s578
      %p592 = scmp.eq.s32.totalorder %s64, 3
      %p593 = por %p591, %p592
      %p595 = scmp.ne.s32.totalorder %s578, %s594
      %p596 = scmp.eq.s32.totalorder %s64, 0
      %p597 = por %p595, %p596
      %s598 = ssub.s32 %s66, %s73
      %p599 = scmp.eq.s32.totalorder %s598, 0
      %s601 = sadd.s32 %s600, 1
      %s602 = scalar_select %p599, %s600, %s601
      %p605 = pneg %p599
      %p606 = scmp.eq.s32.totalorder %s58, 3
      %p607 = por %p605, %p606
      %p608 = scmp.ne.s32.totalorder %s600, %s603
      %p609 = scmp.eq.s32.totalorder %s58, 0
      %p610 = por %p608, %p609
      %p611 = scmp.ne.s32.totalorder %s600, %s603
      %p612 = scmp.eq.s32.totalorder %s63, 3
      %p613 = por %p611, %p612
      %p614 = scmp.ne.s32.totalorder %s603, %s604
      %p615 = scmp.eq.s32.totalorder %s63, 0
      %p616 = por %p614, %p615
      %p617 = scmp.ne.s32.totalorder %s603, %s604
      %p618 = scmp.eq.s32.totalorder %s64, 3
      %p619 = por %p617, %p618
      %p621 = scmp.ne.s32.totalorder %s604, %s620
      %p622 = scmp.eq.s32.totalorder %s64, 0
      %p623 = por %p621, %p622
      %s624 = ssub.s32 %s66, %s73
      %p625 = scmp.eq.s32.totalorder %s624, 0
      %s627 = sadd.s32 %s626, 1
      %s628 = scalar_select %p625, %s626, %s627
      %p631 = pneg %p625
      %p632 = scmp.eq.s32.totalorder %s58, 3
      %p633 = por %p631, %p632
      %p634 = scmp.ne.s32.totalorder %s626, %s629
      %p635 = scmp.eq.s32.totalorder %s58, 0
      %p636 = por %p634, %p635
      %p637 = scmp.ne.s32.totalorder %s626, %s629
      %p638 = scmp.eq.s32.totalorder %s63, 3
      %p639 = por %p637, %p638
      %p640 = scmp.ne.s32.totalorder %s629, %s630
      %p641 = scmp.eq.s32.totalorder %s63, 0
      %p642 = por %p640, %p641
      %p643 = scmp.ne.s32.totalorder %s629, %s630
      %p644 = scmp.eq.s32.totalorder %s64, 3
      %p645 = por %p643, %p644
      %p647 = scmp.ne.s32.totalorder %s630, %s646
      %p648 = scmp.eq.s32.totalorder %s64, 0
      %p649 = por %p647, %p648
      %s650 = ssub.s32 %s66, %s73
      %p651 = scmp.eq.s32.totalorder %s650, 0
      %s653 = sadd.s32 %s652, 1
      %s654 = scalar_select %p651, %s652, %s653
      %p657 = pneg %p651
      %p658 = scmp.eq.s32.totalorder %s58, 3
      %p659 = por %p657, %p658
      %p660 = scmp.ne.s32.totalorder %s652, %s655
      %p661 = scmp.eq.s32.totalorder %s58, 0
      %p662 = por %p660, %p661
      %p663 = scmp.ne.s32.totalorder %s652, %s655
      %p664 = scmp.eq.s32.totalorder %s63, 3
      %p665 = por %p663, %p664
      %p666 = scmp.ne.s32.totalorder %s655, %s656
      %p667 = scmp.eq.s32.totalorder %s63, 0
      %p668 = por %p666, %p667
      %p669 = scmp.ne.s32.totalorder %s655, %s656
      %p670 = scmp.eq.s32.totalorder %s64, 3
      %p671 = por %p669, %p670
      %p673 = scmp.ne.s32.totalorder %s656, %s672
      %p674 = scmp.eq.s32.totalorder %s64, 0
      %p675 = por %p673, %p674
      %s676 = ssub.s32 %s66, %s73
      %p677 = scmp.eq.s32.totalorder %s676, 0
      %s679 = sadd.s32 %s678, 1
      %s680 = scalar_select %p677, %s678, %s679
      %p683 = pneg %p677
      %p684 = scmp.eq.s32.totalorder %s58, 3
      %p685 = por %p683, %p684
      %p686 = scmp.ne.s32.totalorder %s678, %s681
      %p687 = scmp.eq.s32.totalorder %s58, 0
      %p688 = por %p686, %p687
      %p689 = scmp.ne.s32.totalorder %s678, %s681
      %p690 = scmp.eq.s32.totalorder %s63, 3
      %p691 = por %p689, %p690
      %p692 = scmp.ne.s32.totalorder %s681, %s682
      %p693 = scmp.eq.s32.totalorder %s63, 0
      %p694 = por %p692, %p693
      %p695 = scmp.ne.s32.totalorder %s681, %s682
      %p696 = scmp.eq.s32.totalorder %s64, 3
      %p697 = por %p695, %p696
      %p699 = scmp.ne.s32.totalorder %s682, %s698
      %p700 = scmp.eq.s32.totalorder %s64, 0
      %p701 = por %p699, %p700
      %s703 = sadd.s32 %s702, 1
      %p706 = scmp.eq.s32.totalorder %s58, 3
      %p707 = scmp.ne.s32.totalorder %s702, %s704
      %p708 = scmp.eq.s32.totalorder %s58, 0
      %p709 = por %p707, %p708
      %p710 = scmp.ne.s32.totalorder %s702, %s704
      %p711 = scmp.eq.s32.totalorder %s63, 3
      %p712 = por %p710, %p711
      %p713 = scmp.ne.s32.totalorder %s704, %s705
      %p714 = scmp.eq.s32.totalorder %s63, 0
      %p715 = por %p713, %p714
      %p716 = scmp.ne.s32.totalorder %s704, %s705
      %p717 = scmp.eq.s32.totalorder %s64, 3
      %p718 = por %p716, %p717
      %p720 = scmp.ne.s32.totalorder %s705, %s719
      %p721 = scmp.eq.s32.totalorder %s64, 0
      %p722 = por %p720, %p721
      %s724 = sadd.s32 %s723, 1
      %p727 = scmp.eq.s32.totalorder %s58, 3
      %p728 = scmp.ne.s32.totalorder %s723, %s725
      %p729 = scmp.eq.s32.totalorder %s58, 0
      %p730 = por %p728, %p729
      %p731 = scmp.ne.s32.totalorder %s723, %s725
      %p732 = scmp.eq.s32.totalorder %s63, 3
      %p733 = por %p731, %p732
      %p734 = scmp.ne.s32.totalorder %s725, %s726
      %p735 = scmp.eq.s32.totalorder %s63, 0
      %p736 = por %p734, %p735
      %p737 = scmp.ne.s32.totalorder %s725, %s726
      %p738 = scmp.eq.s32.totalorder %s64, 3
      %p739 = por %p737, %p738
      %p741 = scmp.ne.s32.totalorder %s726, %s740
      %p742 = scmp.eq.s32.totalorder %s64, 0
      %p743 = por %p741, %p742
      %s744 = ssub.s32 %s65, %s77
      %p745 = scmp.eq.s32.totalorder %s744, 0
      %s747 = sadd.s32 %s746, 1
      %s748 = scalar_select %p745, %s746, %s747
      %p751 = pneg %p745
      %p752 = scmp.eq.s32.totalorder %s58, 3
      %p753 = por %p751, %p752
      %p754 = scmp.ne.s32.totalorder %s746, %s749
      %p755 = scmp.eq.s32.totalorder %s58, 0
      %p756 = por %p754, %p755
      %p757 = scmp.ne.s32.totalorder %s746, %s749
      %p758 = scmp.eq.s32.totalorder %s63, 3
      %p759 = por %p757, %p758
      %p760 = scmp.ne.s32.totalorder %s749, %s750
      %p761 = scmp.eq.s32.totalorder %s63, 0
      %p762 = por %p760, %p761
      %p763 = scmp.ne.s32.totalorder %s749, %s750
      %p764 = scmp.eq.s32.totalorder %s64, 3
      %p765 = por %p763, %p764
      %p767 = scmp.ne.s32.totalorder %s750, %s766
      %p768 = scmp.eq.s32.totalorder %s64, 0
      %p769 = por %p767, %p768
      %s770 = ssub.s32 %s66, %s73
      %s771 = ssub.s32 %s65, %s77
      %s772 = sor.u32 %s770, %s771
      %p773 = scmp.eq.s32.totalorder %s772, 0
      %s775 = sadd.s32 %s774, 1
      %s776 = scalar_select %p773, %s774, %s775
      %p779 = pneg %p773
      %p780 = scmp.eq.s32.totalorder %s58, 3
      %p781 = por %p779, %p780
      %p782 = scmp.ne.s32.totalorder %s774, %s777
      %p783 = scmp.eq.s32.totalorder %s58, 0
      %p784 = por %p782, %p783
      %p785 = scmp.ne.s32.totalorder %s774, %s777
      %p786 = scmp.eq.s32.totalorder %s63, 3
      %p787 = por %p785, %p786
      %p788 = scmp.ne.s32.totalorder %s777, %s778
      %p789 = scmp.eq.s32.totalorder %s63, 0
      %p790 = por %p788, %p789
      %p791 = scmp.ne.s32.totalorder %s777, %s778
      %p792 = scmp.eq.s32.totalorder %s64, 3
      %p793 = por %p791, %p792
      %p795 = scmp.ne.s32.totalorder %s778, %s794
      %p796 = scmp.eq.s32.totalorder %s64, 0
      %p797 = por %p795, %p796
      %p798 = scmp.le.s32.totalorder 1, %s58
      %p799 = scmp.lt.s32.totalorder %s58, 5
      %p800 = pnand %p798, %p799
      %p801 = pneg %p800
      // Predicated region
      $region9: #{tpu_custom_call.1} parent=5 // pred_check
        _
      $region10: #{tpu_custom_call.1} parent=5 // pred_check_branch
        %803 = sbr.rel (%p800) target = $region12
      $region11: #{tpu_custom_call.1} parent=5 // pred_region
        %s804 = ssub.s32 %s58, 1
        // Predicated region
        $region13: #{tpu_custom_call.1} parent=11 // pred_check
          %p805 = pneg %p715
        $region14: #{tpu_custom_call.1} parent=11 // pred_check_branch
          %807 = sbr.rel (%p805) target = $region16
        $region15: #{tpu_custom_call.1} parent=11 // pred_region
          _
        $region16: #{tpu_custom_call.1} parent=11 // pred_fallthru
          _
        // Predicated region
        $region17: #{tpu_custom_call.1} parent=11 // pred_check
          %p808 = pneg %p736
        $region18: #{tpu_custom_call.1} parent=11 // pred_check_branch
          %810 = sbr.rel (%p808) target = $region20
        $region19: #{tpu_custom_call.1} parent=11 // pred_region
          _
        $region20: #{tpu_custom_call.1} parent=11 // pred_fallthru
          _
      $region12: #{tpu_custom_call.1} parent=5 // pred_fallthru
        _
      %p811 = scmp.lt.s32.totalorder %s58, 4
      // Predicated region
      $region21: #{tpu_custom_call.1} parent=5 // pred_check
        %p812 = pneg %p811
      $region22: #{tpu_custom_call.1} parent=5 // pred_check_branch
        %814 = sbr.rel (%p812) target = $region24
      $region23: #{tpu_custom_call.1} parent=5 // pred_region
        // Predicated region
        $region25: #{tpu_custom_call.1} parent=23 // pred_check
          %p815 = pneg %p90
        $region26: #{tpu_custom_call.1} parent=23 // pred_check_branch
          %817 = sbr.rel (%p815) target = $region28
        $region27: #{tpu_custom_call.1} parent=23 // pred_region
          %s818 = sand.u32 %s80, 1
          %s819 = scalar_lea.sflag [#allocation4], %s818
          %s820 = sand.u32 %s80, 1
          %s821 = smul.addr %s820, 8
          %s822 = scalar_lea.vmem [#allocation3], %s821
          %824 = vsyncadd %s819, 0
          %s825 = smul.addr %s65, 8
          %s826 = scalar_lea.hbm %s0, %s825
          %s828 = sshll.u32 %s826, 4
          %s829 = int_to_ptr.hbm [resolvable:$true] %s828
          %s830 = sshll.u32 %s822, 4
          %s831 = int_to_ptr.vmem [resolvable:$true] %s830
          %833 = dma.hbm_to_vmem [thread:$0]  %s829, 128, %s831, %s819
        $region28: #{tpu_custom_call.1} parent=23 // pred_fallthru
          _
        // Predicated region
        $region29: #{tpu_custom_call.1} parent=23 // pred_check
          %p834 = pneg %p116
        $region30: #{tpu_custom_call.1} parent=23 // pred_check_branch
          %836 = sbr.rel (%p834) target = $region32
        $region31: #{tpu_custom_call.1} parent=23 // pred_region
          %s837 = sand.u32 %s58, 1
          %s838 = scalar_lea.sflag [#allocation7], %s837
          %s839 = sand.u32 %s106, 1
          %s840 = smul.addr %s839, 8
          %s841 = scalar_lea.vmem [#allocation6], %s840
          %843 = vsyncadd %s838, 0
          %s844 = smul.addr %s65, 2
          %s845 = smul.addr %s844, 4
          %s846 = scalar_lea.hbm %s1, %s845
          %s847 = sshll.u32 %s846, 4
          %s848 = int_to_ptr.hbm [resolvable:$true] %s847
          %s849 = sshll.u32 %s841, 4
          %s850 = int_to_ptr.vmem [resolvable:$true] %s849
          %855 = dma.hbm_to_vmem [thread:$0]  %s848, 128, %s850, %s838, 64, 64, 4
        $region32: #{tpu_custom_call.1} parent=23 // pred_fallthru
          _
        // Predicated region
        $region33: #{tpu_custom_call.1} parent=23 // pred_check
          %p856 = pneg %p142
        $region34: #{tpu_custom_call.1} parent=23 // pred_check_branch
          %858 = sbr.rel (%p856) target = $region36
        $region35: #{tpu_custom_call.1} parent=23 // pred_region
          %s859 = sand.u32 %s58, 1
          %s860 = scalar_lea.sflag [#allocation7], %s859
          %s861 = sand.u32 %s132, 1
          %s862 = scalar_lea.vmem [#allocation8], %s861
          %864 = vsyncadd %s860, 0
          %s865 = scalar_lea.hbm %s2, %s65
          %s867 = sshll.u32 %s865, 4
          %s868 = int_to_ptr.hbm [resolvable:$true] %s867
          %s869 = sshll.u32 %s862, 4
          %s870 = int_to_ptr.vmem [resolvable:$true] %s869
          %872 = dma.hbm_to_vmem [thread:$0]  %s868, 16, %s870, %s860
        $region36: #{tpu_custom_call.1} parent=23 // pred_fallthru
          _
        // Predicated region
        $region37: #{tpu_custom_call.1} parent=23 // pred_check
          %p873 = pneg %p168
        $region38: #{tpu_custom_call.1} parent=23 // pred_check_branch
          %875 = sbr.rel (%p873) target = $region40
        $region39: #{tpu_custom_call.1} parent=23 // pred_region
          %s876 = sand.u32 %s58, 1
          %s877 = scalar_lea.sflag [#allocation10], %s876
          %s878 = sand.u32 %s158, 1
          %s879 = scalar_lea.vmem [#allocation9], %s878
          %881 = vsyncadd %s877, 0
          %s882 = scalar_lea.hbm %s3, %s65
          %s884 = sshll.u32 %s882, 4
          %s885 = int_to_ptr.hbm [resolvable:$true] %s884
          %s886 = sshll.u32 %s879, 4
          %s887 = int_to_ptr.vmem [resolvable:$true] %s886
          %889 = dma.hbm_to_vmem [thread:$0]  %s885, 16, %s887, %s877
        $region40: #{tpu_custom_call.1} parent=23 // pred_fallthru
          _
        // Predicated region
        $region41: #{tpu_custom_call.1} parent=23 // pred_check
          %p890 = pneg %p194
        $region42: #{tpu_custom_call.1} parent=23 // pred_check_branch
          %892 = sbr.rel (%p890) target = $region44
        $region43: #{tpu_custom_call.1} parent=23 // pred_region
          %p893 = scmp.lt.s32.totalorder %s66, 1
          %s894 = scalar_select %p893, %s66, 1
          %s895 = scalar_lea.vmem %s4, %s894
        $region44: #{tpu_custom_call.1} parent=23 // pred_fallthru
          _
        // Predicated region
        $region45: #{tpu_custom_call.1} parent=23 // pred_check
          %p896 = pneg %p220
        $region46: #{tpu_custom_call.1} parent=23 // pred_check_branch
          %898 = sbr.rel (%p896) target = $region48
        $region47: #{tpu_custom_call.1} parent=23 // pred_region
          %s899 = sand.u32 %s58, 1
          %s900 = scalar_lea.sflag [#allocation10], %s899
          %s901 = sand.u32 %s210, 1
          %s902 = scalar_lea.vmem [#allocation11], %s901
          %904 = vsyncadd %s900, 0
          %s905 = scalar_lea.hbm %s5, %s66
          %s907 = sshll.u32 %s905, 4
          %s908 = int_to_ptr.hbm [resolvable:$true] %s907
          %s909 = sshll.u32 %s902, 4
          %s910 = int_to_ptr.vmem [resolvable:$true] %s909
          %912 = dma.hbm_to_vmem [thread:$0]  %s908, 16, %s910, %s900
        $region48: #{tpu_custom_call.1} parent=23 // pred_fallthru
          _
        // Predicated region
        $region49: #{tpu_custom_call.1} parent=23 // pred_check
          %p913 = pneg %p246
        $region50: #{tpu_custom_call.1} parent=23 // pred_check_branch
          %915 = sbr.rel (%p913) target = $region52
        $region51: #{tpu_custom_call.1} parent=23 // pred_region
          %p916 = scmp.lt.s32.totalorder %s66, 1
          %s917 = scalar_select %p916, %s66, 1
          %s918 = smul.addr %s917, 4
          %s919 = smul.addr %s918, 4
          %s920 = scalar_lea.vmem %s6, %s919
        $region52: #{tpu_custom_call.1} parent=23 // pred_fallthru
          _
        // Predicated region
        $region53: #{tpu_custom_call.1} parent=23 // pred_check
          %p921 = pneg %p272
        $region54: #{tpu_custom_call.1} parent=23 // pred_check_branch
          %923 = sbr.rel (%p921) target = $region56
        $region55: #{tpu_custom_call.1} parent=23 // pred_region
          %p924 = scmp.lt.s32.totalorder %s66, 1
          %s925 = scalar_select %p924, %s66, 1
          %s926 = scalar_lea.vmem %s7, %s925
        $region56: #{tpu_custom_call.1} parent=23 // pred_fallthru
          _
        // Predicated region
        $region57: #{tpu_custom_call.1} parent=23 // pred_check
          %p927 = pneg %p298
        $region58: #{tpu_custom_call.1} parent=23 // pred_check_branch
          %929 = sbr.rel (%p927) target = $region60
        $region59: #{tpu_custom_call.1} parent=23 // pred_region
          %p930 = scmp.lt.s32.totalorder %s66, 1
          %s931 = scalar_select %p930, %s66, 1
          %s932 = smul.addr %s931, 4
          %s933 = smul.addr %s932, 4
          %s934 = scalar_lea.vmem %s8, %s933
        $region60: #{tpu_custom_call.1} parent=23 // pred_fallthru
          _
        // Predicated region
        $region61: #{tpu_custom_call.1} parent=23 // pred_check
          %p935 = pneg %p324
        $region62: #{tpu_custom_call.1} parent=23 // pred_check_branch
          %937 = sbr.rel (%p935) target = $region64
        $region63: #{tpu_custom_call.1} parent=23 // pred_region
          %p938 = scmp.lt.s32.totalorder %s66, 1
          %s939 = scalar_select %p938, %s66, 1
          %s940 = scalar_lea.vmem %s9, %s939
        $region64: #{tpu_custom_call.1} parent=23 // pred_fallthru
          _
        // Predicated region
        $region65: #{tpu_custom_call.1} parent=23 // pred_check
          %p941 = pneg %p350
        $region66: #{tpu_custom_call.1} parent=23 // pred_check_branch
          %943 = sbr.rel (%p941) target = $region68
        $region67: #{tpu_custom_call.1} parent=23 // pred_region
          %p944 = scmp.lt.s32.totalorder %s66, 1
          %s945 = scalar_select %p944, %s66, 1
          %s946 = scalar_lea.vmem %s10, %s945
        $region68: #{tpu_custom_call.1} parent=23 // pred_fallthru
          _
        // Predicated region
        $region69: #{tpu_custom_call.1} parent=23 // pred_check
          %p947 = pneg %p376
        $region70: #{tpu_custom_call.1} parent=23 // pred_check_branch
          %949 = sbr.rel (%p947) target = $region72
        $region71: #{tpu_custom_call.1} parent=23 // pred_region
          %s950 = sand.u32 %s58, 1
          %s951 = scalar_lea.sflag [#allocation13], %s950
          %s952 = sand.u32 %s366, 1
          %s953 = scalar_lea.vmem [#allocation12], %s952
          %955 = vsyncadd %s951, 0
          %s956 = scalar_lea.hbm %s11, %s66
          %s958 = sshll.u32 %s956, 4
          %s959 = int_to_ptr.hbm [resolvable:$true] %s958
          %s960 = sshll.u32 %s953, 4
          %s961 = int_to_ptr.vmem [resolvable:$true] %s960
          %963 = dma.hbm_to_vmem [thread:$0]  %s959, 16, %s961, %s951
        $region72: #{tpu_custom_call.1} parent=23 // pred_fallthru
          _
        // Predicated region
        $region73: #{tpu_custom_call.1} parent=23 // pred_check
          %p964 = pneg %p402
        $region74: #{tpu_custom_call.1} parent=23 // pred_check_branch
          %966 = sbr.rel (%p964) target = $region76
        $region75: #{tpu_custom_call.1} parent=23 // pred_region
          %p967 = scmp.lt.s32.totalorder %s66, 1
          %s968 = scalar_select %p967, %s66, 1
          %s969 = smul.addr %s968, 4
          %s970 = smul.addr %s969, 4
          %s971 = scalar_lea.vmem %s12, %s970
        $region76: #{tpu_custom_call.1} parent=23 // pred_fallthru
          _
        // Predicated region
        $region77: #{tpu_custom_call.1} parent=23 // pred_check
          %p972 = pneg %p428
        $region78: #{tpu_custom_call.1} parent=23 // pred_check_branch
          %974 = sbr.rel (%p972) target = $region80
        $region79: #{tpu_custom_call.1} parent=23 // pred_region
          %p975 = scmp.lt.s32.totalorder %s66, 1
          %s976 = scalar_select %p975, %s66, 1
          %s977 = scalar_lea.vmem %s13, %s976
        $region80: #{tpu_custom_call.1} parent=23 // pred_fallthru
          _
        // Predicated region
        $region81: #{tpu_custom_call.1} parent=23 // pred_check
          %p978 = pneg %p454
        $region82: #{tpu_custom_call.1} parent=23 // pred_check_branch
          %980 = sbr.rel (%p978) target = $region84
        $region83: #{tpu_custom_call.1} parent=23 // pred_region
          %s981 = sand.u32 %s58, 1
          %s982 = scalar_lea.sflag [#allocation13], %s981
          %s983 = sand.u32 %s444, 1
          %s984 = smul.addr %s983, 16
          %s985 = scalar_lea.vmem [#allocation14], %s984
          %987 = vsyncadd %s982, 0
          %s988 = smul.addr %s66, 4
          %s989 = smul.addr %s988, 4
          %s990 = scalar_lea.hbm %s14, %s989
          %s991 = sshll.u32 %s990, 4
          %s992 = int_to_ptr.hbm [resolvable:$true] %s991
          %s993 = sshll.u32 %s985, 4
          %s994 = int_to_ptr.vmem [resolvable:$true] %s993
          %999 = dma.hbm_to_vmem [thread:$0]  %s992, 256, %s994, %s982, 64, 64, 4
        $region84: #{tpu_custom_call.1} parent=23 // pred_fallthru
          _
        // Predicated region
        $region85: #{tpu_custom_call.1} parent=23 // pred_check
          %p1000 = pneg %p480
        $region86: #{tpu_custom_call.1} parent=23 // pred_check_branch
          %1002 = sbr.rel (%p1000) target = $region88
        $region87: #{tpu_custom_call.1} parent=23 // pred_region
          %p1003 = scmp.lt.s32.totalorder %s66, 1
          %s1004 = scalar_select %p1003, %s66, 1
          %s1005 = scalar_lea.vmem %s15, %s1004
        $region88: #{tpu_custom_call.1} parent=23 // pred_fallthru
          _
        // Predicated region
        $region89: #{tpu_custom_call.1} parent=23 // pred_check
          %p1006 = pneg %p506
        $region90: #{tpu_custom_call.1} parent=23 // pred_check_branch
          %1008 = sbr.rel (%p1006) target = $region92
        $region91: #{tpu_custom_call.1} parent=23 // pred_region
          %s1009 = sand.u32 %s58, 1
          %s1010 = scalar_lea.sflag [#allocation16], %s1009
          %s1011 = sand.u32 %s496, 1
          %s1012 = smul.addr %s1011, 16
          %s1013 = scalar_lea.vmem [#allocation15], %s1012
          %1015 = vsyncadd %s1010, 0
          %s1016 = smul.addr %s66, 4
          %s1017 = smul.addr %s1016, 4
          %s1018 = scalar_lea.hbm %s16, %s1017
          %s1019 = sshll.u32 %s1018, 4
          %s1020 = int_to_ptr.hbm [resolvable:$true] %s1019
          %s1021 = sshll.u32 %s1013, 4
          %s1022 = int_to_ptr.vmem [resolvable:$true] %s1021
          %1027 = dma.hbm_to_vmem [thread:$0]  %s1020, 256, %s1022, %s1010, 64, 64, 4
        $region92: #{tpu_custom_call.1} parent=23 // pred_fallthru
          _
        // Predicated region
        $region93: #{tpu_custom_call.1} parent=23 // pred_check
          %p1028 = pneg %p532
        $region94: #{tpu_custom_call.1} parent=23 // pred_check_branch
          %1030 = sbr.rel (%p1028) target = $region96
        $region95: #{tpu_custom_call.1} parent=23 // pred_region
          %p1031 = scmp.lt.s32.totalorder %s66, 1
          %s1032 = scalar_select %p1031, %s66, 1
          %s1033 = scalar_lea.vmem %s17, %s1032
        $region96: #{tpu_custom_call.1} parent=23 // pred_fallthru
          _
        // Predicated region
        $region97: #{tpu_custom_call.1} parent=23 // pred_check
          %p1034 = pneg %p558
        $region98: #{tpu_custom_call.1} parent=23 // pred_check_branch
          %1036 = sbr.rel (%p1034) target = $region100
        $region99: #{tpu_custom_call.1} parent=23 // pred_region
          %p1037 = scmp.lt.s32.totalorder %s66, 1
          %s1038 = scalar_select %p1037, %s66, 1
          %s1039 = scalar_lea.vmem %s18, %s1038
        $region100: #{tpu_custom_call.1} parent=23 // pred_fallthru
          _
        // Predicated region
        $region101: #{tpu_custom_call.1} parent=23 // pred_check
          %p1040 = pneg %p584
        $region102: #{tpu_custom_call.1} parent=23 // pred_check_branch
          %1042 = sbr.rel (%p1040) target = $region104
        $region103: #{tpu_custom_call.1} parent=23 // pred_region
          %s1043 = sand.u32 %s58, 1
          %s1044 = scalar_lea.sflag [#allocation16], %s1043
          %s1045 = sand.u32 %s574, 1
          %s1046 = scalar_lea.vmem [#allocation17], %s1045
          %1048 = vsyncadd %s1044, 0
          %s1049 = scalar_lea.hbm %s19, %s66
          %s1051 = sshll.u32 %s1049, 4
          %s1052 = int_to_ptr.hbm [resolvable:$true] %s1051
          %s1053 = sshll.u32 %s1046, 4
          %s1054 = int_to_ptr.vmem [resolvable:$true] %s1053
          %1056 = dma.hbm_to_vmem [thread:$0]  %s1052, 16, %s1054, %s1044
        $region104: #{tpu_custom_call.1} parent=23 // pred_fallthru
          _
        // Predicated region
        $region105: #{tpu_custom_call.1} parent=23 // pred_check
          %p1057 = pneg %p610
        $region106: #{tpu_custom_call.1} parent=23 // pred_check_branch
          %1059 = sbr.rel (%p1057) target = $region108
        $region107: #{tpu_custom_call.1} parent=23 // pred_region
          %s1060 = sand.u32 %s600, 1
          %s1061 = scalar_lea.sflag [#allocation19], %s1060
          %s1062 = sand.u32 %s600, 1
          %s1063 = smul.addr %s1062, 16
          %s1064 = scalar_lea.vmem [#allocation18], %s1063
          %1066 = vsyncadd %s1061, 0
          %s1067 = smul.addr %s66, 4
          %s1068 = smul.addr %s1067, 4
          %s1069 = scalar_lea.hbm %s20, %s1068
          %s1070 = sshll.u32 %s1069, 4
          %s1071 = int_to_ptr.hbm [resolvable:$true] %s1070
          %s1072 = sshll.u32 %s1064, 4
          %s1073 = int_to_ptr.vmem [resolvable:$true] %s1072
          %1078 = dma.hbm_to_vmem [thread:$0]  %s1071, 256, %s1073, %s1061, 64, 64, 4
        $region108: #{tpu_custom_call.1} parent=23 // pred_fallthru
          _
        // Predicated region
        $region109: #{tpu_custom_call.1} parent=23 // pred_check
          %p1079 = pneg %p636
        $region110: #{tpu_custom_call.1} parent=23 // pred_check_branch
          %1081 = sbr.rel (%p1079) target = $region112
        $region111: #{tpu_custom_call.1} parent=23 // pred_region
          %p1082 = scmp.lt.s32.totalorder %s66, 1
          %s1083 = scalar_select %p1082, %s66, 1
          %s1084 = scalar_lea.vmem %s21, %s1083
        $region112: #{tpu_custom_call.1} parent=23 // pred_fallthru
          _
        // Predicated region
        $region113: #{tpu_custom_call.1} parent=23 // pred_check
          %p1085 = pneg %p662
        $region114: #{tpu_custom_call.1} parent=23 // pred_check_branch
          %1087 = sbr.rel (%p1085) target = $region116
        $region115: #{tpu_custom_call.1} parent=23 // pred_region
          %p1088 = scmp.lt.s32.totalorder %s66, 1
          %s1089 = scalar_select %p1088, %s66, 1
          %s1090 = smul.addr %s1089, 8
          %s1091 = smul.addr %s1090, 4
          %s1092 = scalar_lea.vmem %s22, %s1091
        $region116: #{tpu_custom_call.1} parent=23 // pred_fallthru
          _
        // Predicated region
        $region117: #{tpu_custom_call.1} parent=23 // pred_check
          %p1093 = pneg %p688
        $region118: #{tpu_custom_call.1} parent=23 // pred_check_branch
          %1095 = sbr.rel (%p1093) target = $region120
        $region119: #{tpu_custom_call.1} parent=23 // pred_region
          %p1096 = scmp.lt.s32.totalorder %s66, 1
          %s1097 = scalar_select %p1096, %s66, 1
          %s1098 = scalar_lea.vmem %s23, %s1097
        $region120: #{tpu_custom_call.1} parent=23 // pred_fallthru
          _
      $region24: #{tpu_custom_call.1} parent=5 // pred_fallthru
        _
      %p1099 = scmp.le.s32.totalorder 1, %s58
      %p1100 = scmp.lt.s32.totalorder %s58, 5
      %p1101 = pnand %p1099, %p1100
      %p1102 = pneg %p1101
      // Predicated region
      $region121: #{tpu_custom_call.1} parent=5 // pred_check
        _
      $region122: #{tpu_custom_call.1} parent=5 // pred_check_branch
        %1104 = sbr.rel (%p1101) target = $region124
      $region123: #{tpu_custom_call.1} parent=5 // pred_region
        %s1105 = ssub.s32 %s58, 1
        %s1106 = sand.u32 %s83, 1
        %s1107 = scalar_lea.sflag [#allocation4], %s1106
        %s1108 = sand.u32 %s83, 1
        %s1109 = smul.addr %s1108, 8
        %s1110 = scalar_lea.vmem [#allocation3], %s1109
        // Predicated region
        $region125: #{tpu_custom_call.1} parent=123 // pred_check
          %p1111 = pneg %p96
        $region126: #{tpu_custom_call.1} parent=123 // pred_check_branch
          %1113 = sbr.rel (%p1111) target = $region128
        $region127: #{tpu_custom_call.1} parent=123 // pred_region
          %1115 = dma.done %s1107, 128
        $region128: #{tpu_custom_call.1} parent=123 // pred_fallthru
          _
        %s1116 = sand.u32 %s63, 1
        %s1117 = scalar_lea.sflag [#allocation7], %s1116
        %s1118 = sand.u32 %s109, 1
        %s1119 = smul.addr %s1118, 8
        %s1120 = scalar_lea.vmem [#allocation6], %s1119
        // Predicated region
        $region129: #{tpu_custom_call.1} parent=123 // pred_check
          %p1121 = pneg %p122
        $region130: #{tpu_custom_call.1} parent=123 // pred_check_branch
          %1123 = sbr.rel (%p1121) target = $region132
        $region131: #{tpu_custom_call.1} parent=123 // pred_region
          %1125 = dma.done %s1117, 128
        $region132: #{tpu_custom_call.1} parent=123 // pred_fallthru
          _
        %s1126 = sand.u32 %s63, 1
        %s1127 = scalar_lea.sflag [#allocation7], %s1126
        %s1128 = sand.u32 %s135, 1
        %s1129 = scalar_lea.vmem [#allocation8], %s1128
        // Predicated region
        $region133: #{tpu_custom_call.1} parent=123 // pred_check
          %p1130 = pneg %p148
        $region134: #{tpu_custom_call.1} parent=123 // pred_check_branch
          %1132 = sbr.rel (%p1130) target = $region136
        $region135: #{tpu_custom_call.1} parent=123 // pred_region
          %1134 = dma.done %s1127, 16
        $region136: #{tpu_custom_call.1} parent=123 // pred_fallthru
          _
        %s1135 = sand.u32 %s63, 1
        %s1136 = scalar_lea.sflag [#allocation10], %s1135
        %s1137 = sand.u32 %s161, 1
        %s1138 = scalar_lea.vmem [#allocation9], %s1137
        // Predicated region
        $region137: #{tpu_custom_call.1} parent=123 // pred_check
          %p1139 = pneg %p174
        $region138: #{tpu_custom_call.1} parent=123 // pred_check_branch
          %1141 = sbr.rel (%p1139) target = $region140
        $region139: #{tpu_custom_call.1} parent=123 // pred_region
          %1143 = dma.done %s1136, 16
        $region140: #{tpu_custom_call.1} parent=123 // pred_fallthru
          _
        %s1144 = sand.u32 %s63, 1
        %s1145 = scalar_lea.sflag [#allocation10], %s1144
        %s1146 = sand.u32 %s213, 1
        %s1147 = scalar_lea.vmem [#allocation11], %s1146
        // Predicated region
        $region141: #{tpu_custom_call.1} parent=123 // pred_check
          %p1148 = pneg %p226
        $region142: #{tpu_custom_call.1} parent=123 // pred_check_branch
          %1150 = sbr.rel (%p1148) target = $region144
        $region143: #{tpu_custom_call.1} parent=123 // pred_region
          %1152 = dma.done %s1145, 16
        $region144: #{tpu_custom_call.1} parent=123 // pred_fallthru
          _
        %s1153 = sand.u32 %s63, 1
        %s1154 = scalar_lea.sflag [#allocation13], %s1153
        %s1155 = sand.u32 %s369, 1
        %s1156 = scalar_lea.vmem [#allocation12], %s1155
        // Predicated region
        $region145: #{tpu_custom_call.1} parent=123 // pred_check
          %p1157 = pneg %p382
        $region146: #{tpu_custom_call.1} parent=123 // pred_check_branch
          %1159 = sbr.rel (%p1157) target = $region148
        $region147: #{tpu_custom_call.1} parent=123 // pred_region
          %1161 = dma.done %s1154, 16
        $region148: #{tpu_custom_call.1} parent=123 // pred_fallthru
          _
        %s1162 = sand.u32 %s63, 1
        %s1163 = scalar_lea.sflag [#allocation13], %s1162
        %s1164 = sand.u32 %s447, 1
        %s1165 = smul.addr %s1164, 16
        %s1166 = scalar_lea.vmem [#allocation14], %s1165
        // Predicated region
        $region149: #{tpu_custom_call.1} parent=123 // pred_check
          %p1167 = pneg %p460
        $region150: #{tpu_custom_call.1} parent=123 // pred_check_branch
          %1169 = sbr.rel (%p1167) target = $region152
        $region151: #{tpu_custom_call.1} parent=123 // pred_region
          %1171 = dma.done %s1163, 256
        $region152: #{tpu_custom_call.1} parent=123 // pred_fallthru
          _
        %s1172 = sand.u32 %s63, 1
        %s1173 = scalar_lea.sflag [#allocation16], %s1172
        %s1174 = sand.u32 %s499, 1
        %s1175 = smul.addr %s1174, 16
        %s1176 = scalar_lea.vmem [#allocation15], %s1175
        // Predicated region
        $region153: #{tpu_custom_call.1} parent=123 // pred_check
          %p1177 = pneg %p512
        $region154: #{tpu_custom_call.1} parent=123 // pred_check_branch
          %1179 = sbr.rel (%p1177) target = $region156
        $region155: #{tpu_custom_call.1} parent=123 // pred_region
          %1181 = dma.done %s1173, 256
        $region156: #{tpu_custom_call.1} parent=123 // pred_fallthru
          _
        %s1182 = sand.u32 %s63, 1
        %s1183 = scalar_lea.sflag [#allocation16], %s1182
        %s1184 = sand.u32 %s577, 1
        %s1185 = scalar_lea.vmem [#allocation17], %s1184
        // Predicated region
        $region157: #{tpu_custom_call.1} parent=123 // pred_check
          %p1186 = pneg %p590
        $region158: #{tpu_custom_call.1} parent=123 // pred_check_branch
          %1188 = sbr.rel (%p1186) target = $region160
        $region159: #{tpu_custom_call.1} parent=123 // pred_region
          %1190 = dma.done %s1183, 16
        $region160: #{tpu_custom_call.1} parent=123 // pred_fallthru
          _
        %s1191 = sand.u32 %s603, 1
        %s1192 = scalar_lea.sflag [#allocation19], %s1191
        %s1193 = sand.u32 %s603, 1
        %s1194 = smul.addr %s1193, 16
        %s1195 = scalar_lea.vmem [#allocation18], %s1194
        // Predicated region
        $region161: #{tpu_custom_call.1} parent=123 // pred_check
          %p1196 = pneg %p616
        $region162: #{tpu_custom_call.1} parent=123 // pred_check_branch
          %1198 = sbr.rel (%p1196) target = $region164
        $region163: #{tpu_custom_call.1} parent=123 // pred_region
          %1200 = dma.done %s1192, 256
        $region164: #{tpu_custom_call.1} parent=123 // pred_fallthru
          _
        %s1201 = sand.u32 %s83, 1
        %s1202 = scalar_lea.sflag [#allocation4], %s1201
        %s1203 = sand.u32 %s83, 1
        %s1204 = smul.addr %s1203, 8
        %s1205 = scalar_lea.vmem [#allocation3], %s1204
        %p1206 = pneg %p96
        %p1207 = pneg %p93
        %s1208 = sand.u32 %s63, 1
        %s1209 = scalar_lea.sflag [#allocation7], %s1208
        %s1210 = sand.u32 %s109, 1
        %s1211 = smul.addr %s1210, 8
        %s1212 = scalar_lea.vmem [#allocation6], %s1211
        %p1213 = pneg %p122
        %p1214 = pneg %p119
        %s1215 = sand.u32 %s63, 1
        %s1216 = scalar_lea.sflag [#allocation7], %s1215
        %s1217 = sand.u32 %s135, 1
        %s1218 = scalar_lea.vmem [#allocation8], %s1217
        %p1219 = pneg %p148
        %p1220 = pneg %p145
        %s1221 = sand.u32 %s63, 1
        %s1222 = scalar_lea.sflag [#allocation10], %s1221
        %s1223 = sand.u32 %s161, 1
        %s1224 = scalar_lea.vmem [#allocation9], %s1223
        %p1225 = pneg %p174
        %p1226 = pneg %p171
        %p1227 = scmp.lt.s32.totalorder %s68, 1
        %s1228 = scalar_select %p1227, %s68, 1
        %s1229 = scalar_lea.vmem %s4, %s1228
        %p1230 = pneg %p200
        %p1231 = pneg %p197
        %s1232 = sand.u32 %s63, 1
        %s1233 = scalar_lea.sflag [#allocation10], %s1232
        %s1234 = sand.u32 %s213, 1
        %s1235 = scalar_lea.vmem [#allocation11], %s1234
        %p1236 = pneg %p226
        %p1237 = pneg %p223
        %p1238 = scmp.lt.s32.totalorder %s68, 1
        %s1239 = scalar_select %p1238, %s68, 1
        %s1240 = smul.addr %s1239, 4
        %s1241 = smul.addr %s1240, 4
        %s1242 = scalar_lea.vmem %s6, %s1241
        %p1243 = pneg %p252
        %p1244 = pneg %p249
        %p1245 = scmp.lt.s32.totalorder %s68, 1
        %s1246 = scalar_select %p1245, %s68, 1
        %s1247 = scalar_lea.vmem %s7, %s1246
        %p1248 = pneg %p278
        %p1249 = pneg %p275
        %p1250 = scmp.lt.s32.totalorder %s68, 1
        %s1251 = scalar_select %p1250, %s68, 1
        %s1252 = smul.addr %s1251, 4
        %s1253 = smul.addr %s1252, 4
        %s1254 = scalar_lea.vmem %s8, %s1253
        %p1255 = pneg %p304
        %p1256 = pneg %p301
        %p1257 = scmp.lt.s32.totalorder %s68, 1
        %s1258 = scalar_select %p1257, %s68, 1
        %s1259 = scalar_lea.vmem %s9, %s1258
        %p1260 = pneg %p330
        %p1261 = pneg %p327
        %p1262 = scmp.lt.s32.totalorder %s68, 1
        %s1263 = scalar_select %p1262, %s68, 1
        %s1264 = scalar_lea.vmem %s10, %s1263
        %p1265 = pneg %p356
        %p1266 = pneg %p353
        %s1267 = sand.u32 %s63, 1
        %s1268 = scalar_lea.sflag [#allocation13], %s1267
        %s1269 = sand.u32 %s369, 1
        %s1270 = scalar_lea.vmem [#allocation12], %s1269
        %p1271 = pneg %p382
        %p1272 = pneg %p379
        %p1273 = scmp.lt.s32.totalorder %s68, 1
        %s1274 = scalar_select %p1273, %s68, 1
        %s1275 = smul.addr %s1274, 4
        %s1276 = smul.addr %s1275, 4
        %s1277 = scalar_lea.vmem %s12, %s1276
        %p1278 = pneg %p408
        %p1279 = pneg %p405
        %p1280 = scmp.lt.s32.totalorder %s68, 1
        %s1281 = scalar_select %p1280, %s68, 1
        %s1282 = scalar_lea.vmem %s13, %s1281
        %p1283 = pneg %p434
        %p1284 = pneg %p431
        %s1285 = sand.u32 %s63, 1
        %s1286 = scalar_lea.sflag [#allocation13], %s1285
        %s1287 = sand.u32 %s447, 1
        %s1288 = smul.addr %s1287, 16
        %s1289 = scalar_lea.vmem [#allocation14], %s1288
        %p1290 = pneg %p460
        %p1291 = pneg %p457
        %p1292 = scmp.lt.s32.totalorder %s68, 1
        %s1293 = scalar_select %p1292, %s68, 1
        %s1294 = scalar_lea.vmem %s15, %s1293
        %p1295 = pneg %p486
        %p1296 = pneg %p483
        %s1297 = sand.u32 %s63, 1
        %s1298 = scalar_lea.sflag [#allocation16], %s1297
        %s1299 = sand.u32 %s499, 1
        %s1300 = smul.addr %s1299, 16
        %s1301 = scalar_lea.vmem [#allocation15], %s1300
        %p1302 = pneg %p512
        %p1303 = pneg %p509
        %p1304 = scmp.lt.s32.totalorder %s68, 1
        %s1305 = scalar_select %p1304, %s68, 1
        %s1306 = scalar_lea.vmem %s17, %s1305
        %p1307 = pneg %p538
        %p1308 = pneg %p535
        %p1309 = scmp.lt.s32.totalorder %s68, 1
        %s1310 = scalar_select %p1309, %s68, 1
        %s1311 = scalar_lea.vmem %s18, %s1310
        %p1312 = pneg %p564
        %p1313 = pneg %p561
        %s1314 = sand.u32 %s63, 1
        %s1315 = scalar_lea.sflag [#allocation16], %s1314
        %s1316 = sand.u32 %s577, 1
        %s1317 = scalar_lea.vmem [#allocation17], %s1316
        %p1318 = pneg %p590
        %p1319 = pneg %p587
        %s1320 = sand.u32 %s603, 1
        %s1321 = scalar_lea.sflag [#allocation19], %s1320
        %s1322 = sand.u32 %s603, 1
        %s1323 = smul.addr %s1322, 16
        %s1324 = scalar_lea.vmem [#allocation18], %s1323
        %p1325 = pneg %p616
        %p1326 = pneg %p613
        %p1327 = scmp.lt.s32.totalorder %s68, 1
        %s1328 = scalar_select %p1327, %s68, 1
        %s1329 = scalar_lea.vmem %s21, %s1328
        %p1330 = pneg %p642
        %p1331 = pneg %p639
        %p1332 = scmp.lt.s32.totalorder %s68, 1
        %s1333 = scalar_select %p1332, %s68, 1
        %s1334 = smul.addr %s1333, 8
        %s1335 = smul.addr %s1334, 4
        %s1336 = scalar_lea.vmem %s22, %s1335
        %p1337 = pneg %p668
        %p1338 = pneg %p665
        %p1339 = scmp.lt.s32.totalorder %s68, 1
        %s1340 = scalar_select %p1339, %s68, 1
        %s1341 = scalar_lea.vmem %s23, %s1340
        %p1342 = pneg %p694
        %p1343 = pneg %p691
        %p1344 = pneg %p715
        %p1345 = pneg %p712
        %p1346 = pneg %p736
        %p1347 = pneg %p733
        %p1348 = pneg %p762
        %p1349 = pneg %p759
        %s1350 = sand.u32 %s749, 1
        %s1351 = scalar_lea.sflag [#allocation5], %s1350
        %s1352 = sand.u32 %s749, 1
        %s1353 = smul.addr %s1352, 8
        %s1354 = scalar_lea.vmem [#allocation20], %s1353
        %p1355 = pneg %p790
        %p1356 = pneg %p787
        %s1357 = sand.u32 %s777, 1
        %s1358 = scalar_lea.sflag [#allocation22], %s1357
        %s1359 = sand.u32 %s777, 1
        %s1360 = smul.addr %s1359, 8
        %s1361 = scalar_lea.vmem [#allocation21], %s1360
        %p1362 = scmp.lt.s32.totalorder %s68, 1
        %s1363 = scalar_select %p1362, %s68, 1
        %s1364 = scalar_lea.vmem %s4, %s1363
        %p1365 = scmp.lt.s32.totalorder %s68, 1
        %s1366 = scalar_select %p1365, %s68, 1
        %s1367 = smul.addr %s1366, 4
        %s1368 = smul.addr %s1367, 4
        %s1369 = scalar_lea.vmem %s6, %s1368
        %p1370 = scmp.lt.s32.totalorder %s68, 1
        %s1371 = scalar_select %p1370, %s68, 1
        %s1372 = scalar_lea.vmem %s7, %s1371
        %p1373 = scmp.lt.s32.totalorder %s68, 1
        %s1374 = scalar_select %p1373, %s68, 1
        %s1375 = smul.addr %s1374, 4
        %s1376 = smul.addr %s1375, 4
        %s1377 = scalar_lea.vmem %s8, %s1376
        %p1378 = scmp.lt.s32.totalorder %s68, 1
        %s1379 = scalar_select %p1378, %s68, 1
        %s1380 = scalar_lea.vmem %s9, %s1379
        %p1381 = scmp.lt.s32.totalorder %s68, 1
        %s1382 = scalar_select %p1381, %s68, 1
        %s1383 = scalar_lea.vmem %s10, %s1382
        %p1384 = scmp.lt.s32.totalorder %s68, 1
        %s1385 = scalar_select %p1384, %s68, 1
        %s1386 = smul.addr %s1385, 4
        %s1387 = smul.addr %s1386, 4
        %s1388 = scalar_lea.vmem %s12, %s1387
        %p1389 = scmp.lt.s32.totalorder %s68, 1
        %s1390 = scalar_select %p1389, %s68, 1
        %s1391 = scalar_lea.vmem %s13, %s1390
        %p1392 = scmp.lt.s32.totalorder %s68, 1
        %s1393 = scalar_select %p1392, %s68, 1
        %s1394 = scalar_lea.vmem %s15, %s1393
        %p1395 = scmp.lt.s32.totalorder %s68, 1
        %s1396 = scalar_select %p1395, %s68, 1
        %s1397 = scalar_lea.vmem %s17, %s1396
        %p1398 = scmp.lt.s32.totalorder %s68, 1
        %s1399 = scalar_select %p1398, %s68, 1
        %s1400 = scalar_lea.vmem %s18, %s1399
        %p1401 = scmp.lt.s32.totalorder %s68, 1
        %s1402 = scalar_select %p1401, %s68, 1
        %s1403 = scalar_lea.vmem %s21, %s1402
        %p1404 = scmp.lt.s32.totalorder %s68, 1
        %s1405 = scalar_select %p1404, %s68, 1
        %s1406 = smul.addr %s1405, 8
        %s1407 = smul.addr %s1406, 4
        %s1408 = scalar_lea.vmem %s22, %s1407
        %p1409 = scmp.lt.s32.totalorder %s68, 1
        %s1410 = scalar_select %p1409, %s68, 1
        %s1411 = scalar_lea.vmem %s23, %s1410
        %p1413 = scmp.eq.s32.totalorder %s68, 0
        // Predicated region
        $region165: #{tpu_custom_call.1} parent=123 // pred_check
          %p1414 = pneg %p1413
        $region166: #{tpu_custom_call.1} parent=123 // pred_check_branch
          %1416 = sbr.rel (%p1414) target = $region168
        $region167: #{tpu_custom_call.1} parent=123 // pred_region
          %v1417 = vld [vmem:[%s1110] sm:$0xff]
          %vm1418 = vcmask 261120
          %1419 = vst.msk [vmem:[#allocation2] sm:$0xff] %vm1418, %v1417
        $region168: #{tpu_custom_call.1} parent=123 // pred_fallthru
          _
        %v1420 = vld [vmem:[#allocation2] sm:$0xff]
        %v1421 = vld [vmem:[%s1120] sm:$0xf]
        %v1422 = vld [vmem:[%s1120 + $0x4] sm:$0xf]
        %v1423 = vld [vmem:[%s1129] sm:$0x1]
        %v1424 = vld [vmem:[%s1138] sm:$0x1]
        %v1425 = vlaneseq
        %v1426 = vshrl.u32 %v1425, 7
        %v1427 = vlaneseq
        %v1428 = vand.u32 %v1427, 127
        %vm1429 = vcmp.gt.s32.totalorder %v1428, %v1426
        %vm1430 = vcmp.gt.f32.partialorder %v1423, 0.5
        %v1431 = vsel %vm1430, 1, 0
        %v1432 = vperm.slane %v1431, 0
        %vm1433 = vcmp.eq.s32.totalorder %v1432, 1
        %vm1434 = vmor %vm1429, %vm1433
        %v1435 = vsel %vm1434, -1e+18, 0.0
        %vm1436 = vcmp.gt.f32.partialorder %v1424, 0.5
        %v1437 = vsel %vm1436, -1e+18, 0.0
        %v1438 = vld [vmem:[%s1364] sm:$0x1]
        %v1439 = vld [vmem:[%s1147] sm:$0x1]
        %vm1440 = vcmask 261120
        %v1441 = vsel %vm1440, %v1420, 0.0
        %1442 = vadd.xlane.f32.xlu0 %v1441
        %v1443 = vpop.xlane.xlu0 %1442
        %v1444 = vrcp.pop 32.0
        %v1445 = vmul.f32 32.0, %v1444
        %v1446 = vsub.f32 1.0, %v1445
        %v1447 = vmul.f32 %v1444, %v1446
        %v1448 = vadd.f32 %v1444, %v1447
        %vm1449 = vweird.f32 %v1444
        %v1450 = vsel %vm1449, %v1444, %v1448
        %v1451 = vmul.f32 %v1443, %v1450
        %v1452 = vsub.f32 %v1420, %v1451
        %v1453 = vmul.f32 %v1452, %v1452
        %v1454 = vsel %vm1440, %v1453, 0.0
        %1455 = vadd.xlane.f32.xlu0 %v1454
        %v1456 = vpop.xlane.xlu0 %1455
        %v1457 = vmul.f32 %v1456, %v1450
        %v1458 = vadd.f32 %v1457, 1e-06
        %v1459 = vrsqrt.pop %v1458
        %v1460 = vmul.f32 %v1459, %v1458
        %v1461 = vmul.f32 %v1460, %v1459
        %v1462 = vmul.f32 0.5, %v1461
        %v1463 = vsub.f32 1.5, %v1462
        %v1464 = vmul.f32 %v1459, %v1463
        %vm1465 = vweird.f32 %v1458
        %vm1466 = vweird.f32 %v1459
        %vm1467 = vmor %vm1465, %vm1466
        %v1468 = vsel %vm1467, %v1459, %v1464
        %v1469 = vmul.f32 %v1452, %v1468
        %v1471 = vperm.slane %v1438, 0
        %v1473 = vmul.f32 %v1469, %v1471
        %v1475 = vperm.slane %v1439, 0
        %v1477 = vadd.f32 %v1473, %v1475
        %1478 = vst.msk [vmem:[%s1361] sm:$0xff] %vm1440, %v1477
        %v1479 = vpack.c.bf16 %v1477, %v1477
        %v1480 = vld [vmem:[%s1369] sm:$0xf]
        %v1481 = vld [vmem:[%s1369 + $0x4] sm:$0xf]
        %v1482 = vld [vmem:[%s1369 + $0x8] sm:$0xf]
        %v1483 = vld [vmem:[%s1369 + $0xc] sm:$0xf]
        %v1484 = vld [vmem:[%s1372] sm:$0x1]
        %v1486 = vperm.slane %v1484, 0
        %v1492 = vunpack.c.l.b16 %v1480
        %v1493 = vunpack.c.l.b16 %v1481
        %v1494 = vunpack.c.l.b16 %v1482
        %v1495 = vunpack.c.l.b16 %v1483
        %v1496 = vpack.c.b16 %v1493, %v1492
        %v1497 = vpack.c.b16 %v1495, %v1494
        %v1501 = vsel %vm1440, %v1479, 0
        %1503 = vmatpush.bf16.msra.mxu0 0
        %1504 = vmatpush.bf16.msra.mxu0 0
        %1505 = vmatpush.bf16.msra.mxu0 0
        %1506 = vmatpush.bf16.msra.mxu0 0
        %1507 = vmatpush.bf16.msra.mxu0 0
        %1508 = vmatpush.bf16.msra.mxu0 0
        %1509 = vmatpush.bf16.msra.mxu0 %v1497
        %1510 = vmatpush.bf16.msra.mxu0 %v1496
        %1511 = vmatmul.bf16.gmra.mxu0 %v1501
        %v1512 = vpop.f32.mrf.mxu0
        %v1513 = vadd.f32 %v1486, %v1512
        %v1514 = vpop.f32.mrf.mxu0
        %1515 = vdwg.mxu0
        %1517 = vrot.lane.b32.xlu0 %v1513, 120
        %v1518 = vpop.permute.xlu0 %1517
        %1520 = vrot.lane.b32.xlu0 %v1513, 112
        %v1521 = vpop.permute.xlu0 %1520
        %1523 = vrot.lane.b32.xlu0 %v1513, 104
        %v1524 = vpop.permute.xlu0 %1523
        %v1526 = vpack.c.bf16 %v1513, %v1513
        %v1527 = vpack.c.bf16 %v1518, %v1518
        %v1528 = vpack.c.bf16 %v1521, %v1521
        %v1529 = vpack.c.bf16 %v1524, %v1524
        %v1531 = vunpack.c.l.b16 %v1526
        %v1532 = vpack.c.b16 %v1531, %v1531
        %1533 = vrot.lane.b32.xlu0 %v1532, 96
        %v1534 = vpop.permute.xlu0 %1533
        %vm1535 = vcmask 64512
        %v1537 = vsel %vm1535, %v1526, 0
        %v1540 = vsel %vm1535, %v1534, 0
        %1542 = vmatpush.bf16.xpose.msra.mxu0 0
        %1543 = vmatpush.bf16.xpose.msra.mxu0 0
        %1544 = vmatpush.bf16.xpose.msra.mxu0 0
        %1545 = vmatpush.bf16.xpose.msra.mxu0 0
        %1546 = vmatpush.bf16.xpose.msra.mxu0 0
        %1547 = vmatpush.bf16.xpose.msra.mxu0 0
        %1548 = vmatpush.bf16.xpose.msra.mxu0 0
        %1549 = vmatpush.bf16.xpose.msra.mxu0 %v1540
        %1550 = vmatmul.bf16.gmra.mxu0 %v1537
        %v1551 = vpop.f32.mrf.mxu0
        %v1552 = vadd.f32 %v1435, %v1551
        %v1553 = vpop.f32.mrf.mxu0
        %1554 = vdwg.mxu0
        %v1556 = vunpack.c.l.b16 %v1527
        %v1557 = vpack.c.b16 %v1556, %v1556
        %1558 = vrot.lane.b32.xlu0 %v1557, 96
        %v1559 = vpop.permute.xlu0 %1558
        %v1561 = vsel %vm1535, %v1527, 0
        %v1564 = vsel %vm1535, %v1559, 0
        %1566 = vmatpush.bf16.xpose.msra.mxu0 0
        %1567 = vmatpush.bf16.xpose.msra.mxu0 0
        %1568 = vmatpush.bf16.xpose.msra.mxu0 0
        %1569 = vmatpush.bf16.xpose.msra.mxu0 0
        %1570 = vmatpush.bf16.xpose.msra.mxu0 0
        %1571 = vmatpush.bf16.xpose.msra.mxu0 0
        %1572 = vmatpush.bf16.xpose.msra.mxu0 0
        %1573 = vmatpush.bf16.xpose.msra.mxu0 %v1564
        %1574 = vmatmul.bf16.gmra.mxu0 %v1561
        %v1575 = vpop.f32.mrf.mxu0
        %v1576 = vadd.f32 %v1435, %v1575
        %v1577 = vpop.f32.mrf.mxu0
        %1578 = vdwg.mxu0
        %v1580 = vunpack.c.l.b16 %v1528
        %v1581 = vpack.c.b16 %v1580, %v1580
        %1582 = vrot.lane.b32.xlu0 %v1581, 96
        %v1583 = vpop.permute.xlu0 %1582
        %v1585 = vsel %vm1535, %v1528, 0
        %v1588 = vsel %vm1535, %v1583, 0
        %1590 = vmatpush.bf16.xpose.msra.mxu0 0
        %1591 = vmatpush.bf16.xpose.msra.mxu0 0
        %1592 = vmatpush.bf16.xpose.msra.mxu0 0
        %1593 = vmatpush.bf16.xpose.msra.mxu0 0
        %1594 = vmatpush.bf16.xpose.msra.mxu0 0
        %1595 = vmatpush.bf16.xpose.msra.mxu0 0
        %1596 = vmatpush.bf16.xpose.msra.mxu0 0
        %1597 = vmatpush.bf16.xpose.msra.mxu0 %v1588
        %1598 = vmatmul.bf16.gmra.mxu0 %v1585
        %v1599 = vpop.f32.mrf.mxu0
        %v1600 = vadd.f32 %v1435, %v1599
        %v1601 = vpop.f32.mrf.mxu0
        %1602 = vdwg.mxu0
        %v1604 = vunpack.c.l.b16 %v1529
        %v1605 = vpack.c.b16 %v1604, %v1604
        %1606 = vrot.lane.b32.xlu0 %v1605, 96
        %v1607 = vpop.permute.xlu0 %1606
        %v1609 = vsel %vm1535, %v1529, 0
        %v1612 = vsel %vm1535, %v1607, 0
        %1614 = vmatpush.bf16.xpose.msra.mxu0 0
        %1615 = vmatpush.bf16.xpose.msra.mxu0 0
        %1616 = vmatpush.bf16.xpose.msra.mxu0 0
        %1617 = vmatpush.bf16.xpose.msra.mxu0 0
        %1618 = vmatpush.bf16.xpose.msra.mxu0 0
        %1619 = vmatpush.bf16.xpose.msra.mxu0 0
        %1620 = vmatpush.bf16.xpose.msra.mxu0 0
        %1621 = vmatpush.bf16.xpose.msra.mxu0 %v1612
        %1622 = vmatmul.bf16.gmra.mxu0 %v1609
        %v1623 = vpop.f32.mrf.mxu0
        %v1624 = vadd.f32 %v1435, %v1623
        %v1625 = vpop.f32.mrf.mxu0
        %1626 = vdwg.mxu0
        %v1627 = vsel %vm1535, %v1552, -inf
        %1628 = vmax.xlane.f32.xlu0 %v1627
        %v1629 = vpop.xlane.xlu0 %1628
        %v1630 = vsel %vm1535, %v1576, -inf
        %1631 = vmax.xlane.f32.xlu0 %v1630
        %v1632 = vpop.xlane.xlu0 %1631
        %v1633 = vsel %vm1535, %v1600, -inf
        %1634 = vmax.xlane.f32.xlu0 %v1633
        %v1635 = vpop.xlane.xlu0 %1634
        %v1636 = vsel %vm1535, %v1624, -inf
        %1637 = vmax.xlane.f32.xlu0 %v1636
        %v1638 = vpop.xlane.xlu0 %1637
        %v1639 = vsub.f32 %v1552, %v1629
        %v1640 = vsub.f32 %v1576, %v1632
        %v1641 = vsub.f32 %v1600, %v1635
        %v1642 = vsub.f32 %v1624, %v1638
        %v1643 = vmul.f32 %v1639, 1.442695
        %v1644 = vpow.pop %v1643
        %v1645 = vmul.f32 %v1640, 1.442695
        %v1646 = vpow.pop %v1645
        %v1647 = vmul.f32 %v1641, 1.442695
        %v1648 = vpow.pop %v1647
        %v1649 = vmul.f32 %v1642, 1.442695
        %v1650 = vpow.pop %v1649
        %v1651 = vsel %vm1535, %v1644, 0.0
        %1652 = vadd.xlane.f32.xlu0 %v1651
        %v1653 = vpop.xlane.xlu0 %1652
        %v1654 = vsel %vm1535, %v1646, 0.0
        %1655 = vadd.xlane.f32.xlu0 %v1654
        %v1656 = vpop.xlane.xlu0 %1655
        %v1657 = vsel %vm1535, %v1648, 0.0
        %1658 = vadd.xlane.f32.xlu0 %v1657
        %v1659 = vpop.xlane.xlu0 %1658
        %v1660 = vsel %vm1535, %v1650, 0.0
        %1661 = vadd.xlane.f32.xlu0 %v1660
        %v1662 = vpop.xlane.xlu0 %1661
        %v1663 = vrcp.pop %v1653
        %v1664 = vrcp.pop %v1656
        %v1665 = vrcp.pop %v1659
        %v1666 = vrcp.pop %v1662
        %v1667 = vmul.f32 %v1644, %v1663
        %v1668 = vmul.f32 %v1646, %v1664
        %v1669 = vmul.f32 %v1648, %v1665
        %v1670 = vmul.f32 %v1650, %v1666
        %v1671 = vpack.c.bf16 %v1667, %v1667
        %v1672 = vpack.c.bf16 %v1668, %v1668
        %v1673 = vpack.c.bf16 %v1669, %v1669
        %v1674 = vpack.c.bf16 %v1670, %v1670
        %1675 = vrot.lane.b32.xlu0 %v1532, 64
        %v1676 = vpop.permute.xlu0 %1675
        %v1678 = vsel %vm1535, %v1671, 0
        %vm1680 = vcmask 1043456
        %v1682 = vsel %vm1680, %v1676, 0
        %1684 = vmatpush.bf16.msra.mxu0 0
        %1685 = vmatpush.bf16.msra.mxu0 0
        %1686 = vmatpush.bf16.msra.mxu0 0
        %1687 = vmatpush.bf16.msra.mxu0 0
        %1688 = vmatpush.bf16.msra.mxu0 0
        %1689 = vmatpush.bf16.msra.mxu0 0
        %1690 = vmatpush.bf16.msra.mxu0 0
        %1691 = vmatpush.bf16.msra.mxu0 %v1682
        %1692 = vmatmul.bf16.gmra.mxu0 %v1678
        %v1693 = vpop.f32.mrf.mxu0
        %v1694 = vadd.f32 0.0, %v1693
        %v1695 = vpop.f32.mrf.mxu0
        %1696 = vdwg.mxu0
        %1697 = vrot.lane.b32.xlu0 %v1557, 64
        %v1698 = vpop.permute.xlu0 %1697
        %v1700 = vsel %vm1535, %v1672, 0
        %v1703 = vsel %vm1680, %v1698, 0
        %1705 = vmatpush.bf16.msra.mxu0 0
        %1706 = vmatpush.bf16.msra.mxu0 0
        %1707 = vmatpush.bf16.msra.mxu0 0
        %1708 = vmatpush.bf16.msra.mxu0 0
        %1709 = vmatpush.bf16.msra.mxu0 0
        %1710 = vmatpush.bf16.msra.mxu0 0
        %1711 = vmatpush.bf16.msra.mxu0 0
        %1712 = vmatpush.bf16.msra.mxu0 %v1703
        %1713 = vmatmul.bf16.gmra.mxu0 %v1700
        %v1714 = vpop.f32.mrf.mxu0
        %v1715 = vadd.f32 0.0, %v1714
        %v1716 = vpop.f32.mrf.mxu0
        %1717 = vdwg.mxu0
        %1718 = vrot.lane.b32.xlu0 %v1581, 64
        %v1719 = vpop.permute.xlu0 %1718
        %v1721 = vsel %vm1535, %v1673, 0
        %v1724 = vsel %vm1680, %v1719, 0
        %1726 = vmatpush.bf16.msra.mxu0 0
        %1727 = vmatpush.bf16.msra.mxu0 0
        %1728 = vmatpush.bf16.msra.mxu0 0
        %1729 = vmatpush.bf16.msra.mxu0 0
        %1730 = vmatpush.bf16.msra.mxu0 0
        %1731 = vmatpush.bf16.msra.mxu0 0
        %1732 = vmatpush.bf16.msra.mxu0 0
        %1733 = vmatpush.bf16.msra.mxu0 %v1724
        %1734 = vmatmul.bf16.gmra.mxu0 %v1721
        %v1735 = vpop.f32.mrf.mxu0
        %v1736 = vadd.f32 0.0, %v1735
        %v1737 = vpop.f32.mrf.mxu0
        %1738 = vdwg.mxu0
        %1739 = vrot.lane.b32.xlu0 %v1605, 64
        %v1740 = vpop.permute.xlu0 %1739
        %v1742 = vsel %vm1535, %v1674, 0
        %v1745 = vsel %vm1680, %v1740, 0
        %1747 = vmatpush.bf16.msra.mxu0 0
        %1748 = vmatpush.bf16.msra.mxu0 0
        %1749 = vmatpush.bf16.msra.mxu0 0
        %1750 = vmatpush.bf16.msra.mxu0 0
        %1751 = vmatpush.bf16.msra.mxu0 0
        %1752 = vmatpush.bf16.msra.mxu0 0
        %1753 = vmatpush.bf16.msra.mxu0 0
        %1754 = vmatpush.bf16.msra.mxu0 %v1745
        %1755 = vmatmul.bf16.gmra.mxu0 %v1742
        %v1756 = vpop.f32.mrf.mxu0
        %v1757 = vadd.f32 0.0, %v1756
        %v1758 = vpop.f32.mrf.mxu0
        %1759 = vdwg.mxu0
        %1761 = vrot.lane.b32.xlu0 %v1715, 8
        %v1762 = vpop.permute.xlu0 %1761
        %1765 = vrot.lane.b32.xlu0 %v1736, 16
        %v1766 = vpop.permute.xlu0 %1765
        %1769 = vrot.lane.b32.xlu0 %v1757, 24
        %v1770 = vpop.permute.xlu0 %1769
        %v1772 = vsel %vm1535, %v1694, %v1762
        %vm1773 = vcmask 130048
        %v1774 = vsel %vm1773, %v1772, %v1766
        %vm1775 = vcmask 195584
        %v1776 = vsel %vm1775, %v1774, %v1770
        %v1777 = vpack.c.bf16 %v1776, %v1776
        %v1778 = vld [vmem:[%s1377] sm:$0xf]
        %v1779 = vld [vmem:[%s1377 + $0x4] sm:$0xf]
        %v1780 = vld [vmem:[%s1377 + $0x8] sm:$0xf]
        %v1781 = vld [vmem:[%s1377 + $0xc] sm:$0xf]
        %v1782 = vld [vmem:[%s1380] sm:$0x1]
        %v1784 = vperm.slane %v1782, 0
        %v1790 = vunpack.c.l.b16 %v1778
        %v1791 = vunpack.c.l.b16 %v1779
        %v1792 = vunpack.c.l.b16 %v1780
        %v1793 = vunpack.c.l.b16 %v1781
        %v1794 = vpack.c.b16 %v1791, %v1790
        %v1795 = vpack.c.b16 %v1793, %v1792
        %v1799 = vsel %vm1440, %v1777, 0
        %1801 = vmatpush.bf16.msra.mxu0 0
        %1802 = vmatpush.bf16.msra.mxu0 0
        %1803 = vmatpush.bf16.msra.mxu0 0
        %1804 = vmatpush.bf16.msra.mxu0 0
        %1805 = vmatpush.bf16.msra.mxu0 0
        %1806 = vmatpush.bf16.msra.mxu0 0
        %1807 = vmatpush.bf16.msra.mxu0 %v1795
        %1808 = vmatpush.bf16.msra.mxu0 %v1794
        %1809 = vmatmul.bf16.gmra.mxu0 %v1799
        %v1810 = vpop.f32.mrf.mxu0
        %v1811 = vadd.f32 %v1784, %v1810
        %v1812 = vpop.f32.mrf.mxu0
        %1813 = vdwg.mxu0
        %v1814 = vadd.f32 %v1811, %v1420
        %v1815 = vld [vmem:[%s1383] sm:$0x1]
        %v1816 = vld [vmem:[%s1156] sm:$0x1]
        %v1817 = vsel %vm1440, %v1814, 0.0
        %1818 = vadd.xlane.f32.xlu0 %v1817
        %v1819 = vpop.xlane.xlu0 %1818
        %v1820 = vmul.f32 %v1819, %v1450
        %v1821 = vsub.f32 %v1814, %v1820
        %v1822 = vmul.f32 %v1821, %v1821
        %v1823 = vsel %vm1440, %v1822, 0.0
        %1824 = vadd.xlane.f32.xlu0 %v1823
        %v1825 = vpop.xlane.xlu0 %1824
        %v1826 = vmul.f32 %v1825, %v1450
        %v1827 = vadd.f32 %v1826, 1e-06
        %v1828 = vrsqrt.pop %v1827
        %v1829 = vmul.f32 %v1828, %v1827
        %v1830 = vmul.f32 %v1829, %v1828
        %v1831 = vmul.f32 0.5, %v1830
        %v1832 = vsub.f32 1.5, %v1831
        %v1833 = vmul.f32 %v1828, %v1832
        %vm1834 = vweird.f32 %v1827
        %vm1835 = vweird.f32 %v1828
        %vm1836 = vmor %vm1834, %vm1835
        %v1837 = vsel %vm1836, %v1828, %v1833
        %v1838 = vmul.f32 %v1821, %v1837
        %v1840 = vperm.slane %v1815, 0
        %v1842 = vmul.f32 %v1838, %v1840
        %v1844 = vperm.slane %v1816, 0
        %v1846 = vadd.f32 %v1842, %v1844
        %v1847 = vpack.c.bf16 %v1846, %v1846
        %v1848 = vld [vmem:[%s1388] sm:$0xf]
        %v1849 = vld [vmem:[%s1388 + $0x4] sm:$0xf]
        %v1850 = vld [vmem:[%s1388 + $0x8] sm:$0xf]
        %v1851 = vld [vmem:[%s1388 + $0xc] sm:$0xf]
        %v1852 = vld [vmem:[%s1391] sm:$0x1]
        %v1854 = vperm.slane %v1852, 0
        %v1860 = vunpack.c.l.b16 %v1848
        %v1861 = vunpack.c.l.b16 %v1849
        %v1862 = vunpack.c.l.b16 %v1850
        %v1863 = vunpack.c.l.b16 %v1851
        %v1864 = vpack.c.b16 %v1861, %v1860
        %v1865 = vpack.c.b16 %v1863, %v1862
        %v1869 = vsel %vm1440, %v1847, 0
        %1871 = vmatpush.bf16.msra.mxu0 0
        %1872 = vmatpush.bf16.msra.mxu0 0
        %1873 = vmatpush.bf16.msra.mxu0 0
        %1874 = vmatpush.bf16.msra.mxu0 0
        %1875 = vmatpush.bf16.msra.mxu0 0
        %1876 = vmatpush.bf16.msra.mxu0 0
        %1877 = vmatpush.bf16.msra.mxu0 %v1865
        %1878 = vmatpush.bf16.msra.mxu0 %v1864
        %1879 = vmatmul.bf16.gmra.mxu0 %v1869
        %v1880 = vpop.f32.mrf.mxu0
        %v1881 = vadd.f32 %v1854, %v1880
        %v1882 = vpop.f32.mrf.mxu0
        %1883 = vdwg.mxu0
        %v1884 = vld [vmem:[%s1166] sm:$0xf]
        %v1885 = vld [vmem:[%s1166 + $0x4] sm:$0xf]
        %v1886 = vld [vmem:[%s1166 + $0x8] sm:$0xf]
        %v1887 = vld [vmem:[%s1166 + $0xc] sm:$0xf]
        %v1888 = vld [vmem:[%s1394] sm:$0x1]
        %v1890 = vperm.slane %v1888, 0
        %v1894 = vunpack.c.l.b16 %v1421
        %v1895 = vunpack.c.l.b16 %v1422
        %v1896 = vpack.c.b16 %v1895, %v1894
        %v1901 = vunpack.c.l.b16 %v1884
        %v1902 = vunpack.c.l.b16 %v1885
        %v1903 = vunpack.c.l.b16 %v1886
        %v1904 = vunpack.c.l.b16 %v1887
        %v1905 = vpack.c.b16 %v1902, %v1901
        %v1906 = vpack.c.b16 %v1904, %v1903
        %v1910 = vsel %vm1440, %v1896, 0
        %1912 = vmatpush.bf16.msra.mxu0 0
        %1913 = vmatpush.bf16.msra.mxu0 0
        %1914 = vmatpush.bf16.msra.mxu0 0
        %1915 = vmatpush.bf16.msra.mxu0 0
        %1916 = vmatpush.bf16.msra.mxu0 0
        %1917 = vmatpush.bf16.msra.mxu0 0
        %1918 = vmatpush.bf16.msra.mxu0 %v1906
        %1919 = vmatpush.bf16.msra.mxu0 %v1905
        %1920 = vmatmul.bf16.gmra.mxu0 %v1910
        %v1921 = vpop.f32.mrf.mxu0
        %v1922 = vadd.f32 %v1890, %v1921
        %v1923 = vpop.f32.mrf.mxu0
        %v1924 = vadd.f32 %v1890, %v1923
        %1925 = vdwg.mxu0
        %1927 = vrot.lane.b32.xlu0 %v1881, 120
        %v1928 = vpop.permute.xlu0 %1927
        %1930 = vrot.lane.b32.xlu0 %v1881, 112
        %v1931 = vpop.permute.xlu0 %1930
        %1933 = vrot.lane.b32.xlu0 %v1881, 104
        %v1934 = vpop.permute.xlu0 %1933
        %v1936 = vpack.c.bf16 %v1881, %v1881
        %v1937 = vpack.c.bf16 %v1928, %v1928
        %v1938 = vpack.c.bf16 %v1931, %v1931
        %v1939 = vpack.c.bf16 %v1934, %v1934
        %1942 = vrot.lane.b32.xlu0 %v1922, 120
        %v1943 = vpop.permute.xlu0 %1942
        %1944 = vrot.lane.b32.xlu0 %v1924, 120
        %v1945 = vpop.permute.xlu0 %1944
        %1948 = vrot.lane.b32.xlu0 %v1922, 112
        %v1949 = vpop.permute.xlu0 %1948
        %1950 = vrot.lane.b32.xlu0 %v1924, 112
        %v1951 = vpop.permute.xlu0 %1950
        %1954 = vrot.lane.b32.xlu0 %v1922, 104
        %v1955 = vpop.permute.xlu0 %1954
        %1956 = vrot.lane.b32.xlu0 %v1924, 104
        %v1957 = vpop.permute.xlu0 %1956
        %v1960 = vpack.c.bf16 %v1922, %v1922
        %v1961 = vpack.c.bf16 %v1924, %v1924
        %v1962 = vpack.c.bf16 %v1943, %v1943
        %v1963 = vpack.c.bf16 %v1945, %v1945
        %v1964 = vpack.c.bf16 %v1949, %v1949
        %v1965 = vpack.c.bf16 %v1951, %v1951
        %v1966 = vpack.c.bf16 %v1955, %v1955
        %v1967 = vpack.c.bf16 %v1957, %v1957
        %v1969 = vperm.slane %v1437, 0
        %v1973 = vunpack.c.l.b16 %v1960
        %v1974 = vunpack.c.l.b16 %v1961
        %v1975 = vpack.c.b16 %v1974, %v1973
        %v1977 = vsel %vm1535, %v1936, 0
        %v1980 = vsel %vm1535, %v1975, 0
        %1982 = vmatpush.bf16.xpose.msra.mxu0 0
        %1983 = vmatpush.bf16.xpose.msra.mxu0 0
        %1984 = vmatpush.bf16.xpose.msra.mxu0 0
        %1985 = vmatpush.bf16.xpose.msra.mxu0 0
        %1986 = vmatpush.bf16.xpose.msra.mxu0 0
        %1987 = vmatpush.bf16.xpose.msra.mxu0 0
        %1988 = vmatpush.bf16.xpose.msra.mxu0 0
        %1989 = vmatpush.bf16.xpose.msra.mxu0 %v1980
        %1990 = vmatmul.bf16.gmra.mxu0 %v1977
        %v1991 = vpop.f32.mrf.mxu0
        %v1992 = vadd.f32 %v1969, %v1991
        %v1993 = vpop.f32.mrf.mxu0
        %1994 = vdwg.mxu0
        %v1997 = vunpack.c.l.b16 %v1962
        %v1998 = vunpack.c.l.b16 %v1963
        %v1999 = vpack.c.b16 %v1998, %v1997
        %v2001 = vsel %vm1535, %v1937, 0
        %v2004 = vsel %vm1535, %v1999, 0
        %2006 = vmatpush.bf16.xpose.msra.mxu0 0
        %2007 = vmatpush.bf16.xpose.msra.mxu0 0
        %2008 = vmatpush.bf16.xpose.msra.mxu0 0
        %2009 = vmatpush.bf16.xpose.msra.mxu0 0
        %2010 = vmatpush.bf16.xpose.msra.mxu0 0
        %2011 = vmatpush.bf16.xpose.msra.mxu0 0
        %2012 = vmatpush.bf16.xpose.msra.mxu0 0
        %2013 = vmatpush.bf16.xpose.msra.mxu0 %v2004
        %2014 = vmatmul.bf16.gmra.mxu0 %v2001
        %v2015 = vpop.f32.mrf.mxu0
        %v2016 = vadd.f32 %v1969, %v2015
        %v2017 = vpop.f32.mrf.mxu0
        %2018 = vdwg.mxu0
        %v2021 = vunpack.c.l.b16 %v1964
        %v2022 = vunpack.c.l.b16 %v1965
        %v2023 = vpack.c.b16 %v2022, %v2021
        %v2025 = vsel %vm1535, %v1938, 0
        %v2028 = vsel %vm1535, %v2023, 0
        %2030 = vmatpush.bf16.xpose.msra.mxu0 0
        %2031 = vmatpush.bf16.xpose.msra.mxu0 0
        %2032 = vmatpush.bf16.xpose.msra.mxu0 0
        %2033 = vmatpush.bf16.xpose.msra.mxu0 0
        %2034 = vmatpush.bf16.xpose.msra.mxu0 0
        %2035 = vmatpush.bf16.xpose.msra.mxu0 0
        %2036 = vmatpush.bf16.xpose.msra.mxu0 0
        %2037 = vmatpush.bf16.xpose.msra.mxu0 %v2028
        %2038 = vmatmul.bf16.gmra.mxu0 %v2025
        %v2039 = vpop.f32.mrf.mxu0
        %v2040 = vadd.f32 %v1969, %v2039
        %v2041 = vpop.f32.mrf.mxu0
        %2042 = vdwg.mxu0
        %v2045 = vunpack.c.l.b16 %v1966
        %v2046 = vunpack.c.l.b16 %v1967
        %v2047 = vpack.c.b16 %v2046, %v2045
        %v2049 = vsel %vm1535, %v1939, 0
        %v2052 = vsel %vm1535, %v2047, 0
        %2054 = vmatpush.bf16.xpose.msra.mxu0 0
        %2055 = vmatpush.bf16.xpose.msra.mxu0 0
        %2056 = vmatpush.bf16.xpose.msra.mxu0 0
        %2057 = vmatpush.bf16.xpose.msra.mxu0 0
        %2058 = vmatpush.bf16.xpose.msra.mxu0 0
        %2059 = vmatpush.bf16.xpose.msra.mxu0 0
        %2060 = vmatpush.bf16.xpose.msra.mxu0 0
        %2061 = vmatpush.bf16.xpose.msra.mxu0 %v2052
        %2062 = vmatmul.bf16.gmra.mxu0 %v2049
        %v2063 = vpop.f32.mrf.mxu0
        %v2064 = vadd.f32 %v1969, %v2063
        %v2065 = vpop.f32.mrf.mxu0
        %2066 = vdwg.mxu0
        %v2067 = vsel %vm1773, %v1992, -inf
        %2068 = vmax.xlane.f32.xlu0 %v2067
        %v2069 = vpop.xlane.xlu0 %2068
        %v2070 = vsel %vm1773, %v2016, -inf
        %2071 = vmax.xlane.f32.xlu0 %v2070
        %v2072 = vpop.xlane.xlu0 %2071
        %v2073 = vsel %vm1773, %v2040, -inf
        %2074 = vmax.xlane.f32.xlu0 %v2073
        %v2075 = vpop.xlane.xlu0 %2074
        %v2076 = vsel %vm1773, %v2064, -inf
        %2077 = vmax.xlane.f32.xlu0 %v2076
        %v2078 = vpop.xlane.xlu0 %2077
        %v2079 = vsub.f32 %v1992, %v2069
        %v2080 = vsub.f32 %v2016, %v2072
        %v2081 = vsub.f32 %v2040, %v2075
        %v2082 = vsub.f32 %v2064, %v2078
        %v2083 = vmul.f32 %v2079, 1.442695
        %v2084 = vpow.pop %v2083
        %v2085 = vmul.f32 %v2080, 1.442695
        %v2086 = vpow.pop %v2085
        %v2087 = vmul.f32 %v2081, 1.442695
        %v2088 = vpow.pop %v2087
        %v2089 = vmul.f32 %v2082, 1.442695
        %v2090 = vpow.pop %v2089
        %v2091 = vsel %vm1773, %v2084, 0.0
        %2092 = vadd.xlane.f32.xlu0 %v2091
        %v2093 = vpop.xlane.xlu0 %2092
        %v2094 = vsel %vm1773, %v2086, 0.0
        %2095 = vadd.xlane.f32.xlu0 %v2094
        %v2096 = vpop.xlane.xlu0 %2095
        %v2097 = vsel %vm1773, %v2088, 0.0
        %2098 = vadd.xlane.f32.xlu0 %v2097
        %v2099 = vpop.xlane.xlu0 %2098
        %v2100 = vsel %vm1773, %v2090, 0.0
        %2101 = vadd.xlane.f32.xlu0 %v2100
        %v2102 = vpop.xlane.xlu0 %2101
        %v2103 = vrcp.pop %v2093
        %v2104 = vrcp.pop %v2096
        %v2105 = vrcp.pop %v2099
        %v2106 = vrcp.pop %v2102
        %v2107 = vmul.f32 %v2084, %v2103
        %v2108 = vmul.f32 %v2086, %v2104
        %v2109 = vmul.f32 %v2088, %v2105
        %v2110 = vmul.f32 %v2090, %v2106
        %v2111 = vpack.c.bf16 %v2107, %v2107
        %v2112 = vpack.c.bf16 %v2108, %v2108
        %v2113 = vpack.c.bf16 %v2109, %v2109
        %v2114 = vpack.c.bf16 %v2110, %v2110
        %2115 = vrot.lane.b32.xlu0 %v1975, 96
        %v2116 = vpop.permute.xlu0 %2115
        %v2119 = vsel %vm1773, %v2111, 0
        %2121 = vmatpush.bf16.msra.mxu0 0
        %2122 = vmatpush.bf16.msra.mxu0 0
        %2123 = vmatpush.bf16.msra.mxu0 0
        %2124 = vmatpush.bf16.msra.mxu0 0
        %2125 = vmatpush.bf16.msra.mxu0 0
        %2126 = vmatpush.bf16.msra.mxu0 0
        %2127 = vmatpush.bf16.msra.mxu0 0
        %2128 = vmatpush.bf16.msra.mxu0 %v2116
        %2129 = vmatmul.bf16.gmra.mxu0 %v2119
        %v2130 = vpop.f32.mrf.mxu0
        %v2131 = vadd.f32 0.0, %v2130
        %v2132 = vpop.f32.mrf.mxu0
        %2133 = vdwg.mxu0
        %2134 = vrot.lane.b32.xlu0 %v1999, 96
        %v2135 = vpop.permute.xlu0 %2134
        %v2138 = vsel %vm1773, %v2112, 0
        %2140 = vmatpush.bf16.msra.mxu0 0
        %2141 = vmatpush.bf16.msra.mxu0 0
        %2142 = vmatpush.bf16.msra.mxu0 0
        %2143 = vmatpush.bf16.msra.mxu0 0
        %2144 = vmatpush.bf16.msra.mxu0 0
        %2145 = vmatpush.bf16.msra.mxu0 0
        %2146 = vmatpush.bf16.msra.mxu0 0
        %2147 = vmatpush.bf16.msra.mxu0 %v2135
        %2148 = vmatmul.bf16.gmra.mxu0 %v2138
        %v2149 = vpop.f32.mrf.mxu0
        %v2150 = vadd.f32 0.0, %v2149
        %v2151 = vpop.f32.mrf.mxu0
        %2152 = vdwg.mxu0
        %2153 = vrot.lane.b32.xlu0 %v2023, 96
        %v2154 = vpop.permute.xlu0 %2153
        %v2157 = vsel %vm1773, %v2113, 0
        %2159 = vmatpush.bf16.msra.mxu0 0
        %2160 = vmatpush.bf16.msra.mxu0 0
        %2161 = vmatpush.bf16.msra.mxu0 0
        %2162 = vmatpush.bf16.msra.mxu0 0
        %2163 = vmatpush.bf16.msra.mxu0 0
        %2164 = vmatpush.bf16.msra.mxu0 0
        %2165 = vmatpush.bf16.msra.mxu0 0
        %2166 = vmatpush.bf16.msra.mxu0 %v2154
        %2167 = vmatmul.bf16.gmra.mxu0 %v2157
        %v2168 = vpop.f32.mrf.mxu0
        %v2169 = vadd.f32 0.0, %v2168
        %v2170 = vpop.f32.mrf.mxu0
        %2171 = vdwg.mxu0
        %2172 = vrot.lane.b32.xlu0 %v2047, 96
        %v2173 = vpop.permute.xlu0 %2172
        %v2176 = vsel %vm1773, %v2114, 0
        %2178 = vmatpush.bf16.msra.mxu0 0
        %2179 = vmatpush.bf16.msra.mxu0 0
        %2180 = vmatpush.bf16.msra.mxu0 0
        %2181 = vmatpush.bf16.msra.mxu0 0
        %2182 = vmatpush.bf16.msra.mxu0 0
        %2183 = vmatpush.bf16.msra.mxu0 0
        %2184 = vmatpush.bf16.msra.mxu0 0
        %2185 = vmatpush.bf16.msra.mxu0 %v2173
        %2186 = vmatmul.bf16.gmra.mxu0 %v2176
        %v2187 = vpop.f32.mrf.mxu0
        %v2188 = vadd.f32 0.0, %v2187
        %v2189 = vpop.f32.mrf.mxu0
        %2190 = vdwg.mxu0
        %2192 = vrot.lane.b32.xlu0 %v2150, 8
        %v2193 = vpop.permute.xlu0 %2192
        %2196 = vrot.lane.b32.xlu0 %v2169, 16
        %v2197 = vpop.permute.xlu0 %2196
        %2200 = vrot.lane.b32.xlu0 %v2188, 24
        %v2201 = vpop.permute.xlu0 %2200
        %v2203 = vsel %vm1535, %v2131, %v2193
        %v2204 = vsel %vm1773, %v2203, %v2197
        %v2205 = vsel %vm1775, %v2204, %v2201
        %v2206 = vpack.c.bf16 %v2205, %v2205
        %v2207 = vld [vmem:[%s1176] sm:$0xf]
        %v2208 = vld [vmem:[%s1176 + $0x4] sm:$0xf]
        %v2209 = vld [vmem:[%s1176 + $0x8] sm:$0xf]
        %v2210 = vld [vmem:[%s1176 + $0xc] sm:$0xf]
        %v2211 = vld [vmem:[%s1397] sm:$0x1]
        %v2213 = vperm.slane %v2211, 0
        %v2219 = vunpack.c.l.b16 %v2207
        %v2220 = vunpack.c.l.b16 %v2208
        %v2221 = vunpack.c.l.b16 %v2209
        %v2222 = vunpack.c.l.b16 %v2210
        %v2223 = vpack.c.b16 %v2220, %v2219
        %v2224 = vpack.c.b16 %v2222, %v2221
        %v2228 = vsel %vm1440, %v2206, 0
        %2230 = vmatpush.bf16.msra.mxu0 0
        %2231 = vmatpush.bf16.msra.mxu0 0
        %2232 = vmatpush.bf16.msra.mxu0 0
        %2233 = vmatpush.bf16.msra.mxu0 0
        %2234 = vmatpush.bf16.msra.mxu0 0
        %2235 = vmatpush.bf16.msra.mxu0 0
        %2236 = vmatpush.bf16.msra.mxu0 %v2224
        %2237 = vmatpush.bf16.msra.mxu0 %v2223
        %2238 = vmatmul.bf16.gmra.mxu0 %v2228
        %v2239 = vpop.f32.mrf.mxu0
        %v2240 = vadd.f32 %v2213, %v2239
        %v2241 = vpop.f32.mrf.mxu0
        %2242 = vdwg.mxu0
        %v2243 = vadd.f32 %v2240, %v1814
        %v2244 = vld [vmem:[%s1400] sm:$0x1]
        %v2245 = vld [vmem:[%s1185] sm:$0x1]
        %v2246 = vsel %vm1440, %v2243, 0.0
        %2247 = vadd.xlane.f32.xlu0 %v2246
        %v2248 = vpop.xlane.xlu0 %2247
        %v2249 = vmul.f32 %v2248, %v1450
        %v2250 = vsub.f32 %v2243, %v2249
        %v2251 = vmul.f32 %v2250, %v2250
        %v2252 = vsel %vm1440, %v2251, 0.0
        %2253 = vadd.xlane.f32.xlu0 %v2252
        %v2254 = vpop.xlane.xlu0 %2253
        %v2255 = vmul.f32 %v2254, %v1450
        %v2256 = vadd.f32 %v2255, 1e-06
        %v2257 = vrsqrt.pop %v2256
        %v2258 = vmul.f32 %v2257, %v2256
        %v2259 = vmul.f32 %v2258, %v2257
        %v2260 = vmul.f32 0.5, %v2259
        %v2261 = vsub.f32 1.5, %v2260
        %v2262 = vmul.f32 %v2257, %v2261
        %vm2263 = vweird.f32 %v2256
        %vm2264 = vweird.f32 %v2257
        %vm2265 = vmor %vm2263, %vm2264
        %v2266 = vsel %vm2265, %v2257, %v2262
        %v2267 = vmul.f32 %v2250, %v2266
        %v2269 = vperm.slane %v2244, 0
        %v2271 = vmul.f32 %v2267, %v2269
        %v2273 = vperm.slane %v2245, 0
        %v2275 = vadd.f32 %v2271, %v2273
        %v2276 = vpack.c.bf16 %v2275, %v2275
        %v2277 = vld [vmem:[%s1195] sm:$0xf]
        %v2278 = vld [vmem:[%s1195 + $0x4] sm:$0xf]
        %v2279 = vld [vmem:[%s1195 + $0x8] sm:$0xf]
        %v2280 = vld [vmem:[%s1195 + $0xc] sm:$0xf]
        %v2281 = vld [vmem:[%s1403] sm:$0x1]
        %v2283 = vperm.slane %v2281, 0
        %v2289 = vunpack.c.l.b16 %v2277
        %v2290 = vunpack.c.l.b16 %v2278
        %v2291 = vunpack.c.l.b16 %v2279
        %v2292 = vunpack.c.l.b16 %v2280
        %v2293 = vpack.c.b16 %v2290, %v2289
        %v2294 = vpack.c.b16 %v2292, %v2291
        %v2298 = vsel %vm1440, %v2276, 0
        %2300 = vmatpush.bf16.msra.mxu0 0
        %2301 = vmatpush.bf16.msra.mxu0 0
        %2302 = vmatpush.bf16.msra.mxu0 0
        %2303 = vmatpush.bf16.msra.mxu0 0
        %2304 = vmatpush.bf16.msra.mxu0 0
        %2305 = vmatpush.bf16.msra.mxu0 0
        %2306 = vmatpush.bf16.msra.mxu0 %v2294
        %2307 = vmatpush.bf16.msra.mxu0 %v2293
        %2308 = vmatmul.bf16.gmra.mxu0 %v2298
        %v2309 = vpop.f32.mrf.mxu0
        %v2310 = vadd.f32 %v2283, %v2309
        %v2311 = vpop.f32.mrf.mxu0
        %2312 = vdwg.mxu0
        %v2313 = vmul.f32 %v2310, 0.5
        %v2314 = vmul.f32 %v2310, 0.044715
        %v2315 = vmul.f32 %v2314, %v2310
        %v2316 = vmul.f32 %v2315, %v2310
        %v2317 = vadd.f32 %v2310, %v2316
        %v2318 = vmul.f32 %v2317, 0.7978846
        %v2319 = vtanh.pop %v2318
        %v2320 = vadd.f32 %v2319, 1.0
        %v2321 = vmul.f32 %v2313, %v2320
        %v2322 = vpack.c.bf16 %v2321, %v2321
        %v2323 = vld [vmem:[%s1408] sm:$0xf]
        %v2324 = vld [vmem:[%s1408 + $0x4] sm:$0xf]
        %v2325 = vld [vmem:[%s1408 + $0x8] sm:$0xf]
        %v2326 = vld [vmem:[%s1408 + $0xc] sm:$0xf]
        %v2327 = vld [vmem:[%s1408 + $0x10] sm:$0xf]
        %v2328 = vld [vmem:[%s1408 + $0x14] sm:$0xf]
        %v2329 = vld [vmem:[%s1408 + $0x18] sm:$0xf]
        %v2330 = vld [vmem:[%s1408 + $0x1c] sm:$0xf]
        %v2331 = vld [vmem:[%s1411] sm:$0x1]
        %v2333 = vperm.slane %v2331, 0
        %v2343 = vunpack.c.l.b16 %v2323
        %v2344 = vunpack.c.l.b16 %v2324
        %v2345 = vunpack.c.l.b16 %v2325
        %v2346 = vunpack.c.l.b16 %v2326
        %v2347 = vunpack.c.l.b16 %v2327
        %v2348 = vunpack.c.l.b16 %v2328
        %v2349 = vunpack.c.l.b16 %v2329
        %v2350 = vunpack.c.l.b16 %v2330
        %v2351 = vpack.c.b16 %v2344, %v2343
        %v2352 = vpack.c.b16 %v2346, %v2345
        %v2353 = vpack.c.b16 %v2348, %v2347
        %v2354 = vpack.c.b16 %v2350, %v2349
        %vm2359 = vcmask 523264
        %v2361 = vsel %vm2359, %v2322, 0
        %2363 = vmatpush.bf16.msra.mxu0 0
        %2364 = vmatpush.bf16.msra.mxu0 0
        %2365 = vmatpush.bf16.msra.mxu0 0
        %2366 = vmatpush.bf16.msra.mxu0 0
        %2367 = vmatpush.bf16.msra.mxu0 %v2354
        %2368 = vmatpush.bf16.msra.mxu0 %v2353
        %2369 = vmatpush.bf16.msra.mxu0 %v2352
        %2370 = vmatpush.bf16.msra.mxu0 %v2351
        %2371 = vmatmul.bf16.gmra.mxu0 %v2361
        %v2372 = vpop.f32.mrf.mxu0
        %v2373 = vadd.f32 %v2333, %v2372
        %v2374 = vpop.f32.mrf.mxu0
        %2375 = vdwg.mxu0
        %v2376 = vadd.f32 %v2373, %v2243
        %2377 = vst.msk [vmem:[#allocation2] sm:$0xff] %vm1440, %v2376
        %p2378 = scmp.eq.s32.totalorder %s68, 1
        // Predicated region
        $region169: #{tpu_custom_call.1} parent=123 // pred_check
          %p2379 = pneg %p2378
        $region170: #{tpu_custom_call.1} parent=123 // pred_check_branch
          %2381 = sbr.rel (%p2379) target = $region172
        $region171: #{tpu_custom_call.1} parent=123 // pred_region
          %v2382 = vld [vmem:[%s24] sm:$0x1]
          %v2383 = vld [vmem:[%s25] sm:$0x1]
          %v2384 = vsel %vm1440, %v2376, 0.0
          %2385 = vadd.xlane.f32.xlu0 %v2384
          %v2386 = vpop.xlane.xlu0 %2385
          %v2387 = vmul.f32 %v2386, %v1450
          %v2388 = vsub.f32 %v2376, %v2387
          %v2389 = vmul.f32 %v2388, %v2388
          %v2390 = vsel %vm1440, %v2389, 0.0
          %2391 = vadd.xlane.f32.xlu0 %v2390
          %v2392 = vpop.xlane.xlu0 %2391
          %v2393 = vmul.f32 %v2392, %v1450
          %v2394 = vadd.f32 %v2393, 1e-06
          %v2395 = vrsqrt.pop %v2394
          %v2396 = vmul.f32 %v2395, %v2394
          %v2397 = vmul.f32 %v2396, %v2395
          %v2398 = vmul.f32 0.5, %v2397
          %v2399 = vsub.f32 1.5, %v2398
          %v2400 = vmul.f32 %v2395, %v2399
          %vm2401 = vweird.f32 %v2394
          %vm2402 = vweird.f32 %v2395
          %vm2403 = vmor %vm2401, %vm2402
          %v2404 = vsel %vm2403, %v2395, %v2400
          %v2405 = vmul.f32 %v2388, %v2404
          %v2407 = vperm.slane %v2382, 0
          %v2409 = vmul.f32 %v2405, %v2407
          %v2411 = vperm.slane %v2383, 0
          %v2413 = vadd.f32 %v2409, %v2411
          %2414 = vst.msk [vmem:[%s1354] sm:$0xff] %vm1440, %v2413
        $region172: #{tpu_custom_call.1} parent=123 // pred_fallthru
          _
        %s2415 = sand.u32 %s749, 1
        %s2416 = scalar_lea.sflag [#allocation5], %s2415
        %s2417 = sand.u32 %s749, 1
        %s2418 = smul.addr %s2417, 8
        %s2419 = scalar_lea.vmem [#allocation20], %s2418
        %s2420 = sand.u32 %s777, 1
        %s2421 = scalar_lea.sflag [#allocation22], %s2420
        %s2422 = sand.u32 %s777, 1
        %s2423 = smul.addr %s2422, 8
        %s2424 = scalar_lea.vmem [#allocation21], %s2423
        // Predicated region
        $region173: #{tpu_custom_call.1} parent=123 // pred_check
          %p2425 = pneg %p759
        $region174: #{tpu_custom_call.1} parent=123 // pred_check_branch
          %2427 = sbr.rel (%p2425) target = $region176
        $region175: #{tpu_custom_call.1} parent=123 // pred_region
          %2429 = vsyncadd %s2416, 0
          %s2430 = smul.addr %s67, 8
          %s2431 = scalar_lea.hbm %s26, %s2430
          %s2433 = sshll.u32 %s2419, 4
          %s2434 = int_to_ptr.vmem [resolvable:$true] %s2433
          %s2435 = sshll.u32 %s2431, 4
          %s2436 = int_to_ptr.hbm [resolvable:$true] %s2435
          %2438 = dma.vmem_to_hbm [thread:$0]  %s2434, 128, %s2436, %s2416
        $region176: #{tpu_custom_call.1} parent=123 // pred_fallthru
          _
        // Predicated region
        $region177: #{tpu_custom_call.1} parent=123 // pred_check
          %p2439 = pneg %p787
        $region178: #{tpu_custom_call.1} parent=123 // pred_check_branch
          %2441 = sbr.rel (%p2439) target = $region180
        $region179: #{tpu_custom_call.1} parent=123 // pred_region
          %2443 = vsyncadd %s2421, 0
          %s2444 = smul.addr %s68, 2
          %s2445 = sadd.s32 %s67, %s2444
          %s2446 = smul.addr %s2445, 8
          %s2447 = scalar_lea.hbm %s27, %s2446
          %s2449 = sshll.u32 %s2424, 4
          %s2450 = int_to_ptr.vmem [resolvable:$true] %s2449
          %s2451 = sshll.u32 %s2447, 4
          %s2452 = int_to_ptr.hbm [resolvable:$true] %s2451
          %2454 = dma.vmem_to_hbm [thread:$0]  %s2450, 128, %s2452, %s2421
        $region180: #{tpu_custom_call.1} parent=123 // pred_fallthru
          _
      $region124: #{tpu_custom_call.1} parent=5 // pred_fallthru
        _
      %p2455 = scmp.le.s32.totalorder 2, %s58
      // Predicated region
      $region181: #{tpu_custom_call.1} parent=5 // pred_check
        %p2456 = pneg %p2455
      $region182: #{tpu_custom_call.1} parent=5 // pred_check_branch
        %2458 = sbr.rel (%p2456) target = $region184
      $region183: #{tpu_custom_call.1} parent=5 // pred_region
        %s2459 = ssub.s32 %s58, 2
        // Predicated region
        $region185: #{tpu_custom_call.1} parent=183 // pred_check
          %p2460 = pneg %p765
        $region186: #{tpu_custom_call.1} parent=183 // pred_check_branch
          %2462 = sbr.rel (%p2460) target = $region188
        $region187: #{tpu_custom_call.1} parent=183 // pred_region
          %s2463 = sand.u32 %s750, 1
          %s2464 = scalar_lea.sflag [#allocation5], %s2463
          %s2465 = sand.u32 %s750, 1
          %s2466 = smul.addr %s2465, 8
          %s2467 = scalar_lea.vmem [#allocation20], %s2466
          %2469 = dma.done %s2464, 128
        $region188: #{tpu_custom_call.1} parent=183 // pred_fallthru
          _
        // Predicated region
        $region189: #{tpu_custom_call.1} parent=183 // pred_check
          %p2470 = pneg %p793
        $region190: #{tpu_custom_call.1} parent=183 // pred_check_branch
          %2472 = sbr.rel (%p2470) target = $region192
        $region191: #{tpu_custom_call.1} parent=183 // pred_region
          %s2473 = sand.u32 %s778, 1
          %s2474 = scalar_lea.sflag [#allocation22], %s2473
          %s2475 = sand.u32 %s778, 1
          %s2476 = smul.addr %s2475, 8
          %s2477 = scalar_lea.vmem [#allocation21], %s2476
          %2479 = dma.done %s2474, 128
        $region192: #{tpu_custom_call.1} parent=183 // pred_fallthru
          _
      $region184: #{tpu_custom_call.1} parent=5 // pred_fallthru
        _
    $region6: #{tpu_custom_call.1} parent=1 // loop_footer
      %s62 = sadd.s32 1, %s58
    $region7: #{tpu_custom_call.1} parent=1 // loop_footer_branch
      %57 = sbr.rel target = $region3
    $region8: #{tpu_custom_call.1} parent=1 // loop_exit
      _
    %2480 = vsyncpa [#allocation4], 1
    %s2481 = scalar_lea.sflag [#allocation4], 1
    %2482 = vsyncpa %s2481, 1
    %2483 = vsyncpa [#allocation7], 1
    %s2484 = scalar_lea.sflag [#allocation7], 1
    %2485 = vsyncpa %s2484, 1
    %2486 = vsyncpa [#allocation10], 1
    %s2487 = scalar_lea.sflag [#allocation10], 1
    %2488 = vsyncpa %s2487, 1
    %2489 = vsyncpa [#allocation13], 1
    %s2490 = scalar_lea.sflag [#allocation13], 1
    %2491 = vsyncpa %s2490, 1
    %2492 = vsyncpa [#allocation16], 1
    %s2493 = scalar_lea.sflag [#allocation16], 1
    %2494 = vsyncpa %s2493, 1
    %2495 = vsyncpa [#allocation19], 1
    %s2496 = scalar_lea.sflag [#allocation19], 1
    %2497 = vsyncpa %s2496, 1
    %2498 = vsyncpa [#allocation5], 1
    %s2499 = scalar_lea.sflag [#allocation5], 1
    %2500 = vsyncpa %s2499, 1
    %2501 = vsyncpa [#allocation22], 1
    %s2502 = scalar_lea.sflag [#allocation22], 1
    %2503 = vsyncpa %s2502, 1

</llo_original>
